<compile_context>
chip_gen: v7x
topology: tpu7x:2x2x1
jax: 0.10.0
libtpu: 0.0.40
codegen_flags: <defaults>
</compile_context>

<pallas_src>
import functools

import jax
import jax.numpy as jnp
from jax import lax
from jax.experimental import pallas as pl
from jax.experimental.pallas import tpu as pltpu

# ----------------------------- configuration --------------------------------
D_MODEL = 32
N_HEADS = 4
HEAD_DIM = D_MODEL // N_HEADS
D_FF = 64
NUM_LAYERS = 2          # module default is 6; kept small for the demo run
LN_EPS = 1e-5

# bf16 MXU inputs, f32 accumulation (per v6e/v7x feedback).
MXU_DTYPE = jnp.bfloat16

# Whole-array VMEM blocks (shapes are tiny, no grid tiling needed).
VMEM = pl.BlockSpec(memory_space=pltpu.MemorySpace.VMEM)


# --------------------------- in-kernel helpers --------------------------------
def _mm(a, b):
    """a @ b with bf16 MXU inputs and f32 accumulation."""
    return jnp.dot(a.astype(MXU_DTYPE), b.astype(MXU_DTYPE),
                   preferred_element_type=jnp.float32)


def _mm_nt(a, b):
    """a @ b.T without materializing the transpose (contract last dims)."""
    return lax.dot_general(a.astype(MXU_DTYPE), b.astype(MXU_DTYPE),
                           (((1,), (1,)), ((), ())),
                           preferred_element_type=jnp.float32)


def _layernorm(x, g, b):
    mean = jnp.mean(x, axis=-1, keepdims=True)
    c = x - mean
    var = jnp.mean(c * c, axis=-1, keepdims=True)
    return c * lax.rsqrt(var + LN_EPS) * g + b


def _attention(q, k, v, mask, wo, bo):
    """Multi-head attention + output projection, heads sliced in-kernel.

    concat_h(o_h) @ wo == sum_h o_h @ wo[h*Dh:(h+1)*Dh, :], so no concat needed.
    """
    scale = 1.0 / float(HEAD_DIM) ** 0.5
    out = None
    for h in range(N_HEADS):
        sl = slice(h * HEAD_DIM, (h + 1) * HEAD_DIM)
        s = _mm_nt(q[:, sl], k[:, sl]) * scale + mask          # [Nq, Nk] f32
        m = jnp.max(s, axis=-1, keepdims=True)
        p = jnp.exp(s - m)
        denom = jnp.sum(p, axis=-1, keepdims=True)
        oh = _mm(p, v[:, sl]) * pl.reciprocal(denom, approx=True)
        proj = _mm(oh, wo[sl, :])
        out = proj if out is None else out + proj
    return out + bo


# --------------------------- fused decoder-layer kernel -----------------------
def _decoder_layer_kernel(
    q_ref, pos_ref, bqc_ref, bqr_ref, bmr_ref, mem_ref, amask_ref,
    sa_wqk_ref, sa_bqk_ref, sa_wv_ref, sa_bv_ref, sa_wo_ref, sa_bo_ref,
    ca_wq_ref, ca_bq_ref, ca_wkv_ref, ca_bkv_ref, ca_wo_ref, ca_bo_ref,
    ffn_w1_ref, ffn_b1_ref, ffn_w2_ref, ffn_b2_ref,
    ln1_g_ref, ln1_b_ref, ln2_g_ref, ln2_b_ref, ln3_g_ref, ln3_b_ref,
    o_ref,
):
    x = q_ref[...]
    pos = pos_ref[...]
    mem = mem_ref[...]

    # Block-diagonal masks built on the VPU from the small batch-index vectors.
    # amask_ref is (1,1) zeros when attn_mask is None (broadcasts for free).
    self_mask = jnp.where(bqc_ref[...] == bqr_ref[...], 0.0, -1e9) + amask_ref[...]
    cross_mask = jnp.where(bqc_ref[...] == bmr_ref[...], 0.0, -1e9)

    # --- self attention (DETR style: q = k = queries + pos, v = queries) ---
    q_in = x + pos
    qk = _mm(q_in, sa_wqk_ref[...]) + sa_bqk_ref[...]          # [N, 2D]
    v = _mm(x, sa_wv_ref[...]) + sa_bv_ref[...]                # [N, D]
    sa = _attention(qk[:, :D_MODEL], qk[:, D_MODEL:], v, self_mask,
                    sa_wo_ref[...], sa_bo_ref[...])
    x = _layernorm(x + sa, ln1_g_ref[...], ln1_b_ref[...])

    # --- cross attention over the flattened feature-map tokens ---
    # TODO(synk): the real layer uses multi-scale deformable attention sampled at
    # query_reference_points on a sparse tensor; dense cross-attention used here.
    qc = _mm(x + pos, ca_wq_ref[...]) + ca_bq_ref[...]         # [N, D]
    kv = _mm(mem, ca_wkv_ref[...]) + ca_bkv_ref[...]           # [M, 2D]
    ca = _attention(qc, kv[:, :D_MODEL], kv[:, D_MODEL:], cross_mask,
                    ca_wo_ref[...], ca_bo_ref[...])
    x = _layernorm(x + ca, ln2_g_ref[...], ln2_b_ref[...])

    # --- FFN ---
    h = jnp.maximum(_mm(x, ffn_w1_ref[...]) + ffn_b1_ref[...], 0.0)
    h = _mm(h, ffn_w2_ref[...]) + ffn_b2_ref[...]
    x = _layernorm(x + h, ln3_g_ref[...], ln3_b_ref[...])

    o_ref[...] = x


def pallas_decoder_layer(lp, queries, pos_enc, bq_col, bq_row, bm_row, memory, amask):
    n, d = queries.shape
    inputs = (queries, pos_enc, bq_col, bq_row, bm_row, memory, amask,
              lp["sa_wqk"], lp["sa_bqk"], lp["sa_wv"], lp["sa_bv"], lp["sa_wo"], lp["sa_bo"],
              lp["ca_wq"], lp["ca_bq"], lp["ca_wkv"], lp["ca_bkv"], lp["ca_wo"], lp["ca_bo"],
              lp["ffn_w1"], lp["ffn_b1"], lp["ffn_w2"], lp["ffn_b2"],
              lp["ln1_g"], lp["ln1_b"], lp["ln2_g"], lp["ln2_b"], lp["ln3_g"], lp["ln3_b"])
    return pl.pallas_call(
        _decoder_layer_kernel,
        out_shape=jax.ShapeDtypeStruct((n, d), jnp.float32),
        in_specs=[VMEM] * len(inputs),
        out_specs=VMEM,
    )(*inputs)


# ------------------------------ fused heads kernel ----------------------------
def _heads_kernel(q_ref, bqc_ref, mem_ref, norm_g_ref, norm_b_ref,
                  heads_w_ref, heads_b_ref,
                  pos_w1_ref, pos_b1_ref, pos_w2_ref, pos_b2_ref,
                  pos_w3_ref, pos_b3_ref,
                  logits_ref, delta_ref, std_ref, seg_ref,
                  *, batch_size, hw):
    qn = _layernorm(q_ref[...], norm_g_ref[...], norm_b_ref[...])

    # Single MXU pass for [seg_proj | class | std] (lane-dense weight concat).
    hcat = _mm(qn, heads_w_ref[...]) + heads_b_ref[...]        # [N, D + 1 + 2]
    seg_q = hcat[:, :D_MODEL]
    logits_ref[...] = hcat[:, D_MODEL:D_MODEL + 1]
    std_raw = hcat[:, D_MODEL + 1:D_MODEL + 3]
    # softplus (StdDevHead), numerically stable
    std_ref[...] = jnp.maximum(std_raw, 0.0) + jnp.log1p(jnp.exp(-jnp.abs(std_raw)))

    # Position-offset head: Linear -> ReLU -> Linear -> ReLU -> Linear(->2)
    # TODO(synk): torch runs this head in float64; float32/bf16-MXU here.
    h = jnp.maximum(_mm(qn, pos_w1_ref[...]) + pos_b1_ref[...], 0.0)
    h = jnp.maximum(_mm(h, pos_w2_ref[...]) + pos_b2_ref[...], 0.0)
    delta_ref[...] = _mm(h, pos_w3_ref[...]) + pos_b3_ref[...]

    # PatchedSegmentationMapPredictor (simplified): dot-product of projected
    # queries with the flattened feature map of the query's own batch.
    # TODO(synk): original operates on sparse patched feature maps.
    mem = mem_ref[...]
    bq = bqc_ref[...]                                          # [N, 1]
    seg = jnp.zeros((qn.shape[0], hw), jnp.float32)
    for b in range(batch_size):
        seg_b = _mm_nt(seg_q, mem[b * hw:(b + 1) * hw, :])     # [N, HW]
        seg = jnp.where(bq == float(b), seg_b, seg)
    seg_ref[...] = seg


def pallas_heads(params, queries, bq_col, memory, *, batch_size, hw):
    n = queries.shape[0]
    inputs = (queries, bq_col, memory,
              params["norm_g"], params["norm_b"],
              params["heads_w"], params["heads_b"],
              params["pos_w1"], params["pos_b1"], params["pos_w2"], params["pos_b2"],
              params["pos_w3"], params["pos_b3"])
    out_shape = (jax.ShapeDtypeStruct((n, 1), jnp.float32),
                 jax.ShapeDtypeStruct((n, 2), jnp.float32),
                 jax.ShapeDtypeStruct((n, 2), jnp.float32),
                 jax.ShapeDtypeStruct((n, hw), jnp.float32))
    return pl.pallas_call(
        functools.partial(_heads_kernel, batch_size=batch_size, hw=hw),
        out_shape=out_shape,
        in_specs=[VMEM] * len(inputs),
        out_specs=(VMEM,) * 4,
    )(*inputs)


# ------------------------------ host-side glue --------------------------------
def fourier_encoding(pos, w):
    # FourierEncoding(2, d_model): sinusoidal projection of 2-D reference points.
    # TODO(synk): original runs in float64 (torch.double); float32 on TPU.
    proj = 2.0 * jnp.pi * (pos @ w)                            # [N, D/2]
    return jnp.concatenate([jnp.sin(proj), jnp.cos(proj)], axis=-1)


def inverse_sigmoid(x, eps=1e-5):
    x = jnp.clip(x, 0.0, 1.0)
    return jnp.log(jnp.clip(x, eps, None) / jnp.clip(1.0 - x, eps, None))


def decoder_forward(params, queries, query_reference_points, query_batch_offsets,
                    stacked_feature_maps, spatial_shapes, attn_mask=None):
    del spatial_shapes  # single dense level in this synthetic setup
    B, Hf, Wf, D = stacked_feature_maps.shape
    HW = Hf * Wf
    memory = stacked_feature_maps.reshape(B * HW, D)
    N = queries.shape[0]

    # Per-query / per-token batch indices; masks are built inside the kernels.
    batch_idx = jnp.searchsorted(query_batch_offsets, jnp.arange(N), side="right") - 1
    bq_col = batch_idx.astype(jnp.float32).reshape(N, 1)
    bq_row = bq_col.reshape(1, N)
    bm_row = jnp.repeat(jnp.arange(B), HW).astype(jnp.float32).reshape(1, B * HW)
    amask = (jnp.where(attn_mask, -1e9, 0.0).astype(jnp.float32)
             if attn_mask is not None else jnp.zeros((1, 1), jnp.float32))

    out_logits, out_positions, out_queries, out_std, out_seg = [], [], [], [], []

    for i in range(NUM_LAYERS):
        pos_enc = fourier_encoding(query_reference_points, params["fourier_w"])
        queries = pallas_decoder_layer(params["layers"][i], queries, pos_enc,
                                       bq_col, bq_row, bm_row, memory, amask)

        logits, delta, std, seg = pallas_heads(params, queries, bq_col, memory,
                                               batch_size=B, hw=HW)

        new_reference_points = jax.nn.sigmoid(
            delta + inverse_sigmoid(query_reference_points))

        out_logits.append(logits)
        out_std.append(std)
        out_positions.append(new_reference_points)   # look_forward_twice=True
        out_queries.append(queries)
        out_seg.append(seg)

        # detach_updated_positions=True
        query_reference_points = lax.stop_gradient(new_reference_points)

    return {
        "logits": jnp.stack(out_logits),          # [L, N, 1]
        "positions": jnp.stack(out_positions),    # [L, N, 2]
        "queries": jnp.stack(out_queries),        # [L, N, D]
        "std": jnp.stack(out_std),                # [L, N, 2]
        "segmentation_logits": out_seg,           # list of [N, Hf*Wf]
    }


# --------------------------- parameter initialization ------------------------
def _init_linear(key, din, dout):
    kw, kb = jax.random.split(key)
    lim = 1.0 / float(din) ** 0.5
    w = jax.random.uniform(kw, (din, dout), jnp.float32, -lim, lim)
    b = jax.random.uniform(kb, (1, dout), jnp.float32, -lim, lim)
    return w, b


def _init_attn_fused(key, mode):
    kq, kk, kv, ko = jax.random.split(key, 4)
    wq, bq = _init_linear(kq, D_MODEL, D_MODEL)
    wk, bk = _init_linear(kk, D_MODEL, D_MODEL)
    wv, bv = _init_linear(kv, D_MODEL, D_MODEL)
    wo, bo = _init_linear(ko, D_MODEL, D_MODEL)
    if mode == "self":
        # self-attn: q,k from (queries+pos) -> fuse wq|wk; v from queries.
        return {"sa_wqk": jnp.concatenate([wq, wk], axis=1),
                "sa_bqk": jnp.concatenate([bq, bk], axis=1),
                "sa_wv": wv, "sa_bv": bv, "sa_wo": wo, "sa_bo": bo}
    # cross-attn: q from queries+pos; k,v from memory -> fuse wk|wv.
    return {"ca_wq": wq, "ca_bq": bq,
            "ca_wkv": jnp.concatenate([wk, wv], axis=1),
            "ca_bkv": jnp.concatenate([bk, bv], axis=1),
            "ca_wo": wo, "ca_bo": bo}


def init_params(key):
    keys = jax.random.split(key, 16)
    params = {}

    ones = jnp.ones((1, D_MODEL), jnp.float32)
    zeros = jnp.zeros((1, D_MODEL), jnp.float32)

    layers = []
    layer_keys = jax.random.split(keys[0], NUM_LAYERS)
    for lk in layer_keys:
        k_sa, k_ca, k_f1, k_f2 = jax.random.split(lk, 4)
        layer = {}
        layer.update(_init_attn_fused(k_sa, "self"))
        layer.update(_init_attn_fused(k_ca, "cross"))
        w1, b1 = _init_linear(k_f1, D_MODEL, D_FF)
        w2, b2 = _init_linear(k_f2, D_FF, D_MODEL)
        layer.update({"ffn_w1": w1, "ffn_b1": b1, "ffn_w2": w2, "ffn_b2": b2,
                      "ln1_g": ones, "ln1_b": zeros,
                      "ln2_g": ones, "ln2_b": zeros,
                      "ln3_g": ones, "ln3_b": zeros})
        layers.append(layer)
    params["layers"] = layers

    # FourierEncoding projection weight: [2, D/2]
    params["fourier_w"] = jax.random.normal(keys[1], (2, D_MODEL // 2), jnp.float32)

    # shared heads (layers_share_heads=True): fuse [seg | class | std] into one matmul.
    class_w, class_b = _init_linear(keys[2], D_MODEL, 1)
    std_w, std_b = _init_linear(keys[6], D_MODEL, 2)
    seg_w, seg_b = _init_linear(keys[7], D_MODEL, D_MODEL)
    params["heads_w"] = jnp.concatenate([seg_w, class_w, std_w], axis=1)   # [D, D+3]
    params["heads_b"] = jnp.concatenate([seg_b, class_b, std_b], axis=1)   # [1, D+3]

    params["pos_w1"], params["pos_b1"] = _init_linear(keys[3], D_MODEL, D_MODEL)
    params["pos_w2"], params["pos_b2"] = _init_linear(keys[4], D_MODEL, D_MODEL)
    params["pos_w3"], params["pos_b3"] = _init_linear(keys[5], D_MODEL, 2)

    # final per-layer LayerNorm (self.norm)
    params["norm_g"] = ones
    params["norm_b"] = zeros
    return params


# ----------------------------------- main ------------------------------------
if __name__ == "__main__":
    key = jax.random.PRNGKey(0)
    k_p, k_q, k_r, k_f = jax.random.split(key, 4)

    params = init_params(k_p)

    B = 2
    queries_per_batch = 8
    N = B * queries_per_batch
    Hf = Wf = 8

    queries = jax.random.normal(k_q, (N, D_MODEL), jnp.float32)
    query_reference_points = jax.random.uniform(k_r, (N, 2), jnp.float32, 0.1, 0.9)
    query_batch_offsets = jnp.array([0, queries_per_batch], jnp.int32)
    stacked_feature_maps = jax.random.normal(k_f, (B, Hf, Wf, D_MODEL), jnp.float32)
    spatial_shapes = jnp.array([[Hf, Wf]], jnp.int32)

    fwd = jax.jit(functools.partial(decoder_forward, params))
    out = fwd(queries, query_reference_points, query_batch_offsets,
              stacked_feature_maps, spatial_shapes)

    jax.block_until_ready(out)

    assert out["logits"].shape == (NUM_LAYERS, N, 1)
    assert out["positions"].shape == (NUM_LAYERS, N, 2)
    assert out["queries"].shape == (NUM_LAYERS, N, D_MODEL)
    assert out["std"].shape == (NUM_LAYERS, N, 2)
    assert len(out["segmentation_logits"]) == NUM_LAYERS
    assert out["segmentation_logits"][0].shape == (N, Hf * Wf)

    print("KERNEL_OK")
</pallas_src>

<mosaic_0001>
module attributes {stable_mosaic.version = 11 : i64} {
  func.func @_heads_kernel(%arg0: memref<16x32xf32, #tpu.memory_space<vmem>>, %arg1: memref<16x1xf32, #tpu.memory_space<vmem>>, %arg2: memref<128x32xf32, #tpu.memory_space<vmem>>, %arg3: memref<1x32xf32, #tpu.memory_space<vmem>>, %arg4: memref<1x32xf32, #tpu.memory_space<vmem>>, %arg5: memref<32x35xf32, #tpu.memory_space<vmem>>, %arg6: memref<1x35xf32, #tpu.memory_space<vmem>>, %arg7: memref<32x32xf32, #tpu.memory_space<vmem>>, %arg8: memref<1x32xf32, #tpu.memory_space<vmem>>, %arg9: memref<32x32xf32, #tpu.memory_space<vmem>>, %arg10: memref<1x32xf32, #tpu.memory_space<vmem>>, %arg11: memref<32x2xf32, #tpu.memory_space<vmem>>, %arg12: memref<1x2xf32, #tpu.memory_space<vmem>>, %arg13: memref<16x1xf32, #tpu.memory_space<vmem>>, %arg14: memref<16x2xf32, #tpu.memory_space<vmem>>, %arg15: memref<16x2xf32, #tpu.memory_space<vmem>>, %arg16: memref<16x64xf32, #tpu.memory_space<vmem>>) attributes {dimension_semantics = [], scalar_prefetch = 0 : i64, scratch_operands = 0 : i64, tpu.core_type = #tpu.core_type<tc>} {
    %c0 = arith.constant 0 : index
    %c0_0 = arith.constant 0 : index
    %0 = vector.load %arg0[%c0, %c0_0] : memref<16x32xf32, #tpu.memory_space<vmem>>, vector<16x32xf32>
    %c0_1 = arith.constant 0 : index
    %c0_2 = arith.constant 0 : index
    %1 = vector.load %arg3[%c0_1, %c0_2] : memref<1x32xf32, #tpu.memory_space<vmem>>, vector<1x32xf32>
    %c0_3 = arith.constant 0 : index
    %c0_4 = arith.constant 0 : index
    %2 = vector.load %arg4[%c0_3, %c0_4] : memref<1x32xf32, #tpu.memory_space<vmem>>, vector<1x32xf32>
    %cst = arith.constant dense<0.000000e+00> : vector<16xf32>
    %3 = vector.multi_reduction <add>, %0, %cst [1] : vector<16x32xf32> to vector<16xf32>
    %4 = vector.shape_cast %3 : vector<16xf32> to vector<16x1xf32>
    %cst_5 = arith.constant 3.200000e+01 : f32
    %5 = vector.broadcast %cst_5 : f32 to vector<16x1xf32>
    %6 = arith.divf %4, %5 : vector<16x1xf32>
    %7 = vector.broadcast %6 : vector<16x1xf32> to vector<16x32xf32>
    %8 = arith.subf %0, %7 : vector<16x32xf32>
    %9 = arith.mulf %8, %8 : vector<16x32xf32>
    %cst_6 = arith.constant dense<0.000000e+00> : vector<16xf32>
    %10 = vector.multi_reduction <add>, %9, %cst_6 [1] : vector<16x32xf32> to vector<16xf32>
    %11 = vector.shape_cast %10 : vector<16xf32> to vector<16x1xf32>
    %cst_7 = arith.constant 3.200000e+01 : f32
    %12 = vector.broadcast %cst_7 : f32 to vector<16x1xf32>
    %13 = arith.divf %11, %12 : vector<16x1xf32>
    %cst_8 = arith.constant 9.99999974E-6 : f32
    %14 = vector.broadcast %cst_8 : f32 to vector<16x1xf32>
    %15 = arith.addf %13, %14 : vector<16x1xf32>
    %16 = math.rsqrt %15 : vector<16x1xf32>
    %17 = vector.broadcast %16 : vector<16x1xf32> to vector<16x32xf32>
    %18 = arith.mulf %8, %17 : vector<16x32xf32>
    %19 = vector.broadcast %1 : vector<1x32xf32> to vector<16x32xf32>
    %20 = arith.mulf %18, %19 : vector<16x32xf32>
    %21 = vector.broadcast %2 : vector<1x32xf32> to vector<16x32xf32>
    %22 = arith.addf %20, %21 : vector<16x32xf32>
    %c0_9 = arith.constant 0 : index
    %c0_10 = arith.constant 0 : index
    %23 = vector.load %arg5[%c0_9, %c0_10] : memref<32x35xf32, #tpu.memory_space<vmem>>, vector<32x35xf32>
    %24 = arith.truncf %22 : vector<16x32xf32> to vector<16x32xbf16>
    %25 = arith.truncf %23 : vector<32x35xf32> to vector<32x35xbf16>
    %cst_11 = arith.constant dense<0.000000e+00> : vector<16x35xf32>
    %26 = tpu.matmul %24, %25, %cst_11 {dimension_numbers = #tpu.dot_dimension_numbers<[1], [0], [0], [1], [0, 0, 1, 1], [], []>} : vector<16x32xbf16>, vector<32x35xbf16>, vector<16x35xf32> -> vector<16x35xf32>
    %c0_12 = arith.constant 0 : index
    %c0_13 = arith.constant 0 : index
    %27 = vector.load %arg6[%c0_12, %c0_13] : memref<1x35xf32, #tpu.memory_space<vmem>>, vector<1x35xf32>
    %28 = vector.broadcast %27 : vector<1x35xf32> to vector<16x35xf32>
    %29 = arith.addf %26, %28 : vector<16x35xf32>
    %30 = vector.extract_strided_slice %29 {offsets = [0, 0], sizes = [16, 32], strides = [1, 1]} : vector<16x35xf32> to vector<16x32xf32>
    %31 = vector.extract_strided_slice %29 {offsets = [0, 32], sizes = [16, 1], strides = [1, 1]} : vector<16x35xf32> to vector<16x1xf32>
    %c0_14 = arith.constant 0 : index
    %c0_15 = arith.constant 0 : index
    %32 = vector.load %arg13[%c0_14, %c0_15] : memref<16x1xf32, #tpu.memory_space<vmem>>, vector<16x1xf32>
    tpu.vector_store %arg13[%c0_14, %c0_15], %31 {strides = array<i32>} : memref<16x1xf32, #tpu.memory_space<vmem>>, vector<16x1xf32>,
    %33 = vector.extract_strided_slice %29 {offsets = [0, 33], sizes = [16, 2], strides = [1, 1]} : vector<16x35xf32> to vector<16x2xf32>
    %cst_16 = arith.constant 0.000000e+00 : f32
    %34 = vector.broadcast %cst_16 : f32 to vector<16x2xf32>
    %35 = arith.maximumf %33, %34 : vector<16x2xf32>
    %36 = math.absf %33 : vector<16x2xf32>
    %cst_17 = arith.constant 0.000000e+00 : f32
    %37 = vector.broadcast %cst_17 : f32 to vector<16x2xf32>
    %38 = arith.subf %37, %36 : vector<16x2xf32>
    %39 = math.exp %38 : vector<16x2xf32>
    %40 = math.log1p %39 : vector<16x2xf32>
    %41 = arith.addf %35, %40 : vector<16x2xf32>
    %c0_18 = arith.constant 0 : index
    %c0_19 = arith.constant 0 : index
    %42 = vector.load %arg15[%c0_18, %c0_19] : memref<16x2xf32, #tpu.memory_space<vmem>>, vector<16x2xf32>
    tpu.vector_store %arg15[%c0_18, %c0_19], %41 {strides = array<i32>} : memref<16x2xf32, #tpu.memory_space<vmem>>, vector<16x2xf32>,
    %c0_20 = arith.constant 0 : index
    %c0_21 = arith.constant 0 : index
    %43 = vector.load %arg7[%c0_20, %c0_21] : memref<32x32xf32, #tpu.memory_space<vmem>>, vector<32x32xf32>
    %44 = arith.truncf %22 : vector<16x32xf32> to vector<16x32xbf16>
    %45 = arith.truncf %43 : vector<32x32xf32> to vector<32x32xbf16>
    %cst_22 = arith.constant dense<0.000000e+00> : vector<16x32xf32>
    %46 = tpu.matmul %44, %45, %cst_22 {dimension_numbers = #tpu.dot_dimension_numbers<[1], [0], [0], [1], [0, 0, 1, 1], [], []>} : vector<16x32xbf16>, vector<32x32xbf16>, vector<16x32xf32> -> vector<16x32xf32>
    %c0_23 = arith.constant 0 : index
    %c0_24 = arith.constant 0 : index
    %47 = vector.load %arg8[%c0_23, %c0_24] : memref<1x32xf32, #tpu.memory_space<vmem>>, vector<1x32xf32>
    %48 = vector.broadcast %47 : vector<1x32xf32> to vector<16x32xf32>
    %49 = arith.addf %46, %48 : vector<16x32xf32>
    %cst_25 = arith.constant 0.000000e+00 : f32
    %50 = vector.broadcast %cst_25 : f32 to vector<16x32xf32>
    %51 = arith.maximumf %49, %50 : vector<16x32xf32>
    %c0_26 = arith.constant 0 : index
    %c0_27 = arith.constant 0 : index
    %52 = vector.load %arg9[%c0_26, %c0_27] : memref<32x32xf32, #tpu.memory_space<vmem>>, vector<32x32xf32>
    %53 = arith.truncf %51 : vector<16x32xf32> to vector<16x32xbf16>
    %54 = arith.truncf %52 : vector<32x32xf32> to vector<32x32xbf16>
    %cst_28 = arith.constant dense<0.000000e+00> : vector<16x32xf32>
    %55 = tpu.matmul %53, %54, %cst_28 {dimension_numbers = #tpu.dot_dimension_numbers<[1], [0], [0], [1], [0, 0, 1, 1], [], []>} : vector<16x32xbf16>, vector<32x32xbf16>, vector<16x32xf32> -> vector<16x32xf32>
    %c0_29 = arith.constant 0 : index
    %c0_30 = arith.constant 0 : index
    %56 = vector.load %arg10[%c0_29, %c0_30] : memref<1x32xf32, #tpu.memory_space<vmem>>, vector<1x32xf32>
    %57 = vector.broadcast %56 : vector<1x32xf32> to vector<16x32xf32>
    %58 = arith.addf %55, %57 : vector<16x32xf32>
    %cst_31 = arith.constant 0.000000e+00 : f32
    %59 = vector.broadcast %cst_31 : f32 to vector<16x32xf32>
    %60 = arith.maximumf %58, %59 : vector<16x32xf32>
    %c0_32 = arith.constant 0 : index
    %c0_33 = arith.constant 0 : index
    %61 = vector.load %arg11[%c0_32, %c0_33] : memref<32x2xf32, #tpu.memory_space<vmem>>, vector<32x2xf32>
    %62 = arith.truncf %60 : vector<16x32xf32> to vector<16x32xbf16>
    %63 = arith.truncf %61 : vector<32x2xf32> to vector<32x2xbf16>
    %cst_34 = arith.constant dense<0.000000e+00> : vector<16x2xf32>
    %64 = tpu.matmul %62, %63, %cst_34 {dimension_numbers = #tpu.dot_dimension_numbers<[1], [0], [0], [1], [0, 0, 1, 1], [], []>} : vector<16x32xbf16>, vector<32x2xbf16>, vector<16x2xf32> -> vector<16x2xf32>
    %c0_35 = arith.constant 0 : index
    %c0_36 = arith.constant 0 : index
    %65 = vector.load %arg12[%c0_35, %c0_36] : memref<1x2xf32, #tpu.memory_space<vmem>>, vector<1x2xf32>
    %66 = vector.broadcast %65 : vector<1x2xf32> to vector<16x2xf32>
    %67 = arith.addf %64, %66 : vector<16x2xf32>
    %c0_37 = arith.constant 0 : index
    %c0_38 = arith.constant 0 : index
    %68 = vector.load %arg14[%c0_37, %c0_38] : memref<16x2xf32, #tpu.memory_space<vmem>>, vector<16x2xf32>
    tpu.vector_store %arg14[%c0_37, %c0_38], %67 {strides = array<i32>} : memref<16x2xf32, #tpu.memory_space<vmem>>, vector<16x2xf32>,
    %c0_39 = arith.constant 0 : index
    %c0_40 = arith.constant 0 : index
    %69 = vector.load %arg2[%c0_39, %c0_40] : memref<128x32xf32, #tpu.memory_space<vmem>>, vector<128x32xf32>
    %c0_41 = arith.constant 0 : index
    %c0_42 = arith.constant 0 : index
    %70 = vector.load %arg1[%c0_41, %c0_42] : memref<16x1xf32, #tpu.memory_space<vmem>>, vector<16x1xf32>
    %cst_43 = arith.constant 0.000000e+00 : f32
    %71 = vector.broadcast %cst_43 : f32 to vector<16x64xf32>
    %72 = vector.extract_strided_slice %69 {offsets = [0, 0], sizes = [64, 32], strides = [1, 1]} : vector<128x32xf32> to vector<64x32xf32>
    %73 = arith.truncf %30 : vector<16x32xf32> to vector<16x32xbf16>
    %74 = arith.truncf %72 : vector<64x32xf32> to vector<64x32xbf16>
    %cst_44 = arith.constant dense<0.000000e+00> : vector<16x64xf32>
    %75 = tpu.matmul %73, %74, %cst_44 {dimension_numbers = #tpu.dot_dimension_numbers<[1], [1], [0], [0], [0, 0, 1, 0], [], []>} : vector<16x32xbf16>, vector<64x32xbf16>, vector<16x64xf32> -> vector<16x64xf32>
    %cst_45 = arith.constant 0.000000e+00 : f32
    %76 = vector.broadcast %cst_45 : f32 to vector<16x1xf32>
    %77 = arith.cmpf oeq, %70, %76 : vector<16x1xf32>
    %78 = vector.shape_cast %77 : vector<16x1xi1> to vector<16x1xi1>
    %79 = vector.broadcast %78 : vector<16x1xi1> to vector<16x64xi1>
    %80 = arith.select %79, %75, %71 : vector<16x64xi1>, vector<16x64xf32>
    %81 = vector.extract_strided_slice %69 {offsets = [64, 0], sizes = [64, 32], strides = [1, 1]} : vector<128x32xf32> to vector<64x32xf32>
    %82 = arith.truncf %30 : vector<16x32xf32> to vector<16x32xbf16>
    %83 = arith.truncf %81 : vector<64x32xf32> to vector<64x32xbf16>
    %cst_46 = arith.constant dense<0.000000e+00> : vector<16x64xf32>
    %84 = tpu.matmul %82, %83, %cst_46 {dimension_numbers = #tpu.dot_dimension_numbers<[1], [1], [0], [0], [0, 0, 1, 0], [], []>} : vector<16x32xbf16>, vector<64x32xbf16>, vector<16x64xf32> -> vector<16x64xf32>
    %cst_47 = arith.constant 1.000000e+00 : f32
    %85 = vector.broadcast %cst_47 : f32 to vector<16x1xf32>
    %86 = arith.cmpf oeq, %70, %85 : vector<16x1xf32>
    %87 = vector.shape_cast %86 : vector<16x1xi1> to vector<16x1xi1>
    %88 = vector.broadcast %87 : vector<16x1xi1> to vector<16x64xi1>
    %89 = arith.select %88, %84, %80 : vector<16x64xi1>, vector<16x64xf32>
    %c0_48 = arith.constant 0 : index
    %c0_49 = arith.constant 0 : index
    %90 = vector.load %arg16[%c0_48, %c0_49] : memref<16x64xf32, #tpu.memory_space<vmem>>, vector<16x64xf32>
    tpu.vector_store %arg16[%c0_48, %c0_49], %89 {strides = array<i32>} : memref<16x64xf32, #tpu.memory_space<vmem>>, vector<16x64xf32>,
    return
  }
}

module attributes {stable_mosaic.version = 11 : i64} {
  func.func @_decoder_layer_kernel(%arg0: memref<16x32xf32, #tpu.memory_space<vmem>>, %arg1: memref<16x32xf32, #tpu.memory_space<vmem>>, %arg2: memref<16x1xf32, #tpu.memory_space<vmem>>, %arg3: memref<1x16xf32, #tpu.memory_space<vmem>>, %arg4: memref<1x128xf32, #tpu.memory_space<vmem>>, %arg5: memref<128x32xf32, #tpu.memory_space<vmem>>, %arg6: memref<1x1xf32, #tpu.memory_space<vmem>>, %arg7: memref<32x64xf32, #tpu.memory_space<vmem>>, %arg8: memref<1x64xf32, #tpu.memory_space<vmem>>, %arg9: memref<32x32xf32, #tpu.memory_space<vmem>>, %arg10: memref<1x32xf32, #tpu.memory_space<vmem>>, %arg11: memref<32x32xf32, #tpu.memory_space<vmem>>, %arg12: memref<1x32xf32, #tpu.memory_space<vmem>>, %arg13: memref<32x32xf32, #tpu.memory_space<vmem>>, %arg14: memref<1x32xf32, #tpu.memory_space<vmem>>, %arg15: memref<32x64xf32, #tpu.memory_space<vmem>>, %arg16: memref<1x64xf32, #tpu.memory_space<vmem>>, %arg17: memref<32x32xf32, #tpu.memory_space<vmem>>, %arg18: memref<1x32xf32, #tpu.memory_space<vmem>>, %arg19: memref<32x64xf32, #tpu.memory_space<vmem>>, %arg20: memref<1x64xf32, #tpu.memory_space<vmem>>, %arg21: memref<64x32xf32, #tpu.memory_space<vmem>>, %arg22: memref<1x32xf32, #tpu.memory_space<vmem>>, %arg23: memref<1x32xf32, #tpu.memory_space<vmem>>, %arg24: memref<1x32xf32, #tpu.memory_space<vmem>>, %arg25: memref<1x32xf32, #tpu.memory_space<vmem>>, %arg26: memref<1x32xf32, #tpu.memory_space<vmem>>, %arg27: memref<1x32xf32, #tpu.memory_space<vmem>>, %arg28: memref<1x32xf32, #tpu.memory_space<vmem>>, %arg29: memref<16x32xf32, #tpu.memory_space<vmem>>) attributes {dimension_semantics = [], scalar_prefetch = 0 : i64, scratch_operands = 0 : i64, tpu.core_type = #tpu.core_type<tc>} {
    %c0 = arith.constant 0 : index
    %c0_0 = arith.constant 0 : index
    %0 = vector.load %arg0[%c0, %c0_0] : memref<16x32xf32, #tpu.memory_space<vmem>>, vector<16x32xf32>
    %c0_1 = arith.constant 0 : index
    %c0_2 = arith.constant 0 : index
    %1 = vector.load %arg1[%c0_1, %c0_2] : memref<16x32xf32, #tpu.memory_space<vmem>>, vector<16x32xf32>
    %c0_3 = arith.constant 0 : index
    %c0_4 = arith.constant 0 : index
    %2 = vector.load %arg5[%c0_3, %c0_4] : memref<128x32xf32, #tpu.memory_space<vmem>>, vector<128x32xf32>
    %c0_5 = arith.constant 0 : index
    %c0_6 = arith.constant 0 : index
    %3 = vector.load %arg2[%c0_5, %c0_6] : memref<16x1xf32, #tpu.memory_space<vmem>>, vector<16x1xf32>
    %c0_7 = arith.constant 0 : index
    %c0_8 = arith.constant 0 : index
    %4 = vector.load %arg3[%c0_7, %c0_8] : memref<1x16xf32, #tpu.memory_space<vmem>>, vector<1x16xf32>
    %5 = vector.broadcast %3 : vector<16x1xf32> to vector<16x16xf32>
    %6 = vector.broadcast %4 : vector<1x16xf32> to vector<16x16xf32>
    %7 = arith.cmpf oeq, %5, %6 : vector<16x16xf32>
    %cst = arith.constant 0.000000e+00 : f32
    %cst_9 = arith.constant -1.000000e+09 : f32
    %8 = vector.broadcast %cst : f32 to vector<16x16xf32>
    %9 = vector.broadcast %cst_9 : f32 to vector<16x16xf32>
    %10 = arith.select %7, %8, %9 : vector<16x16xi1>, vector<16x16xf32>
    %c0_10 = arith.constant 0 : index
    %c0_11 = arith.constant 0 : index
    %11 = vector.load %arg6[%c0_10, %c0_11] : memref<1x1xf32, #tpu.memory_space<vmem>>, vector<1x1xf32>
    %12 = vector.broadcast %11 : vector<1x1xf32> to vector<16x16xf32>
    %13 = arith.addf %10, %12 : vector<16x16xf32>
    %c0_12 = arith.constant 0 : index
    %c0_13 = arith.constant 0 : index
    %14 = vector.load %arg2[%c0_12, %c0_13] : memref<16x1xf32, #tpu.memory_space<vmem>>, vector<16x1xf32>
    %c0_14 = arith.constant 0 : index
    %c0_15 = arith.constant 0 : index
    %15 = vector.load %arg4[%c0_14, %c0_15] : memref<1x128xf32, #tpu.memory_space<vmem>>, vector<1x128xf32>
    %16 = vector.broadcast %14 : vector<16x1xf32> to vector<16x128xf32>
    %17 = vector.broadcast %15 : vector<1x128xf32> to vector<16x128xf32>
    %18 = arith.cmpf oeq, %16, %17 : vector<16x128xf32>
    %cst_16 = arith.constant 0.000000e+00 : f32
    %cst_17 = arith.constant -1.000000e+09 : f32
    %19 = vector.broadcast %cst_16 : f32 to vector<16x128xf32>
    %20 = vector.broadcast %cst_17 : f32 to vector<16x128xf32>
    %21 = arith.select %18, %19, %20 : vector<16x128xi1>, vector<16x128xf32>
    %22 = arith.addf %0, %1 : vector<16x32xf32>
    %c0_18 = arith.constant 0 : index
    %c0_19 = arith.constant 0 : index
    %23 = vector.load %arg7[%c0_18, %c0_19] : memref<32x64xf32, #tpu.memory_space<vmem>>, vector<32x64xf32>
    %24 = arith.truncf %22 : vector<16x32xf32> to vector<16x32xbf16>
    %25 = arith.truncf %23 : vector<32x64xf32> to vector<32x64xbf16>
    %cst_20 = arith.constant dense<0.000000e+00> : vector<16x64xf32>
    %26 = tpu.matmul %24, %25, %cst_20 {dimension_numbers = #tpu.dot_dimension_numbers<[1], [0], [0], [1], [0, 0, 1, 1], [], []>} : vector<16x32xbf16>, vector<32x64xbf16>, vector<16x64xf32> -> vector<16x64xf32>
    %c0_21 = arith.constant 0 : index
    %c0_22 = arith.constant 0 : index
    %27 = vector.load %arg8[%c0_21, %c0_22] : memref<1x64xf32, #tpu.memory_space<vmem>>, vector<1x64xf32>
    %28 = vector.broadcast %27 : vector<1x64xf32> to vector<16x64xf32>
    %29 = arith.addf %26, %28 : vector<16x64xf32>
    %c0_23 = arith.constant 0 : index
    %c0_24 = arith.constant 0 : index
    %30 = vector.load %arg9[%c0_23, %c0_24] : memref<32x32xf32, #tpu.memory_space<vmem>>, vector<32x32xf32>
    %31 = arith.truncf %0 : vector<16x32xf32> to vector<16x32xbf16>
    %32 = arith.truncf %30 : vector<32x32xf32> to vector<32x32xbf16>
    %cst_25 = arith.constant dense<0.000000e+00> : vector<16x32xf32>
    %33 = tpu.matmul %31, %32, %cst_25 {dimension_numbers = #tpu.dot_dimension_numbers<[1], [0], [0], [1], [0, 0, 1, 1], [], []>} : vector<16x32xbf16>, vector<32x32xbf16>, vector<16x32xf32> -> vector<16x32xf32>
    %c0_26 = arith.constant 0 : index
    %c0_27 = arith.constant 0 : index
    %34 = vector.load %arg10[%c0_26, %c0_27] : memref<1x32xf32, #tpu.memory_space<vmem>>, vector<1x32xf32>
    %35 = vector.broadcast %34 : vector<1x32xf32> to vector<16x32xf32>
    %36 = arith.addf %33, %35 : vector<16x32xf32>
    %37 = vector.extract_strided_slice %29 {offsets = [0, 0], sizes = [16, 32], strides = [1, 1]} : vector<16x64xf32> to vector<16x32xf32>
    %38 = vector.extract_strided_slice %29 {offsets = [0, 32], sizes = [16, 32], strides = [1, 1]} : vector<16x64xf32> to vector<16x32xf32>
    %c0_28 = arith.constant 0 : index
    %c0_29 = arith.constant 0 : index
    %39 = vector.load %arg11[%c0_28, %c0_29] : memref<32x32xf32, #tpu.memory_space<vmem>>, vector<32x32xf32>
    %c0_30 = arith.constant 0 : index
    %c0_31 = arith.constant 0 : index
    %40 = vector.load %arg12[%c0_30, %c0_31] : memref<1x32xf32, #tpu.memory_space<vmem>>, vector<1x32xf32>
    %41 = vector.extract_strided_slice %37 {offsets = [0, 0], sizes = [16, 8], strides = [1, 1]} : vector<16x32xf32> to vector<16x8xf32>
    %42 = vector.extract_strided_slice %38 {offsets = [0, 0], sizes = [16, 8], strides = [1, 1]} : vector<16x32xf32> to vector<16x8xf32>
    %43 = arith.truncf %41 : vector<16x8xf32> to vector<16x8xbf16>
    %44 = arith.truncf %42 : vector<16x8xf32> to vector<16x8xbf16>
    %cst_32 = arith.constant dense<0.000000e+00> : vector<16x16xf32>
    %45 = tpu.matmul %43, %44, %cst_32 {dimension_numbers = #tpu.dot_dimension_numbers<[1], [1], [0], [0], [0, 0, 1, 0], [], []>} : vector<16x8xbf16>, vector<16x8xbf16>, vector<16x16xf32> -> vector<16x16xf32>
    %cst_33 = arith.constant 0.353553385 : f32
    %46 = vector.broadcast %cst_33 : f32 to vector<16x16xf32>
    %47 = arith.mulf %45, %46 : vector<16x16xf32>
    %48 = arith.addf %47, %13 : vector<16x16xf32>
    %cst_34 = arith.constant dense<0xFF800000> : vector<16xf32>
    %49 = vector.multi_reduction <maximumf>, %48, %cst_34 [1] : vector<16x16xf32> to vector<16xf32>
    %50 = vector.shape_cast %49 : vector<16xf32> to vector<16x1xf32>
    %51 = vector.broadcast %50 : vector<16x1xf32> to vector<16x16xf32>
    %52 = arith.subf %48, %51 : vector<16x16xf32>
    %53 = math.exp %52 : vector<16x16xf32>
    %cst_35 = arith.constant dense<0.000000e+00> : vector<16xf32>
    %54 = vector.multi_reduction <add>, %53, %cst_35 [1] : vector<16x16xf32> to vector<16xf32>
    %55 = vector.shape_cast %54 : vector<16xf32> to vector<16x1xf32>
    %56 = vector.extract_strided_slice %36 {offsets = [0, 0], sizes = [16, 8], strides = [1, 1]} : vector<16x32xf32> to vector<16x8xf32>
    %57 = arith.truncf %53 : vector<16x16xf32> to vector<16x16xbf16>
    %58 = arith.truncf %56 : vector<16x8xf32> to vector<16x8xbf16>
    %cst_36 = arith.constant dense<0.000000e+00> : vector<16x8xf32>
    %59 = tpu.matmul %57, %58, %cst_36 {dimension_numbers = #tpu.dot_dimension_numbers<[1], [0], [0], [1], [0, 0, 1, 1], [], []>} : vector<16x16xbf16>, vector<16x8xbf16>, vector<16x8xf32> -> vector<16x8xf32>
    %60 = tpu.reciprocal %55 {approx = true} : vector<16x1xf32> -> vector<16x1xf32>
    %61 = vector.broadcast %60 : vector<16x1xf32> to vector<16x8xf32>
    %62 = arith.mulf %59, %61 : vector<16x8xf32>
    %63 = vector.extract_strided_slice %39 {offsets = [0, 0], sizes = [8, 32], strides = [1, 1]} : vector<32x32xf32> to vector<8x32xf32>
    %64 = arith.truncf %62 : vector<16x8xf32> to vector<16x8xbf16>
    %65 = arith.truncf %63 : vector<8x32xf32> to vector<8x32xbf16>
    %cst_37 = arith.constant dense<0.000000e+00> : vector<16x32xf32>
    %66 = tpu.matmul %64, %65, %cst_37 {dimension_numbers = #tpu.dot_dimension_numbers<[1], [0], [0], [1], [0, 0, 1, 1], [], []>} : vector<16x8xbf16>, vector<8x32xbf16>, vector<16x32xf32> -> vector<16x32xf32>
    %67 = vector.extract_strided_slice %37 {offsets = [0, 8], sizes = [16, 8], strides = [1, 1]} : vector<16x32xf32> to vector<16x8xf32>
    %68 = vector.extract_strided_slice %38 {offsets = [0, 8], sizes = [16, 8], strides = [1, 1]} : vector<16x32xf32> to vector<16x8xf32>
    %69 = arith.truncf %67 : vector<16x8xf32> to vector<16x8xbf16>
    %70 = arith.truncf %68 : vector<16x8xf32> to vector<16x8xbf16>
    %cst_38 = arith.constant dense<0.000000e+00> : vector<16x16xf32>
    %71 = tpu.matmul %69, %70, %cst_38 {dimension_numbers = #tpu.dot_dimension_numbers<[1], [1], [0], [0], [0, 0, 1, 0], [], []>} : vector<16x8xbf16>, vector<16x8xbf16>, vector<16x16xf32> -> vector<16x16xf32>
    %cst_39 = arith.constant 0.353553385 : f32
    %72 = vector.broadcast %cst_39 : f32 to vector<16x16xf32>
    %73 = arith.mulf %71, %72 : vector<16x16xf32>
    %74 = arith.addf %73, %13 : vector<16x16xf32>
    %cst_40 = arith.constant dense<0xFF800000> : vector<16xf32>
    %75 = vector.multi_reduction <maximumf>, %74, %cst_40 [1] : vector<16x16xf32> to vector<16xf32>
    %76 = vector.shape_cast %75 : vector<16xf32> to vector<16x1xf32>
    %77 = vector.broadcast %76 : vector<16x1xf32> to vector<16x16xf32>
    %78 = arith.subf %74, %77 : vector<16x16xf32>
    %79 = math.exp %78 : vector<16x16xf32>
    %cst_41 = arith.constant dense<0.000000e+00> : vector<16xf32>
    %80 = vector.multi_reduction <add>, %79, %cst_41 [1] : vector<16x16xf32> to vector<16xf32>
    %81 = vector.shape_cast %80 : vector<16xf32> to vector<16x1xf32>
    %82 = vector.extract_strided_slice %36 {offsets = [0, 8], sizes = [16, 8], strides = [1, 1]} : vector<16x32xf32> to vector<16x8xf32>
    %83 = arith.truncf %79 : vector<16x16xf32> to vector<16x16xbf16>
    %84 = arith.truncf %82 : vector<16x8xf32> to vector<16x8xbf16>
    %cst_42 = arith.constant dense<0.000000e+00> : vector<16x8xf32>
    %85 = tpu.matmul %83, %84, %cst_42 {dimension_numbers = #tpu.dot_dimension_numbers<[1], [0], [0], [1], [0, 0, 1, 1], [], []>} : vector<16x16xbf16>, vector<16x8xbf16>, vector<16x8xf32> -> vector<16x8xf32>
    %86 = tpu.reciprocal %81 {approx = true} : vector<16x1xf32> -> vector<16x1xf32>
    %87 = vector.broadcast %86 : vector<16x1xf32> to vector<16x8xf32>
    %88 = arith.mulf %85, %87 : vector<16x8xf32>
    %89 = vector.extract_strided_slice %39 {offsets = [8, 0], sizes = [8, 32], strides = [1, 1]} : vector<32x32xf32> to vector<8x32xf32>
    %90 = arith.truncf %88 : vector<16x8xf32> to vector<16x8xbf16>
    %91 = arith.truncf %89 : vector<8x32xf32> to vector<8x32xbf16>
    %cst_43 = arith.constant dense<0.000000e+00> : vector<16x32xf32>
    %92 = tpu.matmul %90, %91, %cst_43 {dimension_numbers = #tpu.dot_dimension_numbers<[1], [0], [0], [1], [0, 0, 1, 1], [], []>} : vector<16x8xbf16>, vector<8x32xbf16>, vector<16x32xf32> -> vector<16x32xf32>
    %93 = arith.addf %66, %92 : vector<16x32xf32>
    %94 = vector.extract_strided_slice %37 {offsets = [0, 16], sizes = [16, 8], strides = [1, 1]} : vector<16x32xf32> to vector<16x8xf32>
    %95 = vector.extract_strided_slice %38 {offsets = [0, 16], sizes = [16, 8], strides = [1, 1]} : vector<16x32xf32> to vector<16x8xf32>
    %96 = arith.truncf %94 : vector<16x8xf32> to vector<16x8xbf16>
    %97 = arith.truncf %95 : vector<16x8xf32> to vector<16x8xbf16>
    %cst_44 = arith.constant dense<0.000000e+00> : vector<16x16xf32>
    %98 = tpu.matmul %96, %97, %cst_44 {dimension_numbers = #tpu.dot_dimension_numbers<[1], [1], [0], [0], [0, 0, 1, 0], [], []>} : vector<16x8xbf16>, vector<16x8xbf16>, vector<16x16xf32> -> vector<16x16xf32>
    %cst_45 = arith.constant 0.353553385 : f32
    %99 = vector.broadcast %cst_45 : f32 to vector<16x16xf32>
    %100 = arith.mulf %98, %99 : vector<16x16xf32>
    %101 = arith.addf %100, %13 : vector<16x16xf32>
    %cst_46 = arith.constant dense<0xFF800000> : vector<16xf32>
    %102 = vector.multi_reduction <maximumf>, %101, %cst_46 [1] : vector<16x16xf32> to vector<16xf32>
    %103 = vector.shape_cast %102 : vector<16xf32> to vector<16x1xf32>
    %104 = vector.broadcast %103 : vector<16x1xf32> to vector<16x16xf32>
    %105 = arith.subf %101, %104 : vector<16x16xf32>
    %106 = math.exp %105 : vector<16x16xf32>
    %cst_47 = arith.constant dense<0.000000e+00> : vector<16xf32>
    %107 = vector.multi_reduction <add>, %106, %cst_47 [1] : vector<16x16xf32> to vector<16xf32>
    %108 = vector.shape_cast %107 : vector<16xf32> to vector<16x1xf32>
    %109 = vector.extract_strided_slice %36 {offsets = [0, 16], sizes = [16, 8], strides = [1, 1]} : vector<16x32xf32> to vector<16x8xf32>
    %110 = arith.truncf %106 : vector<16x16xf32> to vector<16x16xbf16>
    %111 = arith.truncf %109 : vector<16x8xf32> to vector<16x8xbf16>
    %cst_48 = arith.constant dense<0.000000e+00> : vector<16x8xf32>
    %112 = tpu.matmul %110, %111, %cst_48 {dimension_numbers = #tpu.dot_dimension_numbers<[1], [0], [0], [1], [0, 0, 1, 1], [], []>} : vector<16x16xbf16>, vector<16x8xbf16>, vector<16x8xf32> -> vector<16x8xf32>
    %113 = tpu.reciprocal %108 {approx = true} : vector<16x1xf32> -> vector<16x1xf32>
    %114 = vector.broadcast %113 : vector<16x1xf32> to vector<16x8xf32>
    %115 = arith.mulf %112, %114 : vector<16x8xf32>
    %116 = vector.extract_strided_slice %39 {offsets = [16, 0], sizes = [8, 32], strides = [1, 1]} : vector<32x32xf32> to vector<8x32xf32>
    %117 = arith.truncf %115 : vector<16x8xf32> to vector<16x8xbf16>
    %118 = arith.truncf %116 : vector<8x32xf32> to vector<8x32xbf16>
    %cst_49 = arith.constant dense<0.000000e+00> : vector<16x32xf32>
    %119 = tpu.matmul %117, %118, %cst_49 {dimension_numbers = #tpu.dot_dimension_numbers<[1], [0], [0], [1], [0, 0, 1, 1], [], []>} : vector<16x8xbf16>, vector<8x32xbf16>, vector<16x32xf32> -> vector<16x32xf32>
    %120 = arith.addf %93, %119 : vector<16x32xf32>
    %121 = vector.extract_strided_slice %37 {offsets = [0, 24], sizes = [16, 8], strides = [1, 1]} : vector<16x32xf32> to vector<16x8xf32>
    %122 = vector.extract_strided_slice %38 {offsets = [0, 24], sizes = [16, 8], strides = [1, 1]} : vector<16x32xf32> to vector<16x8xf32>
    %123 = arith.truncf %121 : vector<16x8xf32> to vector<16x8xbf16>
    %124 = arith.truncf %122 : vector<16x8xf32> to vector<16x8xbf16>
    %cst_50 = arith.constant dense<0.000000e+00> : vector<16x16xf32>
    %125 = tpu.matmul %123, %124, %cst_50 {dimension_numbers = #tpu.dot_dimension_numbers<[1], [1], [0], [0], [0, 0, 1, 0], [], []>} : vector<16x8xbf16>, vector<16x8xbf16>, vector<16x16xf32> -> vector<16x16xf32>
    %cst_51 = arith.constant 0.353553385 : f32
    %126 = vector.broadcast %cst_51 : f32 to vector<16x16xf32>
    %127 = arith.mulf %125, %126 : vector<16x16xf32>
    %128 = arith.addf %127, %13 : vector<16x16xf32>
    %cst_52 = arith.constant dense<0xFF800000> : vector<16xf32>
    %129 = vector.multi_reduction <maximumf>, %128, %cst_52 [1] : vector<16x16xf32> to vector<16xf32>
    %130 = vector.shape_cast %129 : vector<16xf32> to vector<16x1xf32>
    %131 = vector.broadcast %130 : vector<16x1xf32> to vector<16x16xf32>
    %132 = arith.subf %128, %131 : vector<16x16xf32>
    %133 = math.exp %132 : vector<16x16xf32>
    %cst_53 = arith.constant dense<0.000000e+00> : vector<16xf32>
    %134 = vector.multi_reduction <add>, %133, %cst_53 [1] : vector<16x16xf32> to vector<16xf32>
    %135 = vector.shape_cast %134 : vector<16xf32> to vector<16x1xf32>
    %136 = vector.extract_strided_slice %36 {offsets = [0, 24], sizes = [16, 8], strides = [1, 1]} : vector<16x32xf32> to vector<16x8xf32>
    %137 = arith.truncf %133 : vector<16x16xf32> to vector<16x16xbf16>
    %138 = arith.truncf %136 : vector<16x8xf32> to vector<16x8xbf16>
    %cst_54 = arith.constant dense<0.000000e+00> : vector<16x8xf32>
    %139 = tpu.matmul %137, %138, %cst_54 {dimension_numbers = #tpu.dot_dimension_numbers<[1], [0], [0], [1], [0, 0, 1, 1], [], []>} : vector<16x16xbf16>, vector<16x8xbf16>, vector<16x8xf32> -> vector<16x8xf32>
    %140 = tpu.reciprocal %135 {approx = true} : vector<16x1xf32> -> vector<16x1xf32>
    %141 = vector.broadcast %140 : vector<16x1xf32> to vector<16x8xf32>
    %142 = arith.mulf %139, %141 : vector<16x8xf32>
    %143 = vector.extract_strided_slice %39 {offsets = [24, 0], sizes = [8, 32], strides = [1, 1]} : vector<32x32xf32> to vector<8x32xf32>
    %144 = arith.truncf %142 : vector<16x8xf32> to vector<16x8xbf16>
    %145 = arith.truncf %143 : vector<8x32xf32> to vector<8x32xbf16>
    %cst_55 = arith.constant dense<0.000000e+00> : vector<16x32xf32>
    %146 = tpu.matmul %144, %145, %cst_55 {dimension_numbers = #tpu.dot_dimension_numbers<[1], [0], [0], [1], [0, 0, 1, 1], [], []>} : vector<16x8xbf16>, vector<8x32xbf16>, vector<16x32xf32> -> vector<16x32xf32>
    %147 = arith.addf %120, %146 : vector<16x32xf32>
    %148 = vector.broadcast %40 : vector<1x32xf32> to vector<16x32xf32>
    %149 = arith.addf %147, %148 : vector<16x32xf32>
    %150 = arith.addf %0, %149 : vector<16x32xf32>
    %c0_56 = arith.constant 0 : index
    %c0_57 = arith.constant 0 : index
    %151 = vector.load %arg23[%c0_56, %c0_57] : memref<1x32xf32, #tpu.memory_space<vmem>>, vector<1x32xf32>
    %c0_58 = arith.constant 0 : index
    %c0_59 = arith.constant 0 : index
    %152 = vector.load %arg24[%c0_58, %c0_59] : memref<1x32xf32, #tpu.memory_space<vmem>>, vector<1x32xf32>
    %cst_60 = arith.constant dense<0.000000e+00> : vector<16xf32>
    %153 = vector.multi_reduction <add>, %150, %cst_60 [1] : vector<16x32xf32> to vector<16xf32>
    %154 = vector.shape_cast %153 : vector<16xf32> to vector<16x1xf32>
    %cst_61 = arith.constant 3.200000e+01 : f32
    %155 = vector.broadcast %cst_61 : f32 to vector<16x1xf32>
    %156 = arith.divf %154, %155 : vector<16x1xf32>
    %157 = vector.broadcast %156 : vector<16x1xf32> to vector<16x32xf32>
    %158 = arith.subf %150, %157 : vector<16x32xf32>
    %159 = arith.mulf %158, %158 : vector<16x32xf32>
    %cst_62 = arith.constant dense<0.000000e+00> : vector<16xf32>
    %160 = vector.multi_reduction <add>, %159, %cst_62 [1] : vector<16x32xf32> to vector<16xf32>
    %161 = vector.shape_cast %160 : vector<16xf32> to vector<16x1xf32>
    %cst_63 = arith.constant 3.200000e+01 : f32
    %162 = vector.broadcast %cst_63 : f32 to vector<16x1xf32>
    %163 = arith.divf %161, %162 : vector<16x1xf32>
    %cst_64 = arith.constant 9.99999974E-6 : f32
    %164 = vector.broadcast %cst_64 : f32 to vector<16x1xf32>
    %165 = arith.addf %163, %164 : vector<16x1xf32>
    %166 = math.rsqrt %165 : vector<16x1xf32>
    %167 = vector.broadcast %166 : vector<16x1xf32> to vector<16x32xf32>
    %168 = arith.mulf %158, %167 : vector<16x32xf32>
    %169 = vector.broadcast %151 : vector<1x32xf32> to vector<16x32xf32>
    %170 = arith.mulf %168, %169 : vector<16x32xf32>
    %171 = vector.broadcast %152 : vector<1x32xf32> to vector<16x32xf32>
    %172 = arith.addf %170, %171 : vector<16x32xf32>
    %173 = arith.addf %172, %1 : vector<16x32xf32>
    %c0_65 = arith.constant 0 : index
    %c0_66 = arith.constant 0 : index
    %174 = vector.load %arg13[%c0_65, %c0_66] : memref<32x32xf32, #tpu.memory_space<vmem>>, vector<32x32xf32>
    %175 = arith.truncf %173 : vector<16x32xf32> to vector<16x32xbf16>
    %176 = arith.truncf %174 : vector<32x32xf32> to vector<32x32xbf16>
    %cst_67 = arith.constant dense<0.000000e+00> : vector<16x32xf32>
    %177 = tpu.matmul %175, %176, %cst_67 {dimension_numbers = #tpu.dot_dimension_numbers<[1], [0], [0], [1], [0, 0, 1, 1], [], []>} : vector<16x32xbf16>, vector<32x32xbf16>, vector<16x32xf32> -> vector<16x32xf32>
    %c0_68 = arith.constant 0 : index
    %c0_69 = arith.constant 0 : index
    %178 = vector.load %arg14[%c0_68, %c0_69] : memref<1x32xf32, #tpu.memory_space<vmem>>, vector<1x32xf32>
    %179 = vector.broadcast %178 : vector<1x32xf32> to vector<16x32xf32>
    %180 = arith.addf %177, %179 : vector<16x32xf32>
    %c0_70 = arith.constant 0 : index
    %c0_71 = arith.constant 0 : index
    %181 = vector.load %arg15[%c0_70, %c0_71] : memref<32x64xf32, #tpu.memory_space<vmem>>, vector<32x64xf32>
    %182 = arith.truncf %2 : vector<128x32xf32> to vector<128x32xbf16>
    %183 = arith.truncf %181 : vector<32x64xf32> to vector<32x64xbf16>
    %cst_72 = arith.constant dense<0.000000e+00> : vector<128x64xf32>
    %184 = tpu.matmul %182, %183, %cst_72 {dimension_numbers = #tpu.dot_dimension_numbers<[1], [0], [0], [1], [0, 0, 1, 1], [], []>} : vector<128x32xbf16>, vector<32x64xbf16>, vector<128x64xf32> -> vector<128x64xf32>
    %c0_73 = arith.constant 0 : index
    %c0_74 = arith.constant 0 : index
    %185 = vector.load %arg16[%c0_73, %c0_74] : memref<1x64xf32, #tpu.memory_space<vmem>>, vector<1x64xf32>
    %186 = vector.broadcast %185 : vector<1x64xf32> to vector<128x64xf32>
    %187 = arith.addf %184, %186 : vector<128x64xf32>
    %188 = vector.extract_strided_slice %187 {offsets = [0, 0], sizes = [128, 32], strides = [1, 1]} : vector<128x64xf32> to vector<128x32xf32>
    %189 = vector.extract_strided_slice %187 {offsets = [0, 32], sizes = [128, 32], strides = [1, 1]} : vector<128x64xf32> to vector<128x32xf32>
    %c0_75 = arith.constant 0 : index
    %c0_76 = arith.constant 0 : index
    %190 = vector.load %arg17[%c0_75, %c0_76] : memref<32x32xf32, #tpu.memory_space<vmem>>, vector<32x32xf32>
    %c0_77 = arith.constant 0 : index
    %c0_78 = arith.constant 0 : index
    %191 = vector.load %arg18[%c0_77, %c0_78] : memref<1x32xf32, #tpu.memory_space<vmem>>, vector<1x32xf32>
    %192 = vector.extract_strided_slice %180 {offsets = [0, 0], sizes = [16, 8], strides = [1, 1]} : vector<16x32xf32> to vector<16x8xf32>
    %193 = vector.extract_strided_slice %188 {offsets = [0, 0], sizes = [128, 8], strides = [1, 1]} : vector<128x32xf32> to vector<128x8xf32>
    %194 = arith.truncf %192 : vector<16x8xf32> to vector<16x8xbf16>
    %195 = arith.truncf %193 : vector<128x8xf32> to vector<128x8xbf16>
    %cst_79 = arith.constant dense<0.000000e+00> : vector<16x128xf32>
    %196 = tpu.matmul %194, %195, %cst_79 {dimension_numbers = #tpu.dot_dimension_numbers<[1], [1], [0], [0], [0, 0, 1, 0], [], []>} : vector<16x8xbf16>, vector<128x8xbf16>, vector<16x128xf32> -> vector<16x128xf32>
    %cst_80 = arith.constant 0.353553385 : f32
    %197 = vector.broadcast %cst_80 : f32 to vector<16x128xf32>
    %198 = arith.mulf %196, %197 : vector<16x128xf32>
    %199 = arith.addf %198, %21 : vector<16x128xf32>
    %cst_81 = arith.constant dense<0xFF800000> : vector<16xf32>
    %200 = vector.multi_reduction <maximumf>, %199, %cst_81 [1] : vector<16x128xf32> to vector<16xf32>
    %201 = vector.shape_cast %200 : vector<16xf32> to vector<16x1xf32>
    %202 = vector.broadcast %201 : vector<16x1xf32> to vector<16x128xf32>
    %203 = arith.subf %199, %202 : vector<16x128xf32>
    %204 = math.exp %203 : vector<16x128xf32>
    %cst_82 = arith.constant dense<0.000000e+00> : vector<16xf32>
    %205 = vector.multi_reduction <add>, %204, %cst_82 [1] : vector<16x128xf32> to vector<16xf32>
    %206 = vector.shape_cast %205 : vector<16xf32> to vector<16x1xf32>
    %207 = vector.extract_strided_slice %189 {offsets = [0, 0], sizes = [128, 8], strides = [1, 1]} : vector<128x32xf32> to vector<128x8xf32>
    %208 = arith.truncf %204 : vector<16x128xf32> to vector<16x128xbf16>
    %209 = arith.truncf %207 : vector<128x8xf32> to vector<128x8xbf16>
    %cst_83 = arith.constant dense<0.000000e+00> : vector<16x8xf32>
    %210 = tpu.matmul %208, %209, %cst_83 {dimension_numbers = #tpu.dot_dimension_numbers<[1], [0], [0], [1], [0, 0, 1, 1], [], []>} : vector<16x128xbf16>, vector<128x8xbf16>, vector<16x8xf32> -> vector<16x8xf32>
    %211 = tpu.reciprocal %206 {approx = true} : vector<16x1xf32> -> vector<16x1xf32>
    %212 = vector.broadcast %211 : vector<16x1xf32> to vector<16x8xf32>
    %213 = arith.mulf %210, %212 : vector<16x8xf32>
    %214 = vector.extract_strided_slice %190 {offsets = [0, 0], sizes = [8, 32], strides = [1, 1]} : vector<32x32xf32> to vector<8x32xf32>
    %215 = arith.truncf %213 : vector<16x8xf32> to vector<16x8xbf16>
    %216 = arith.truncf %214 : vector<8x32xf32> to vector<8x32xbf16>
    %cst_84 = arith.constant dense<0.000000e+00> : vector<16x32xf32>
    %217 = tpu.matmul %215, %216, %cst_84 {dimension_numbers = #tpu.dot_dimension_numbers<[1], [0], [0], [1], [0, 0, 1, 1], [], []>} : vector<16x8xbf16>, vector<8x32xbf16>, vector<16x32xf32> -> vector<16x32xf32>
    %218 = vector.extract_strided_slice %180 {offsets = [0, 8], sizes = [16, 8], strides = [1, 1]} : vector<16x32xf32> to vector<16x8xf32>
    %219 = vector.extract_strided_slice %188 {offsets = [0, 8], sizes = [128, 8], strides = [1, 1]} : vector<128x32xf32> to vector<128x8xf32>
    %220 = arith.truncf %218 : vector<16x8xf32> to vector<16x8xbf16>
    %221 = arith.truncf %219 : vector<128x8xf32> to vector<128x8xbf16>
    %cst_85 = arith.constant dense<0.000000e+00> : vector<16x128xf32>
    %222 = tpu.matmul %220, %221, %cst_85 {dimension_numbers = #tpu.dot_dimension_numbers<[1], [1], [0], [0], [0, 0, 1, 0], [], []>} : vector<16x8xbf16>, vector<128x8xbf16>, vector<16x128xf32> -> vector<16x128xf32>
    %cst_86 = arith.constant 0.353553385 : f32
    %223 = vector.broadcast %cst_86 : f32 to vector<16x128xf32>
    %224 = arith.mulf %222, %223 : vector<16x128xf32>
    %225 = arith.addf %224, %21 : vector<16x128xf32>
    %cst_87 = arith.constant dense<0xFF800000> : vector<16xf32>
    %226 = vector.multi_reduction <maximumf>, %225, %cst_87 [1] : vector<16x128xf32> to vector<16xf32>
    %227 = vector.shape_cast %226 : vector<16xf32> to vector<16x1xf32>
    %228 = vector.broadcast %227 : vector<16x1xf32> to vector<16x128xf32>
    %229 = arith.subf %225, %228 : vector<16x128xf32>
    %230 = math.exp %229 : vector<16x128xf32>
    %cst_88 = arith.constant dense<0.000000e+00> : vector<16xf32>
    %231 = vector.multi_reduction <add>, %230, %cst_88 [1] : vector<16x128xf32> to vector<16xf32>
    %232 = vector.shape_cast %231 : vector<16xf32> to vector<16x1xf32>
    %233 = vector.extract_strided_slice %189 {offsets = [0, 8], sizes = [128, 8], strides = [1, 1]} : vector<128x32xf32> to vector<128x8xf32>
    %234 = arith.truncf %230 : vector<16x128xf32> to vector<16x128xbf16>
    %235 = arith.truncf %233 : vector<128x8xf32> to vector<128x8xbf16>
    %cst_89 = arith.constant dense<0.000000e+00> : vector<16x8xf32>
    %236 = tpu.matmul %234, %235, %cst_89 {dimension_numbers = #tpu.dot_dimension_numbers<[1], [0], [0], [1], [0, 0, 1, 1], [], []>} : vector<16x128xbf16>, vector<128x8xbf16>, vector<16x8xf32> -> vector<16x8xf32>
    %237 = tpu.reciprocal %232 {approx = true} : vector<16x1xf32> -> vector<16x1xf32>
    %238 = vector.broadcast %237 : vector<16x1xf32> to vector<16x8xf32>
    %239 = arith.mulf %236, %238 : vector<16x8xf32>
    %240 = vector.extract_strided_slice %190 {offsets = [8, 0], sizes = [8, 32], strides = [1, 1]} : vector<32x32xf32> to vector<8x32xf32>
    %241 = arith.truncf %239 : vector<16x8xf32> to vector<16x8xbf16>
    %242 = arith.truncf %240 : vector<8x32xf32> to vector<8x32xbf16>
    %cst_90 = arith.constant dense<0.000000e+00> : vector<16x32xf32>
    %243 = tpu.matmul %241, %242, %cst_90 {dimension_numbers = #tpu.dot_dimension_numbers<[1], [0], [0], [1], [0, 0, 1, 1], [], []>} : vector<16x8xbf16>, vector<8x32xbf16>, vector<16x32xf32> -> vector<16x32xf32>
    %244 = arith.addf %217, %243 : vector<16x32xf32>
    %245 = vector.extract_strided_slice %180 {offsets = [0, 16], sizes = [16, 8], strides = [1, 1]} : vector<16x32xf32> to vector<16x8xf32>
    %246 = vector.extract_strided_slice %188 {offsets = [0, 16], sizes = [128, 8], strides = [1, 1]} : vector<128x32xf32> to vector<128x8xf32>
    %247 = arith.truncf %245 : vector<16x8xf32> to vector<16x8xbf16>
    %248 = arith.truncf %246 : vector<128x8xf32> to vector<128x8xbf16>
    %cst_91 = arith.constant dense<0.000000e+00> : vector<16x128xf32>
    %249 = tpu.matmul %247, %248, %cst_91 {dimension_numbers = #tpu.dot_dimension_numbers<[1], [1], [0], [0], [0, 0, 1, 0], [], []>} : vector<16x8xbf16>, vector<128x8xbf16>, vector<16x128xf32> -> vector<16x128xf32>
    %cst_92 = arith.constant 0.353553385 : f32
    %250 = vector.broadcast %cst_92 : f32 to vector<16x128xf32>
    %251 = arith.mulf %249, %250 : vector<16x128xf32>
    %252 = arith.addf %251, %21 : vector<16x128xf32>
    %cst_93 = arith.constant dense<0xFF800000> : vector<16xf32>
    %253 = vector.multi_reduction <maximumf>, %252, %cst_93 [1] : vector<16x128xf32> to vector<16xf32>
    %254 = vector.shape_cast %253 : vector<16xf32> to vector<16x1xf32>
    %255 = vector.broadcast %254 : vector<16x1xf32> to vector<16x128xf32>
    %256 = arith.subf %252, %255 : vector<16x128xf32>
    %257 = math.exp %256 : vector<16x128xf32>
    %cst_94 = arith.constant dense<0.000000e+00> : vector<16xf32>
    %258 = vector.multi_reduction <add>, %257, %cst_94 [1] : vector<16x128xf32> to vector<16xf32>
    %259 = vector.shape_cast %258 : vector<16xf32> to vector<16x1xf32>
    %260 = vector.extract_strided_slice %189 {offsets = [0, 16], sizes = [128, 8], strides = [1, 1]} : vector<128x32xf32> to vector<128x8xf32>
    %261 = arith.truncf %257 : vector<16x128xf32> to vector<16x128xbf16>
    %262 = arith.truncf %260 : vector<128x8xf32> to vector<128x8xbf16>
    %cst_95 = arith.constant dense<0.000000e+00> : vector<16x8xf32>
    %263 = tpu.matmul %261, %262, %cst_95 {dimension_numbers = #tpu.dot_dimension_numbers<[1], [0], [0], [1], [0, 0, 1, 1], [], []>} : vector<16x128xbf16>, vector<128x8xbf16>, vector<16x8xf32> -> vector<16x8xf32>
    %264 = tpu.reciprocal %259 {approx = true} : vector<16x1xf32> -> vector<16x1xf32>
    %265 = vector.broadcast %264 : vector<16x1xf32> to vector<16x8xf32>
    %266 = arith.mulf %263, %265 : vector<16x8xf32>
    %267 = vector.extract_strided_slice %190 {offsets = [16, 0], sizes = [8, 32], strides = [1, 1]} : vector<32x32xf32> to vector<8x32xf32>
    %268 = arith.truncf %266 : vector<16x8xf32> to vector<16x8xbf16>
    %269 = arith.truncf %267 : vector<8x32xf32> to vector<8x32xbf16>
    %cst_96 = arith.constant dense<0.000000e+00> : vector<16x32xf32>
    %270 = tpu.matmul %268, %269, %cst_96 {dimension_numbers = #tpu.dot_dimension_numbers<[1], [0], [0], [1], [0, 0, 1, 1], [], []>} : vector<16x8xbf16>, vector<8x32xbf16>, vector<16x32xf32> -> vector<16x32xf32>
    %271 = arith.addf %244, %270 : vector<16x32xf32>
    %272 = vector.extract_strided_slice %180 {offsets = [0, 24], sizes = [16, 8], strides = [1, 1]} : vector<16x32xf32> to vector<16x8xf32>
    %273 = vector.extract_strided_slice %188 {offsets = [0, 24], sizes = [128, 8], strides = [1, 1]} : vector<128x32xf32> to vector<128x8xf32>
    %274 = arith.truncf %272 : vector<16x8xf32> to vector<16x8xbf16>
    %275 = arith.truncf %273 : vector<128x8xf32> to vector<128x8xbf16>
    %cst_97 = arith.constant dense<0.000000e+00> : vector<16x128xf32>
    %276 = tpu.matmul %274, %275, %cst_97 {dimension_numbers = #tpu.dot_dimension_numbers<[1], [1], [0], [0], [0, 0, 1, 0], [], []>} : vector<16x8xbf16>, vector<128x8xbf16>, vector<16x128xf32> -> vector<16x128xf32>
    %cst_98 = arith.constant 0.353553385 : f32
    %277 = vector.broadcast %cst_98 : f32 to vector<16x128xf32>
    %278 = arith.mulf %276, %277 : vector<16x128xf32>
    %279 = arith.addf %278, %21 : vector<16x128xf32>
    %cst_99 = arith.constant dense<0xFF800000> : vector<16xf32>
    %280 = vector.multi_reduction <maximumf>, %279, %cst_99 [1] : vector<16x128xf32> to vector<16xf32>
    %281 = vector.shape_cast %280 : vector<16xf32> to vector<16x1xf32>
    %282 = vector.broadcast %281 : vector<16x1xf32> to vector<16x128xf32>
    %283 = arith.subf %279, %282 : vector<16x128xf32>
    %284 = math.exp %283 : vector<16x128xf32>
    %cst_100 = arith.constant dense<0.000000e+00> : vector<16xf32>
    %285 = vector.multi_reduction <add>, %284, %cst_100 [1] : vector<16x128xf32> to vector<16xf32>
    %286 = vector.shape_cast %285 : vector<16xf32> to vector<16x1xf32>
    %287 = vector.extract_strided_slice %189 {offsets = [0, 24], sizes = [128, 8], strides = [1, 1]} : vector<128x32xf32> to vector<128x8xf32>
    %288 = arith.truncf %284 : vector<16x128xf32> to vector<16x128xbf16>
    %289 = arith.truncf %287 : vector<128x8xf32> to vector<128x8xbf16>
    %cst_101 = arith.constant dense<0.000000e+00> : vector<16x8xf32>
    %290 = tpu.matmul %288, %289, %cst_101 {dimension_numbers = #tpu.dot_dimension_numbers<[1], [0], [0], [1], [0, 0, 1, 1], [], []>} : vector<16x128xbf16>, vector<128x8xbf16>, vector<16x8xf32> -> vector<16x8xf32>
    %291 = tpu.reciprocal %286 {approx = true} : vector<16x1xf32> -> vector<16x1xf32>
    %292 = vector.broadcast %291 : vector<16x1xf32> to vector<16x8xf32>
    %293 = arith.mulf %290, %292 : vector<16x8xf32>
    %294 = vector.extract_strided_slice %190 {offsets = [24, 0], sizes = [8, 32], strides = [1, 1]} : vector<32x32xf32> to vector<8x32xf32>
    %295 = arith.truncf %293 : vector<16x8xf32> to vector<16x8xbf16>
    %296 = arith.truncf %294 : vector<8x32xf32> to vector<8x32xbf16>
    %cst_102 = arith.constant dense<0.000000e+00> : vector<16x32xf32>
    %297 = tpu.matmul %295, %296, %cst_102 {dimension_numbers = #tpu.dot_dimension_numbers<[1], [0], [0], [1], [0, 0, 1, 1], [], []>} : vector<16x8xbf16>, vector<8x32xbf16>, vector<16x32xf32> -> vector<16x32xf32>
    %298 = arith.addf %271, %297 : vector<16x32xf32>
    %299 = vector.broadcast %191 : vector<1x32xf32> to vector<16x32xf32>
    %300 = arith.addf %298, %299 : vector<16x32xf32>
    %301 = arith.addf %172, %300 : vector<16x32xf32>
    %c0_103 = arith.constant 0 : index
    %c0_104 = arith.constant 0 : index
    %302 = vector.load %arg25[%c0_103, %c0_104] : memref<1x32xf32, #tpu.memory_space<vmem>>, vector<1x32xf32>
    %c0_105 = arith.constant 0 : index
    %c0_106 = arith.constant 0 : index
    %303 = vector.load %arg26[%c0_105, %c0_106] : memref<1x32xf32, #tpu.memory_space<vmem>>, vector<1x32xf32>
    %cst_107 = arith.constant dense<0.000000e+00> : vector<16xf32>
    %304 = vector.multi_reduction <add>, %301, %cst_107 [1] : vector<16x32xf32> to vector<16xf32>
    %305 = vector.shape_cast %304 : vector<16xf32> to vector<16x1xf32>
    %cst_108 = arith.constant 3.200000e+01 : f32
    %306 = vector.broadcast %cst_108 : f32 to vector<16x1xf32>
    %307 = arith.divf %305, %306 : vector<16x1xf32>
    %308 = vector.broadcast %307 : vector<16x1xf32> to vector<16x32xf32>
    %309 = arith.subf %301, %308 : vector<16x32xf32>
    %310 = arith.mulf %309, %309 : vector<16x32xf32>
    %cst_109 = arith.constant dense<0.000000e+00> : vector<16xf32>
    %311 = vector.multi_reduction <add>, %310, %cst_109 [1] : vector<16x32xf32> to vector<16xf32>
    %312 = vector.shape_cast %311 : vector<16xf32> to vector<16x1xf32>
    %cst_110 = arith.constant 3.200000e+01 : f32
    %313 = vector.broadcast %cst_110 : f32 to vector<16x1xf32>
    %314 = arith.divf %312, %313 : vector<16x1xf32>
    %cst_111 = arith.constant 9.99999974E-6 : f32
    %315 = vector.broadcast %cst_111 : f32 to vector<16x1xf32>
    %316 = arith.addf %314, %315 : vector<16x1xf32>
    %317 = math.rsqrt %316 : vector<16x1xf32>
    %318 = vector.broadcast %317 : vector<16x1xf32> to vector<16x32xf32>
    %319 = arith.mulf %309, %318 : vector<16x32xf32>
    %320 = vector.broadcast %302 : vector<1x32xf32> to vector<16x32xf32>
    %321 = arith.mulf %319, %320 : vector<16x32xf32>
    %322 = vector.broadcast %303 : vector<1x32xf32> to vector<16x32xf32>
    %323 = arith.addf %321, %322 : vector<16x32xf32>
    %c0_112 = arith.constant 0 : index
    %c0_113 = arith.constant 0 : index
    %324 = vector.load %arg19[%c0_112, %c0_113] : memref<32x64xf32, #tpu.memory_space<vmem>>, vector<32x64xf32>
    %325 = arith.truncf %323 : vector<16x32xf32> to vector<16x32xbf16>
    %326 = arith.truncf %324 : vector<32x64xf32> to vector<32x64xbf16>
    %cst_114 = arith.constant dense<0.000000e+00> : vector<16x64xf32>
    %327 = tpu.matmul %325, %326, %cst_114 {dimension_numbers = #tpu.dot_dimension_numbers<[1], [0], [0], [1], [0, 0, 1, 1], [], []>} : vector<16x32xbf16>, vector<32x64xbf16>, vector<16x64xf32> -> vector<16x64xf32>
    %c0_115 = arith.constant 0 : index
    %c0_116 = arith.constant 0 : index
    %328 = vector.load %arg20[%c0_115, %c0_116] : memref<1x64xf32, #tpu.memory_space<vmem>>, vector<1x64xf32>
    %329 = vector.broadcast %328 : vector<1x64xf32> to vector<16x64xf32>
    %330 = arith.addf %327, %329 : vector<16x64xf32>
    %cst_117 = arith.constant 0.000000e+00 : f32
    %331 = vector.broadcast %cst_117 : f32 to vector<16x64xf32>
    %332 = arith.maximumf %330, %331 : vector<16x64xf32>
    %c0_118 = arith.constant 0 : index
    %c0_119 = arith.constant 0 : index
    %333 = vector.load %arg21[%c0_118, %c0_119] : memref<64x32xf32, #tpu.memory_space<vmem>>, vector<64x32xf32>
    %334 = arith.truncf %332 : vector<16x64xf32> to vector<16x64xbf16>
    %335 = arith.truncf %333 : vector<64x32xf32> to vector<64x32xbf16>
    %cst_120 = arith.constant dense<0.000000e+00> : vector<16x32xf32>
    %336 = tpu.matmul %334, %335, %cst_120 {dimension_numbers = #tpu.dot_dimension_numbers<[1], [0], [0], [1], [0, 0, 1, 1], [], []>} : vector<16x64xbf16>, vector<64x32xbf16>, vector<16x32xf32> -> vector<16x32xf32>
    %c0_121 = arith.constant 0 : index
    %c0_122 = arith.constant 0 : index
    %337 = vector.load %arg22[%c0_121, %c0_122] : memref<1x32xf32, #tpu.memory_space<vmem>>, vector<1x32xf32>
    %338 = vector.broadcast %337 : vector<1x32xf32> to vector<16x32xf32>
    %339 = arith.addf %336, %338 : vector<16x32xf32>
    %340 = arith.addf %323, %339 : vector<16x32xf32>
    %c0_123 = arith.constant 0 : index
    %c0_124 = arith.constant 0 : index
    %341 = vector.load %arg27[%c0_123, %c0_124] : memref<1x32xf32, #tpu.memory_space<vmem>>, vector<1x32xf32>
    %c0_125 = arith.constant 0 : index
    %c0_126 = arith.constant 0 : index
    %342 = vector.load %arg28[%c0_125, %c0_126] : memref<1x32xf32, #tpu.memory_space<vmem>>, vector<1x32xf32>
    %cst_127 = arith.constant dense<0.000000e+00> : vector<16xf32>
    %343 = vector.multi_reduction <add>, %340, %cst_127 [1] : vector<16x32xf32> to vector<16xf32>
    %344 = vector.shape_cast %343 : vector<16xf32> to vector<16x1xf32>
    %cst_128 = arith.constant 3.200000e+01 : f32
    %345 = vector.broadcast %cst_128 : f32 to vector<16x1xf32>
    %346 = arith.divf %344, %345 : vector<16x1xf32>
    %347 = vector.broadcast %346 : vector<16x1xf32> to vector<16x32xf32>
    %348 = arith.subf %340, %347 : vector<16x32xf32>
    %349 = arith.mulf %348, %348 : vector<16x32xf32>
    %cst_129 = arith.constant dense<0.000000e+00> : vector<16xf32>
    %350 = vector.multi_reduction <add>, %349, %cst_129 [1] : vector<16x32xf32> to vector<16xf32>
    %351 = vector.shape_cast %350 : vector<16xf32> to vector<16x1xf32>
    %cst_130 = arith.constant 3.200000e+01 : f32
    %352 = vector.broadcast %cst_130 : f32 to vector<16x1xf32>
    %353 = arith.divf %351, %352 : vector<16x1xf32>
    %cst_131 = arith.constant 9.99999974E-6 : f32
    %354 = vector.broadcast %cst_131 : f32 to vector<16x1xf32>
    %355 = arith.addf %353, %354 : vector<16x1xf32>
    %356 = math.rsqrt %355 : vector<16x1xf32>
    %357 = vector.broadcast %356 : vector<16x1xf32> to vector<16x32xf32>
    %358 = arith.mulf %348, %357 : vector<16x32xf32>
    %359 = vector.broadcast %341 : vector<1x32xf32> to vector<16x32xf32>
    %360 = arith.mulf %358, %359 : vector<16x32xf32>
    %361 = vector.broadcast %342 : vector<1x32xf32> to vector<16x32xf32>
    %362 = arith.addf %360, %361 : vector<16x32xf32>
    %c0_132 = arith.constant 0 : index
    %c0_133 = arith.constant 0 : index
    %363 = vector.load %arg29[%c0_132, %c0_133] : memref<16x32xf32, #tpu.memory_space<vmem>>, vector<16x32xf32>
    tpu.vector_store %arg29[%c0_132, %c0_133], %362 {strides = array<i32>} : memref<16x32xf32, #tpu.memory_space<vmem>>, vector<16x32xf32>,
    return
  }
}

</mosaic_0001>

<llo_original>
// kernel: custom-call.1
$region0: #{custom-call.1}
  %s0 = inlined_call_operand.vmem [shape: u32[16], index: 0, kind: output, shape index: {}]

// kernel: decoder_forward.5
$region0: #{decoder_forward.5}
  #allocation0 [shape = 'u32[]', space=smem, size = 0x4, offset = 0x4, fixed_abs, tag = 'smem constant byte address 0x4 - core index']
  #allocation1 [shape = 'u32[144,128]{1,0:T(1,128)}', space=vmem, size = 0x12000, scoped, tag = 'internal scratch']
  %s0 = inlined_call_operand.vmem [shape: f32[16,32], index: 0, kind: input, shape index: {}]
  %s1 = inlined_call_operand.vmem [shape: f32[16,1], index: 1, kind: input, shape index: {}]
  %s2 = inlined_call_operand.vmem [shape: f32[128,32], index: 2, kind: input, shape index: {}]
  %s3 = inlined_call_operand.vmem [shape: f32[1,32], index: 3, kind: input, shape index: {}]
  %s4 = inlined_call_operand.vmem [shape: f32[1,32], index: 4, kind: input, shape index: {}]
  %s5 = inlined_call_operand.vmem [shape: f32[32,35], index: 5, kind: input, shape index: {}]
  %s6 = inlined_call_operand.vmem [shape: f32[1,35], index: 6, kind: input, shape index: {}]
  %s7 = inlined_call_operand.vmem [shape: f32[32,32], index: 7, kind: input, shape index: {}]
  %s8 = inlined_call_operand.vmem [shape: f32[1,32], index: 8, kind: input, shape index: {}]
  %s9 = inlined_call_operand.vmem [shape: f32[32,32], index: 9, kind: input, shape index: {}]
  %s10 = inlined_call_operand.vmem [shape: f32[1,32], index: 10, kind: input, shape index: {}]
  %s11 = inlined_call_operand.vmem [shape: f32[32,2], index: 11, kind: input, shape index: {}]
  %s12 = inlined_call_operand.vmem [shape: f32[1,2], index: 12, kind: input, shape index: {}]
  %s13 = inlined_call_operand.vmem [shape: f32[16,1], index: 13, kind: output, shape index: {0}]
  %s14 = inlined_call_operand.vmem [shape: f32[16,2], index: 14, kind: output, shape index: {1}]
  %s15 = inlined_call_operand.vmem [shape: f32[16,2], index: 15, kind: output, shape index: {2}]
  %s16 = inlined_call_operand.hbm [shape: f32[16,64], index: 16, kind: output, shape index: {3}]
  %17 = xla_tuple %s13, %s14, %s15, %s16
  %s18 = sld [smem:[#allocation0]]
  $region86: #{decoder_forward.5} parent=0
    _
  %s20 = ssub.s32 1, %s18
  %s21 = scalar_select 0, %s20, %s18
  $region1: #{decoder_forward.5} parent=0
    #allocation2 [shape = 'u8[8192]{0}', space=vmem, size = 0x2000, scoped, tag = 'output window, operand 3, single buffered']
    #allocation3 [shape = 's32[1]{0}', space=sflag, size = 0x4, scoped, tag = 'scoped memory for decoder_forward.5']
    %22 = vsyncpa [#allocation3], 0
    // Predicated region
    $region2: #{decoder_forward.5} parent=1 // pred_check
      _
    $region3: #{decoder_forward.5} parent=1 // pred_check_branch
      %24 = sbr.rel (0) target = $region5
    $region4: #{decoder_forward.5} parent=1 // pred_region
      _
    $region5: #{decoder_forward.5} parent=1 // pred_fallthru
      _
    // Predicated region
    $region6: #{decoder_forward.5} parent=1 // pred_check
      _
    $region7: #{decoder_forward.5} parent=1 // pred_check_branch
      %26 = sbr.rel (0) target = $region9
    $region8: #{decoder_forward.5} parent=1 // pred_region
      _
    $region9: #{decoder_forward.5} parent=1 // pred_fallthru
      _
    // Predicated region
    $region10: #{decoder_forward.5} parent=1 // pred_check
      _
    $region11: #{decoder_forward.5} parent=1 // pred_check_branch
      %28 = sbr.rel (0) target = $region13
    $region12: #{decoder_forward.5} parent=1 // pred_region
      _
    $region13: #{decoder_forward.5} parent=1 // pred_fallthru
      _
    // Predicated region
    $region14: #{decoder_forward.5} parent=1 // pred_check
      _
    $region15: #{decoder_forward.5} parent=1 // pred_check_branch
      %30 = sbr.rel (0) target = $region17
    $region16: #{decoder_forward.5} parent=1 // pred_region
      _
    $region17: #{decoder_forward.5} parent=1 // pred_fallthru
      _
    // Predicated region
    $region18: #{decoder_forward.5} parent=1 // pred_check
      _
    $region19: #{decoder_forward.5} parent=1 // pred_check_branch
      %32 = sbr.rel (0) target = $region21
    $region20: #{decoder_forward.5} parent=1 // pred_region
      _
    $region21: #{decoder_forward.5} parent=1 // pred_fallthru
      _
    // Predicated region
    $region22: #{decoder_forward.5} parent=1 // pred_check
      _
    $region23: #{decoder_forward.5} parent=1 // pred_check_branch
      %34 = sbr.rel (0) target = $region25
    $region24: #{decoder_forward.5} parent=1 // pred_region
      _
    $region25: #{decoder_forward.5} parent=1 // pred_fallthru
      _
    // Predicated region
    $region26: #{decoder_forward.5} parent=1 // pred_check
      _
    $region27: #{decoder_forward.5} parent=1 // pred_check_branch
      %36 = sbr.rel (0) target = $region29
    $region28: #{decoder_forward.5} parent=1 // pred_region
      _
    $region29: #{decoder_forward.5} parent=1 // pred_fallthru
      _
    // Predicated region
    $region30: #{decoder_forward.5} parent=1 // pred_check
      _
    $region31: #{decoder_forward.5} parent=1 // pred_check_branch
      %38 = sbr.rel (0) target = $region33
    $region32: #{decoder_forward.5} parent=1 // pred_region
      _
    $region33: #{decoder_forward.5} parent=1 // pred_fallthru
      _
    // Predicated region
    $region34: #{decoder_forward.5} parent=1 // pred_check
      _
    $region35: #{decoder_forward.5} parent=1 // pred_check_branch
      %40 = sbr.rel (0) target = $region37
    $region36: #{decoder_forward.5} parent=1 // pred_region
      _
    $region37: #{decoder_forward.5} parent=1 // pred_fallthru
      _
    // Predicated region
    $region38: #{decoder_forward.5} parent=1 // pred_check
      _
    $region39: #{decoder_forward.5} parent=1 // pred_check_branch
      %42 = sbr.rel (0) target = $region41
    $region40: #{decoder_forward.5} parent=1 // pred_region
      _
    $region41: #{decoder_forward.5} parent=1 // pred_fallthru
      _
    // Predicated region
    $region42: #{decoder_forward.5} parent=1 // pred_check
      _
    $region43: #{decoder_forward.5} parent=1 // pred_check_branch
      %44 = sbr.rel (0) target = $region45
    $region44: #{decoder_forward.5} parent=1 // pred_region
      _
    $region45: #{decoder_forward.5} parent=1 // pred_fallthru
      _
    // Predicated region
    $region46: #{decoder_forward.5} parent=1 // pred_check
      _
    $region47: #{decoder_forward.5} parent=1 // pred_check_branch
      %46 = sbr.rel (0) target = $region49
    $region48: #{decoder_forward.5} parent=1 // pred_region
      _
    $region49: #{decoder_forward.5} parent=1 // pred_fallthru
      _
    // Predicated region
    $region50: #{decoder_forward.5} parent=1 // pred_check
      _
    $region51: #{decoder_forward.5} parent=1 // pred_check_branch
      %48 = sbr.rel (0) target = $region53
    $region52: #{decoder_forward.5} parent=1 // pred_region
      _
    $region53: #{decoder_forward.5} parent=1 // pred_fallthru
      _
    %v50 = vld [vmem:[%s0] sm:$0xff]
    %v51 = vld [vmem:[%s0 + $0x8] sm:$0xff]
    %v52 = vld [vmem:[%s3] sm:$0x1]
    %v53 = vld [vmem:[%s4] sm:$0x1]
    %vm54 = vcmask 261120
    %v55 = vsel %vm54, %v50, 0.0
    %56 = vadd.xlane.f32.xlu0 %v55
    %v57 = vpop.xlane.xlu0 %56
    %v58 = vsel %vm54, %v51, 0.0
    %59 = vadd.xlane.f32.xlu0 %v58
    %v60 = vpop.xlane.xlu0 %59
    %v61 = vrcp.pop 32.0
    %v62 = vmul.f32 %v57, %v61
    %v63 = vmul.f32 %v60, %v61
    %v64 = vsub.f32 %v50, %v62
    %v65 = vsub.f32 %v51, %v63
    %v66 = vmul.f32 %v64, %v64
    %v67 = vmul.f32 %v65, %v65
    %v68 = vsel %vm54, %v66, 0.0
    %69 = vadd.xlane.f32.xlu0 %v68
    %v70 = vpop.xlane.xlu0 %69
    %v71 = vsel %vm54, %v67, 0.0
    %72 = vadd.xlane.f32.xlu0 %v71
    %v73 = vpop.xlane.xlu0 %72
    %v74 = vmul.f32 %v70, %v61
    %v75 = vmul.f32 %v73, %v61
    %v76 = vadd.f32 %v74, 1e-05
    %v77 = vadd.f32 %v75, 1e-05
    %v78 = vrsqrt.pop %v76
    %v79 = vrsqrt.pop %v77
    %v80 = vmul.f32 %v64, %v78
    %v81 = vmul.f32 %v65, %v79
    %v83 = vlaneseq
    %v84 = vshrl.u32 %v83, 7
    %v85 = vsub.s32 0, %v84
    %v86 = vrot.slane %v52, %v85
    %v88 = vmul.f32 %v80, %v86
    %v89 = vmul.f32 %v81, %v86
    %v91 = vlaneseq
    %v92 = vshrl.u32 %v91, 7
    %v93 = vsub.s32 0, %v92
    %v94 = vrot.slane %v53, %v93
    %v96 = vadd.f32 %v88, %v94
    %v97 = vadd.f32 %v89, %v94
    %v98 = vld [vmem:[%s5] sm:$0xff]
    %v99 = vld [vmem:[%s5 + $0x8] sm:$0xff]
    %v100 = vld [vmem:[%s5 + $0x10] sm:$0xff]
    %v101 = vld [vmem:[%s5 + $0x18] sm:$0xff]
    %v102 = vpack.c.bf16 %v97, %v96
    %v103 = vpack.c.bf16 %v99, %v98
    %v104 = vpack.c.bf16 %v101, %v100
    %v105 = vld [vmem:[%s6] sm:$0x1]
    %v107 = vlaneseq
    %v108 = vshrl.u32 %v107, 7
    %v109 = vsub.s32 0, %v108
    %v110 = vrot.slane %v105, %v109
    %v113 = vsel %vm54, %v102, 0
    %115 = vmatprep.subr.bf16.mxu0 0
    %116 = vmatpush1.bf16.msra.mxu0 %v103
    %117 = vmatprep.subr.bf16.mxu0 0
    %118 = vmatpush1.bf16.msra.mxu0 %v104
    %119 = vmatprep.subr.bf16.mxu0 0
    %120 = vmatpush1.bf16.msra.mxu0 0
    %121 = vmatprep.subr.bf16.mxu0 0
    %122 = vmatpush1.bf16.msra.mxu0 0
    %123 = vmatprep.subr.bf16.mxu0 0
    %124 = vmatpush1.bf16.msra.mxu0 0
    %125 = vmatprep.subr.bf16.mxu0 0
    %126 = vmatpush1.bf16.msra.mxu0 0
    %127 = vmatprep.subr.bf16.mxu0 0
    %128 = vmatpush1.bf16.msra.mxu0 0
    %129 = vmatprep.subr.bf16.mxu0 0
    %130 = vmatpush1.bf16.msra.mxu0 0
    %131 = vmatprep.subr.bf16.mxu0 0
    %132 = vmatpush1.bf16.msra.mxu0 0
    %133 = vmatprep.subr.bf16.mxu0 0
    %134 = vmatpush1.bf16.msra.mxu0 0
    %135 = vmatprep.subr.bf16.mxu0 0
    %136 = vmatpush1.bf16.msra.mxu0 0
    %137 = vmatprep.subr.bf16.mxu0 0
    %138 = vmatpush1.bf16.msra.mxu0 0
    %139 = vmatprep.subr.bf16.mxu0 0
    %140 = vmatpush1.bf16.msra.mxu0 0
    %141 = vmatprep.subr.bf16.mxu0 0
    %142 = vmatpush1.bf16.msra.mxu0 0
    %143 = vmatprep.subr.bf16.mxu0 0
    %144 = vmatpush1.bf16.msra.mxu0 0
    %145 = vmatprep.subr.bf16.mxu0 0
    %146 = vmatpush1.bf16.msra.mxu0 0
    %147 = vmatprep.mubr.bf16.mxu0 0
    %148 = vmatmul.mubr.bf16.gmra.mrb[0].mxu0 %v113
    %v149 = vpop.f32.mrb[0].mxu0
    %v150 = vadd.f32 %v110, %v149
    %v151 = vpop.f32.mrb[0].mxu0
    %v152 = vpop.f32.mrb[0].mxu0
    %v153 = vadd.f32 %v110, %v152
    %v154 = vpop.f32.mrb[0].mxu0
    %155 = vdwg.mxu0
    %158 = vrot.lane.b32.xlu0 %v150, 96
    %v159 = vpop.permute.xlu0 %158
    %160 = vrot.lane.b32.xlu0 %v153, 96
    %v161 = vpop.permute.xlu0 %160
    %vm164 = vcmask 7168
    %165 = vst.msk [vmem:[%s13] sm:$0xff] %vm164, %v159
    %166 = vst.msk [vmem:[%s13 + $0x8] sm:$0xff] %vm164, %v161
    %v167 = vmax.f32 %v150, 0.0
    %v168 = vmax.f32 %v153, 0.0
    %v169 = vand.u32 2147483647, %v150
    %v170 = vand.u32 2147483647, %v153
    %v171 = vsub.f32 0.0, %v169
    %v172 = vsub.f32 0.0, %v170
    %v173 = vmul.f32 %v171, 1.442695
    %v174 = vpow.pop %v173
    %v175 = vmul.f32 %v172, 1.442695
    %v176 = vpow.pop %v175
    %v177 = vadd.f32 %v174, 1.0
    %v178 = vlog2.pop %v177
    %v179 = vmul.f32 %v178, 0.6931472
    %v180 = vmul.f32 -0.5, %v174
    %v181 = vadd.f32 %v180, 1.0
    %v182 = vmul.f32 %v181, %v174
    %v183 = vand.u32 2147483647, %v174
    %vm184 = vcmp.lt.f32.partialorder %v183, 0.0004427343
    %v185 = vsel %vm184, %v182, %v179
    %v186 = vadd.f32 %v176, 1.0
    %v187 = vlog2.pop %v186
    %v188 = vmul.f32 %v187, 0.6931472
    %v189 = vmul.f32 -0.5, %v176
    %v190 = vadd.f32 %v189, 1.0
    %v191 = vmul.f32 %v190, %v176
    %v192 = vand.u32 2147483647, %v176
    %vm193 = vcmp.lt.f32.partialorder %v192, 0.0004427343
    %v194 = vsel %vm193, %v191, %v188
    %v195 = vadd.f32 %v167, %v185
    %v196 = vadd.f32 %v168, %v194
    %199 = vrot.lane.b32.xlu0 %v195, 95
    %v200 = vpop.permute.xlu0 %199
    %201 = vrot.lane.b32.xlu0 %v196, 95
    %v202 = vpop.permute.xlu0 %201
    %vm205 = vcmask 15360
    %206 = vst.msk [vmem:[%s15] sm:$0xff] %vm205, %v200
    %207 = vst.msk [vmem:[%s15 + $0x8] sm:$0xff] %vm205, %v202
    %v208 = vld [vmem:[%s7] sm:$0xff]
    %v209 = vld [vmem:[%s7 + $0x8] sm:$0xff]
    %v210 = vld [vmem:[%s7 + $0x10] sm:$0xff]
    %v211 = vld [vmem:[%s7 + $0x18] sm:$0xff]
    %v212 = vpack.c.bf16 %v209, %v208
    %v213 = vpack.c.bf16 %v211, %v210
    %v214 = vld [vmem:[%s8] sm:$0x1]
    %v216 = vlaneseq
    %v217 = vshrl.u32 %v216, 7
    %v218 = vsub.s32 0, %v217
    %v219 = vrot.slane %v214, %v218
    %221 = vmatprep.subr.bf16.mxu0 0
    %222 = vmatpush1.bf16.msra.mxu0 %v212
    %223 = vmatprep.subr.bf16.mxu0 0
    %224 = vmatpush1.bf16.msra.mxu0 %v213
    %225 = vmatprep.subr.bf16.mxu0 0
    %226 = vmatpush1.bf16.msra.mxu0 0
    %227 = vmatprep.subr.bf16.mxu0 0
    %228 = vmatpush1.bf16.msra.mxu0 0
    %229 = vmatprep.subr.bf16.mxu0 0
    %230 = vmatpush1.bf16.msra.mxu0 0
    %231 = vmatprep.subr.bf16.mxu0 0
    %232 = vmatpush1.bf16.msra.mxu0 0
    %233 = vmatprep.subr.bf16.mxu0 0
    %234 = vmatpush1.bf16.msra.mxu0 0
    %235 = vmatprep.subr.bf16.mxu0 0
    %236 = vmatpush1.bf16.msra.mxu0 0
    %237 = vmatprep.subr.bf16.mxu0 0
    %238 = vmatpush1.bf16.msra.mxu0 0
    %239 = vmatprep.subr.bf16.mxu0 0
    %240 = vmatpush1.bf16.msra.mxu0 0
    %241 = vmatprep.subr.bf16.mxu0 0
    %242 = vmatpush1.bf16.msra.mxu0 0
    %243 = vmatprep.subr.bf16.mxu0 0
    %244 = vmatpush1.bf16.msra.mxu0 0
    %245 = vmatprep.subr.bf16.mxu0 0
    %246 = vmatpush1.bf16.msra.mxu0 0
    %247 = vmatprep.subr.bf16.mxu0 0
    %248 = vmatpush1.bf16.msra.mxu0 0
    %249 = vmatprep.subr.bf16.mxu0 0
    %250 = vmatpush1.bf16.msra.mxu0 0
    %251 = vmatprep.subr.bf16.mxu0 0
    %252 = vmatpush1.bf16.msra.mxu0 0
    %253 = vmatprep.mubr.bf16.mxu0 0
    %254 = vmatmul.mubr.bf16.gmra.mrb[0].mxu0 %v113
    %v255 = vpop.f32.mrb[0].mxu0
    %v256 = vadd.f32 %v219, %v255
    %v257 = vpop.f32.mrb[0].mxu0
    %v258 = vpop.f32.mrb[0].mxu0
    %v259 = vadd.f32 %v219, %v258
    %v260 = vpop.f32.mrb[0].mxu0
    %261 = vdwg.mxu0
    %v262 = vmax.f32 %v256, 0.0
    %v263 = vmax.f32 %v259, 0.0
    %v264 = vld [vmem:[%s9] sm:$0xff]
    %v265 = vld [vmem:[%s9 + $0x8] sm:$0xff]
    %v266 = vld [vmem:[%s9 + $0x10] sm:$0xff]
    %v267 = vld [vmem:[%s9 + $0x18] sm:$0xff]
    %v268 = vpack.c.bf16 %v263, %v262
    %v269 = vpack.c.bf16 %v265, %v264
    %v270 = vpack.c.bf16 %v267, %v266
    %v271 = vld [vmem:[%s10] sm:$0x1]
    %v273 = vlaneseq
    %v274 = vshrl.u32 %v273, 7
    %v275 = vsub.s32 0, %v274
    %v276 = vrot.slane %v271, %v275
    %v279 = vsel %vm54, %v268, 0
    %281 = vmatprep.subr.bf16.mxu0 0
    %282 = vmatpush1.bf16.msra.mxu0 %v269
    %283 = vmatprep.subr.bf16.mxu0 0
    %284 = vmatpush1.bf16.msra.mxu0 %v270
    %285 = vmatprep.subr.bf16.mxu0 0
    %286 = vmatpush1.bf16.msra.mxu0 0
    %287 = vmatprep.subr.bf16.mxu0 0
    %288 = vmatpush1.bf16.msra.mxu0 0
    %289 = vmatprep.subr.bf16.mxu0 0
    %290 = vmatpush1.bf16.msra.mxu0 0
    %291 = vmatprep.subr.bf16.mxu0 0
    %292 = vmatpush1.bf16.msra.mxu0 0
    %293 = vmatprep.subr.bf16.mxu0 0
    %294 = vmatpush1.bf16.msra.mxu0 0
    %295 = vmatprep.subr.bf16.mxu0 0
    %296 = vmatpush1.bf16.msra.mxu0 0
    %297 = vmatprep.subr.bf16.mxu0 0
    %298 = vmatpush1.bf16.msra.mxu0 0
    %299 = vmatprep.subr.bf16.mxu0 0
    %300 = vmatpush1.bf16.msra.mxu0 0
    %301 = vmatprep.subr.bf16.mxu0 0
    %302 = vmatpush1.bf16.msra.mxu0 0
    %303 = vmatprep.subr.bf16.mxu0 0
    %304 = vmatpush1.bf16.msra.mxu0 0
    %305 = vmatprep.subr.bf16.mxu0 0
    %306 = vmatpush1.bf16.msra.mxu0 0
    %307 = vmatprep.subr.bf16.mxu0 0
    %308 = vmatpush1.bf16.msra.mxu0 0
    %309 = vmatprep.subr.bf16.mxu0 0
    %310 = vmatpush1.bf16.msra.mxu0 0
    %311 = vmatprep.subr.bf16.mxu0 0
    %312 = vmatpush1.bf16.msra.mxu0 0
    %313 = vmatprep.mubr.bf16.mxu0 0
    %314 = vmatmul.mubr.bf16.gmra.mrb[0].mxu0 %v279
    %v315 = vpop.f32.mrb[0].mxu0
    %v316 = vadd.f32 %v276, %v315
    %v317 = vpop.f32.mrb[0].mxu0
    %v318 = vpop.f32.mrb[0].mxu0
    %v319 = vadd.f32 %v276, %v318
    %v320 = vpop.f32.mrb[0].mxu0
    %321 = vdwg.mxu0
    %v322 = vmax.f32 %v316, 0.0
    %v323 = vmax.f32 %v319, 0.0
    %v324 = vld [vmem:[%s11] sm:$0xff]
    %v325 = vld [vmem:[%s11 + $0x8] sm:$0xff]
    %v326 = vld [vmem:[%s11 + $0x10] sm:$0xff]
    %v327 = vld [vmem:[%s11 + $0x18] sm:$0xff]
    %v328 = vpack.c.bf16 %v323, %v322
    %v329 = vpack.c.bf16 %v325, %v324
    %v330 = vpack.c.bf16 %v327, %v326
    %v331 = vld [vmem:[%s12] sm:$0x1]
    %v333 = vlaneseq
    %v334 = vshrl.u32 %v333, 7
    %v335 = vsub.s32 0, %v334
    %v336 = vrot.slane %v331, %v335
    %v339 = vsel %vm54, %v328, 0
    %341 = vmatprep.subr.bf16.mxu0 0
    %342 = vmatpush1.bf16.msra.mxu0 %v329
    %343 = vmatprep.subr.bf16.mxu0 0
    %344 = vmatpush1.bf16.msra.mxu0 %v330
    %345 = vmatprep.subr.bf16.mxu0 0
    %346 = vmatpush1.bf16.msra.mxu0 0
    %347 = vmatprep.subr.bf16.mxu0 0
    %348 = vmatpush1.bf16.msra.mxu0 0
    %349 = vmatprep.subr.bf16.mxu0 0
    %350 = vmatpush1.bf16.msra.mxu0 0
    %351 = vmatprep.subr.bf16.mxu0 0
    %352 = vmatpush1.bf16.msra.mxu0 0
    %353 = vmatprep.subr.bf16.mxu0 0
    %354 = vmatpush1.bf16.msra.mxu0 0
    %355 = vmatprep.subr.bf16.mxu0 0
    %356 = vmatpush1.bf16.msra.mxu0 0
    %357 = vmatprep.subr.bf16.mxu0 0
    %358 = vmatpush1.bf16.msra.mxu0 0
    %359 = vmatprep.subr.bf16.mxu0 0
    %360 = vmatpush1.bf16.msra.mxu0 0
    %361 = vmatprep.subr.bf16.mxu0 0
    %362 = vmatpush1.bf16.msra.mxu0 0
    %363 = vmatprep.subr.bf16.mxu0 0
    %364 = vmatpush1.bf16.msra.mxu0 0
    %365 = vmatprep.subr.bf16.mxu0 0
    %366 = vmatpush1.bf16.msra.mxu0 0
    %367 = vmatprep.subr.bf16.mxu0 0
    %368 = vmatpush1.bf16.msra.mxu0 0
    %369 = vmatprep.subr.bf16.mxu0 0
    %370 = vmatpush1.bf16.msra.mxu0 0
    %371 = vmatprep.subr.bf16.mxu0 0
    %372 = vmatpush1.bf16.msra.mxu0 0
    %373 = vmatprep.mubr.bf16.mxu0 0
    %374 = vmatmul.mubr.bf16.gmra.mrb[0].mxu0 %v339
    %v375 = vpop.f32.mrb[0].mxu0
    %v376 = vadd.f32 %v336, %v375
    %v377 = vpop.f32.mrb[0].mxu0
    %v378 = vpop.f32.mrb[0].mxu0
    %v379 = vadd.f32 %v336, %v378
    %v380 = vpop.f32.mrb[0].mxu0
    %381 = vdwg.mxu0
    %382 = vst.msk [vmem:[%s14] sm:$0xff] %vm205, %v376
    %383 = vst.msk [vmem:[%s14 + $0x8] sm:$0xff] %vm205, %v379
    %v384 = vld [vmem:[%s2] sm:$0xff]
    %v385 = vld [vmem:[%s2 + $0x8] sm:$0xff]
    %v386 = vld [vmem:[%s2 + $0x10] sm:$0xff]
    %v387 = vld [vmem:[%s2 + $0x18] sm:$0xff]
    %v388 = vld [vmem:[%s2 + $0x20] sm:$0xff]
    %v389 = vld [vmem:[%s2 + $0x28] sm:$0xff]
    %v390 = vld [vmem:[%s2 + $0x30] sm:$0xff]
    %v391 = vld [vmem:[%s2 + $0x38] sm:$0xff]
    %v392 = vld [vmem:[%s2 + $0x40] sm:$0xff]
    %v393 = vld [vmem:[%s2 + $0x48] sm:$0xff]
    %v394 = vld [vmem:[%s2 + $0x50] sm:$0xff]
    %v395 = vld [vmem:[%s2 + $0x58] sm:$0xff]
    %v396 = vld [vmem:[%s2 + $0x60] sm:$0xff]
    %v397 = vld [vmem:[%s2 + $0x68] sm:$0xff]
    %v398 = vld [vmem:[%s2 + $0x70] sm:$0xff]
    %v399 = vld [vmem:[%s2 + $0x78] sm:$0xff]
    %v400 = vld [vmem:[%s1] sm:$0xff]
    %v401 = vld [vmem:[%s1 + $0x8] sm:$0xff]
    %v402 = vpack.c.bf16 %v153, %v150
    %v403 = vpack.c.bf16 %v385, %v384
    %v404 = vpack.c.bf16 %v387, %v386
    %v405 = vpack.c.bf16 %v389, %v388
    %v406 = vpack.c.bf16 %v391, %v390
    %v408 = vsel %vm54, %v402, 0
    %v411 = vsel %vm54, %v403, 0
    %v414 = vsel %vm54, %v404, 0
    %v417 = vsel %vm54, %v405, 0
    %v420 = vsel %vm54, %v406, 0
    %422 = vmatprep.subr.bf16.mxu0 0
    %423 = vmatpush1.bf16.xpose.msra.mxu0 %v411
    %424 = vmatprep.subr.bf16.mxu0 0
    %425 = vmatpush1.bf16.xpose.msra.mxu0 %v414
    %426 = vmatprep.subr.bf16.mxu0 0
    %427 = vmatpush1.bf16.xpose.msra.mxu0 %v417
    %428 = vmatprep.subr.bf16.mxu0 0
    %429 = vmatpush1.bf16.xpose.msra.mxu0 %v420
    %430 = vmatprep.subr.bf16.mxu0 0
    %431 = vmatpush1.bf16.xpose.msra.mxu0 0
    %432 = vmatprep.subr.bf16.mxu0 0
    %433 = vmatpush1.bf16.xpose.msra.mxu0 0
    %434 = vmatprep.subr.bf16.mxu0 0
    %435 = vmatpush1.bf16.xpose.msra.mxu0 0
    %436 = vmatprep.subr.bf16.mxu0 0
    %437 = vmatpush1.bf16.xpose.msra.mxu0 0
    %438 = vmatprep.subr.bf16.mxu0 0
    %439 = vmatpush1.bf16.xpose.msra.mxu0 0
    %440 = vmatprep.subr.bf16.mxu0 0
    %441 = vmatpush1.bf16.xpose.msra.mxu0 0
    %442 = vmatprep.subr.bf16.mxu0 0
    %443 = vmatpush1.bf16.xpose.msra.mxu0 0
    %444 = vmatprep.subr.bf16.mxu0 0
    %445 = vmatpush1.bf16.xpose.msra.mxu0 0
    %446 = vmatprep.subr.bf16.mxu0 0
    %447 = vmatpush1.bf16.xpose.msra.mxu0 0
    %448 = vmatprep.subr.bf16.mxu0 0
    %449 = vmatpush1.bf16.xpose.msra.mxu0 0
    %450 = vmatprep.subr.bf16.mxu0 0
    %451 = vmatpush1.bf16.xpose.msra.mxu0 0
    %452 = vmatprep.subr.bf16.mxu0 0
    %453 = vmatpush1.bf16.xpose.msra.mxu0 0
    %454 = vmatprep.mubr.bf16.mxu0 0
    %455 = vmatmul.mubr.bf16.gmra.mrb[0].mxu0 %v408
    %v456 = vpop.f32.mrb[0].mxu0
    %v457 = vadd.f32 0.0, %v456
    %v458 = vpop.f32.mrb[0].mxu0
    %v459 = vpop.f32.mrb[0].mxu0
    %v460 = vadd.f32 0.0, %v459
    %v461 = vpop.f32.mrb[0].mxu0
    %462 = vdwg.mxu0
    %vm463 = vcmp.eq.f32.partialorder %v400, 0.0
    %vm464 = vcmp.eq.f32.partialorder %v401, 0.0
    %v465 = vsel %vm463, 1, 0
    %v466 = vsel %vm464, 1, 0
    %467 = vset.pattern.permute.xlu0 0
    %468 = vperm.xlu0 %467, %v465
    %v469 = vpop.permute.xlu0 %468
    %470 = vset.pattern.permute.xlu0 0
    %471 = vperm.xlu0 %470, %v466
    %v472 = vpop.permute.xlu0 %471
    %vm473 = vcmp.eq.s32.totalorder %v469, 1
    %vm474 = vcmp.eq.s32.totalorder %v472, 1
    %v475 = vsel %vm473, %v457, 0.0
    %v476 = vsel %vm474, %v460, 0.0
    %v477 = vpack.c.bf16 %v393, %v392
    %v478 = vpack.c.bf16 %v395, %v394
    %v479 = vpack.c.bf16 %v397, %v396
    %v480 = vpack.c.bf16 %v399, %v398
    %v482 = vsel %vm54, %v477, 0
    %v485 = vsel %vm54, %v478, 0
    %v488 = vsel %vm54, %v479, 0
    %v491 = vsel %vm54, %v480, 0
    %493 = vmatprep.subr.bf16.mxu0 0
    %494 = vmatpush1.bf16.xpose.msra.mxu0 %v482
    %495 = vmatprep.subr.bf16.mxu0 0
    %496 = vmatpush1.bf16.xpose.msra.mxu0 %v485
    %497 = vmatprep.subr.bf16.mxu0 0
    %498 = vmatpush1.bf16.xpose.msra.mxu0 %v488
    %499 = vmatprep.subr.bf16.mxu0 0
    %500 = vmatpush1.bf16.xpose.msra.mxu0 %v491
    %501 = vmatprep.subr.bf16.mxu0 0
    %502 = vmatpush1.bf16.xpose.msra.mxu0 0
    %503 = vmatprep.subr.bf16.mxu0 0
    %504 = vmatpush1.bf16.xpose.msra.mxu0 0
    %505 = vmatprep.subr.bf16.mxu0 0
    %506 = vmatpush1.bf16.xpose.msra.mxu0 0
    %507 = vmatprep.subr.bf16.mxu0 0
    %508 = vmatpush1.bf16.xpose.msra.mxu0 0
    %509 = vmatprep.subr.bf16.mxu0 0
    %510 = vmatpush1.bf16.xpose.msra.mxu0 0
    %511 = vmatprep.subr.bf16.mxu0 0
    %512 = vmatpush1.bf16.xpose.msra.mxu0 0
    %513 = vmatprep.subr.bf16.mxu0 0
    %514 = vmatpush1.bf16.xpose.msra.mxu0 0
    %515 = vmatprep.subr.bf16.mxu0 0
    %516 = vmatpush1.bf16.xpose.msra.mxu0 0
    %517 = vmatprep.subr.bf16.mxu0 0
    %518 = vmatpush1.bf16.xpose.msra.mxu0 0
    %519 = vmatprep.subr.bf16.mxu0 0
    %520 = vmatpush1.bf16.xpose.msra.mxu0 0
    %521 = vmatprep.subr.bf16.mxu0 0
    %522 = vmatpush1.bf16.xpose.msra.mxu0 0
    %523 = vmatprep.subr.bf16.mxu0 0
    %524 = vmatpush1.bf16.xpose.msra.mxu0 0
    %525 = vmatprep.mubr.bf16.mxu0 0
    %526 = vmatmul.mubr.bf16.gmra.mrb[0].mxu0 %v408
    %v527 = vpop.f32.mrb[0].mxu0
    %v528 = vadd.f32 0.0, %v527
    %v529 = vpop.f32.mrb[0].mxu0
    %v530 = vpop.f32.mrb[0].mxu0
    %v531 = vadd.f32 0.0, %v530
    %v532 = vpop.f32.mrb[0].mxu0
    %533 = vdwg.mxu0
    %vm534 = vcmp.eq.f32.partialorder %v400, 1.0
    %vm535 = vcmp.eq.f32.partialorder %v401, 1.0
    %v536 = vsel %vm534, 1, 0
    %v537 = vsel %vm535, 1, 0
    %538 = vset.pattern.permute.xlu0 0
    %539 = vperm.xlu0 %538, %v536
    %v540 = vpop.permute.xlu0 %539
    %541 = vset.pattern.permute.xlu0 0
    %542 = vperm.xlu0 %541, %v537
    %v543 = vpop.permute.xlu0 %542
    %vm544 = vcmp.eq.s32.totalorder %v540, 1
    %vm545 = vcmp.eq.s32.totalorder %v543, 1
    %v546 = vsel %vm544, %v528, %v475
    %v547 = vsel %vm545, %v531, %v476
    %vm548 = vcmask 523264
    %549 = vst.msk [vmem:[#allocation2] sm:$0xff] %vm548, %v546
    %550 = vst.msk [vmem:[#allocation2 + $0x8] sm:$0xff] %vm548, %v547
    // Predicated region
    $region54: #{decoder_forward.5} parent=1 // pred_check
      _
    $region55: #{decoder_forward.5} parent=1 // pred_check_branch
      %552 = sbr.rel (0) target = $region57
    $region56: #{decoder_forward.5} parent=1 // pred_region
      _
    $region57: #{decoder_forward.5} parent=1 // pred_fallthru
      _
    // Predicated region
    $region58: #{decoder_forward.5} parent=1 // pred_check
      _
    $region59: #{decoder_forward.5} parent=1 // pred_check_branch
      %554 = sbr.rel (0) target = $region61
    $region60: #{decoder_forward.5} parent=1 // pred_region
      _
    $region61: #{decoder_forward.5} parent=1 // pred_fallthru
      _
    // Predicated region
    $region62: #{decoder_forward.5} parent=1 // pred_check
      _
    $region63: #{decoder_forward.5} parent=1 // pred_check_branch
      %556 = sbr.rel (0) target = $region65
    $region64: #{decoder_forward.5} parent=1 // pred_region
      _
    $region65: #{decoder_forward.5} parent=1 // pred_fallthru
      _
    // Predicated region
    $region66: #{decoder_forward.5} parent=1 // pred_check
      _
    $region67: #{decoder_forward.5} parent=1 // pred_check_branch
      %558 = sbr.rel (0) target = $region69
    $region68: #{decoder_forward.5} parent=1 // pred_region
      %s560 = ssub.s32 256, 256
      %561 = vsyncadd [#allocation3], %s560
      %s562 = sshll.u32 [#allocation2], 4
      %s563 = int_to_ptr.vmem [resolvable:$true] %s562
      %568 = dma.vmem_to_hbm [thread:$0]  %s563, 256, %s16, [#allocation3], 128, 128, 8
    $region69: #{decoder_forward.5} parent=1 // pred_fallthru
      _
    // Predicated region
    $region70: #{decoder_forward.5} parent=1 // pred_check
      _
    $region71: #{decoder_forward.5} parent=1 // pred_check_branch
      %570 = sbr.rel (0) target = $region73
    $region72: #{decoder_forward.5} parent=1 // pred_region
      _
    $region73: #{decoder_forward.5} parent=1 // pred_fallthru
      _
    // Predicated region
    $region74: #{decoder_forward.5} parent=1 // pred_check
      _
    $region75: #{decoder_forward.5} parent=1 // pred_check_branch
      %572 = sbr.rel (0) target = $region77
    $region76: #{decoder_forward.5} parent=1 // pred_region
      _
    $region77: #{decoder_forward.5} parent=1 // pred_fallthru
      _
    // Predicated region
    $region78: #{decoder_forward.5} parent=1 // pred_check
      _
    $region79: #{decoder_forward.5} parent=1 // pred_check_branch
      %574 = sbr.rel (0) target = $region81
    $region80: #{decoder_forward.5} parent=1 // pred_region
      _
    $region81: #{decoder_forward.5} parent=1 // pred_fallthru
      _
    // Predicated region
    $region82: #{decoder_forward.5} parent=1 // pred_check
      _
    $region83: #{decoder_forward.5} parent=1 // pred_check_branch
      %576 = sbr.rel (0) target = $region85
    $region84: #{decoder_forward.5} parent=1 // pred_region
      %577 = dma.done [#allocation3], 256
    $region85: #{decoder_forward.5} parent=1 // pred_fallthru
      _
    %578 = vsyncpa [#allocation3], 1

// kernel: decoder_forward.4
$region0: #{decoder_forward.4}
  #allocation0 [shape = 'u32[]', space=smem, size = 0x4, offset = 0x4, fixed_abs, tag = 'smem constant byte address 0x4 - core index']
  #allocation1 [shape = 'u32[144,128]{1,0:T(1,128)}', space=vmem, size = 0x12000, scoped, tag = 'internal scratch']
  #allocation2 [shape = 'f32[1,1]{1,0:T(1,128)S(1)}', space=vmem, size = 0x200, scoped, tag = 'scoped memory for decoder_forward.4']
  %s0 = inlined_call_operand.smem [shape: u32[30], index: -1, kind: input, shape index: {}]
  %s1 = sld [smem:[%s0]]
  %s2 = scalar_lea.smem %s0, 1
  %s3 = sld [smem:[%s2]]
  %s4 = scalar_lea.smem %s0, 2
  %s5 = sld [smem:[%s4]]
  %s6 = scalar_lea.smem %s0, 3
  %s7 = sld [smem:[%s6]]
  %s8 = scalar_lea.smem %s0, 4
  %s9 = sld [smem:[%s8]]
  %s10 = scalar_lea.smem %s0, 5
  %s11 = sld [smem:[%s10]]
  %s12 = scalar_lea.smem %s0, 6
  %s13 = sld [smem:[%s12]]
  %s14 = scalar_lea.smem %s0, 7
  %s15 = sld [smem:[%s14]]
  %s16 = scalar_lea.smem %s0, 8
  %s17 = sld [smem:[%s16]]
  %s18 = scalar_lea.smem %s0, 9
  %s19 = sld [smem:[%s18]]
  %s20 = scalar_lea.smem %s0, 10
  %s21 = sld [smem:[%s20]]
  %s22 = scalar_lea.smem %s0, 11
  %s23 = sld [smem:[%s22]]
  %s24 = scalar_lea.smem %s0, 12
  %s25 = sld [smem:[%s24]]
  %s26 = scalar_lea.smem %s0, 13
  %s27 = sld [smem:[%s26]]
  %s28 = scalar_lea.smem %s0, 14
  %s29 = sld [smem:[%s28]]
  %s30 = scalar_lea.smem %s0, 15
  %s31 = sld [smem:[%s30]]
  %s32 = scalar_lea.smem %s0, 16
  %s33 = sld [smem:[%s32]]
  %s34 = scalar_lea.smem %s0, 17
  %s35 = sld [smem:[%s34]]
  %s36 = scalar_lea.smem %s0, 18
  %s37 = sld [smem:[%s36]]
  %s38 = scalar_lea.smem %s0, 19
  %s39 = sld [smem:[%s38]]
  %s40 = scalar_lea.smem %s0, 20
  %s41 = sld [smem:[%s40]]
  %s42 = scalar_lea.smem %s0, 21
  %s43 = sld [smem:[%s42]]
  %s44 = scalar_lea.smem %s0, 22
  %s45 = sld [smem:[%s44]]
  %s46 = scalar_lea.smem %s0, 23
  %s47 = sld [smem:[%s46]]
  %s48 = scalar_lea.smem %s0, 24
  %s49 = sld [smem:[%s48]]
  %s50 = scalar_lea.smem %s0, 25
  %s51 = sld [smem:[%s50]]
  %s52 = scalar_lea.smem %s0, 26
  %s53 = sld [smem:[%s52]]
  %s54 = scalar_lea.smem %s0, 27
  %s55 = sld [smem:[%s54]]
  %s56 = scalar_lea.smem %s0, 28
  %s57 = sld [smem:[%s56]]
  %s58 = scalar_lea.smem %s0, 29
  %s59 = sld [smem:[%s58]]
  %s60 = sld [smem:[#allocation0]]
  $region126: #{decoder_forward.4} parent=0
    _
  %s62 = ssub.s32 1, %s60
  %s63 = scalar_select 0, %s62, %s60
  %v64 = vstv %s13
  %65 = vst [vmem:[#allocation2] sm:$0x1] %v64
  // Predicated region
  $region2: #{decoder_forward.4} parent=0 // pred_check
    _
  $region3: #{decoder_forward.4} parent=0 // pred_check_branch
    %67 = sbr.rel (0) target = $region5
  $region4: #{decoder_forward.4} parent=0 // pred_region
    _
  $region5: #{decoder_forward.4} parent=0 // pred_fallthru
    _
  // Predicated region
  $region6: #{decoder_forward.4} parent=0 // pred_check
    _
  $region7: #{decoder_forward.4} parent=0 // pred_check_branch
    %69 = sbr.rel (0) target = $region9
  $region8: #{decoder_forward.4} parent=0 // pred_region
    _
  $region9: #{decoder_forward.4} parent=0 // pred_fallthru
    _
  // Predicated region
  $region10: #{decoder_forward.4} parent=0 // pred_check
    _
  $region11: #{decoder_forward.4} parent=0 // pred_check_branch
    %71 = sbr.rel (0) target = $region13
  $region12: #{decoder_forward.4} parent=0 // pred_region
    _
  $region13: #{decoder_forward.4} parent=0 // pred_fallthru
    _
  // Predicated region
  $region14: #{decoder_forward.4} parent=0 // pred_check
    _
  $region15: #{decoder_forward.4} parent=0 // pred_check_branch
    %73 = sbr.rel (0) target = $region17
  $region16: #{decoder_forward.4} parent=0 // pred_region
    _
  $region17: #{decoder_forward.4} parent=0 // pred_fallthru
    _
  // Predicated region
  $region18: #{decoder_forward.4} parent=0 // pred_check
    _
  $region19: #{decoder_forward.4} parent=0 // pred_check_branch
    %75 = sbr.rel (0) target = $region21
  $region20: #{decoder_forward.4} parent=0 // pred_region
    _
  $region21: #{decoder_forward.4} parent=0 // pred_fallthru
    _
  // Predicated region
  $region22: #{decoder_forward.4} parent=0 // pred_check
    _
  $region23: #{decoder_forward.4} parent=0 // pred_check_branch
    %77 = sbr.rel (0) target = $region25
  $region24: #{decoder_forward.4} parent=0 // pred_region
    _
  $region25: #{decoder_forward.4} parent=0 // pred_fallthru
    _
  // Predicated region
  $region26: #{decoder_forward.4} parent=0 // pred_check
    _
  $region27: #{decoder_forward.4} parent=0 // pred_check_branch
    %79 = sbr.rel (0) target = $region29
  $region28: #{decoder_forward.4} parent=0 // pred_region
    _
  $region29: #{decoder_forward.4} parent=0 // pred_fallthru
    _
  // Predicated region
  $region30: #{decoder_forward.4} parent=0 // pred_check
    _
  $region31: #{decoder_forward.4} parent=0 // pred_check_branch
    %81 = sbr.rel (0) target = $region33
  $region32: #{decoder_forward.4} parent=0 // pred_region
    _
  $region33: #{decoder_forward.4} parent=0 // pred_fallthru
    _
  // Predicated region
  $region34: #{decoder_forward.4} parent=0 // pred_check
    _
  $region35: #{decoder_forward.4} parent=0 // pred_check_branch
    %83 = sbr.rel (0) target = $region37
  $region36: #{decoder_forward.4} parent=0 // pred_region
    _
  $region37: #{decoder_forward.4} parent=0 // pred_fallthru
    _
  // Predicated region
  $region38: #{decoder_forward.4} parent=0 // pred_check
    _
  $region39: #{decoder_forward.4} parent=0 // pred_check_branch
    %85 = sbr.rel (0) target = $region41
  $region40: #{decoder_forward.4} parent=0 // pred_region
    _
  $region41: #{decoder_forward.4} parent=0 // pred_fallthru
    _
  // Predicated region
  $region42: #{decoder_forward.4} parent=0 // pred_check
    _
  $region43: #{decoder_forward.4} parent=0 // pred_check_branch
    %87 = sbr.rel (0) target = $region45
  $region44: #{decoder_forward.4} parent=0 // pred_region
    _
  $region45: #{decoder_forward.4} parent=0 // pred_fallthru
    _
  // Predicated region
  $region46: #{decoder_forward.4} parent=0 // pred_check
    _
  $region47: #{decoder_forward.4} parent=0 // pred_check_branch
    %89 = sbr.rel (0) target = $region49
  $region48: #{decoder_forward.4} parent=0 // pred_region
    _
  $region49: #{decoder_forward.4} parent=0 // pred_fallthru
    _
  // Predicated region
  $region50: #{decoder_forward.4} parent=0 // pred_check
    _
  $region51: #{decoder_forward.4} parent=0 // pred_check_branch
    %91 = sbr.rel (0) target = $region53
  $region52: #{decoder_forward.4} parent=0 // pred_region
    _
  $region53: #{decoder_forward.4} parent=0 // pred_fallthru
    _
  // Predicated region
  $region54: #{decoder_forward.4} parent=0 // pred_check
    _
  $region55: #{decoder_forward.4} parent=0 // pred_check_branch
    %93 = sbr.rel (0) target = $region57
  $region56: #{decoder_forward.4} parent=0 // pred_region
    _
  $region57: #{decoder_forward.4} parent=0 // pred_fallthru
    _
  // Predicated region
  $region58: #{decoder_forward.4} parent=0 // pred_check
    _
  $region59: #{decoder_forward.4} parent=0 // pred_check_branch
    %95 = sbr.rel (0) target = $region61
  $region60: #{decoder_forward.4} parent=0 // pred_region
    _
  $region61: #{decoder_forward.4} parent=0 // pred_fallthru
    _
  // Predicated region
  $region62: #{decoder_forward.4} parent=0 // pred_check
    _
  $region63: #{decoder_forward.4} parent=0 // pred_check_branch
    %97 = sbr.rel (0) target = $region65
  $region64: #{decoder_forward.4} parent=0 // pred_region
    _
  $region65: #{decoder_forward.4} parent=0 // pred_fallthru
    _
  // Predicated region
  $region66: #{decoder_forward.4} parent=0 // pred_check
    _
  $region67: #{decoder_forward.4} parent=0 // pred_check_branch
    %99 = sbr.rel (0) target = $region69
  $region68: #{decoder_forward.4} parent=0 // pred_region
    _
  $region69: #{decoder_forward.4} parent=0 // pred_fallthru
    _
  // Predicated region
  $region70: #{decoder_forward.4} parent=0 // pred_check
    _
  $region71: #{decoder_forward.4} parent=0 // pred_check_branch
    %101 = sbr.rel (0) target = $region73
  $region72: #{decoder_forward.4} parent=0 // pred_region
    _
  $region73: #{decoder_forward.4} parent=0 // pred_fallthru
    _
  // Predicated region
  $region74: #{decoder_forward.4} parent=0 // pred_check
    _
  $region75: #{decoder_forward.4} parent=0 // pred_check_branch
    %103 = sbr.rel (0) target = $region77
  $region76: #{decoder_forward.4} parent=0 // pred_region
    _
  $region77: #{decoder_forward.4} parent=0 // pred_fallthru
    _
  // Predicated region
  $region78: #{decoder_forward.4} parent=0 // pred_check
    _
  $region79: #{decoder_forward.4} parent=0 // pred_check_branch
    %105 = sbr.rel (0) target = $region81
  $region80: #{decoder_forward.4} parent=0 // pred_region
    _
  $region81: #{decoder_forward.4} parent=0 // pred_fallthru
    _
  // Predicated region
  $region82: #{decoder_forward.4} parent=0 // pred_check
    _
  $region83: #{decoder_forward.4} parent=0 // pred_check_branch
    %107 = sbr.rel (0) target = $region85
  $region84: #{decoder_forward.4} parent=0 // pred_region
    _
  $region85: #{decoder_forward.4} parent=0 // pred_fallthru
    _
  // Predicated region
  $region86: #{decoder_forward.4} parent=0 // pred_check
    _
  $region87: #{decoder_forward.4} parent=0 // pred_check_branch
    %109 = sbr.rel (0) target = $region89
  $region88: #{decoder_forward.4} parent=0 // pred_region
    _
  $region89: #{decoder_forward.4} parent=0 // pred_fallthru
    _
  // Predicated region
  $region90: #{decoder_forward.4} parent=0 // pred_check
    _
  $region91: #{decoder_forward.4} parent=0 // pred_check_branch
    %111 = sbr.rel (0) target = $region93
  $region92: #{decoder_forward.4} parent=0 // pred_region
    _
  $region93: #{decoder_forward.4} parent=0 // pred_fallthru
    _
  // Predicated region
  $region94: #{decoder_forward.4} parent=0 // pred_check
    _
  $region95: #{decoder_forward.4} parent=0 // pred_check_branch
    %113 = sbr.rel (0) target = $region97
  $region96: #{decoder_forward.4} parent=0 // pred_region
    _
  $region97: #{decoder_forward.4} parent=0 // pred_fallthru
    _
  // Predicated region
  $region98: #{decoder_forward.4} parent=0 // pred_check
    _
  $region99: #{decoder_forward.4} parent=0 // pred_check_branch
    %115 = sbr.rel (0) target = $region101
  $region100: #{decoder_forward.4} parent=0 // pred_region
    _
  $region101: #{decoder_forward.4} parent=0 // pred_fallthru
    _
  // Predicated region
  $region102: #{decoder_forward.4} parent=0 // pred_check
    _
  $region103: #{decoder_forward.4} parent=0 // pred_check_branch
    %117 = sbr.rel (0) target = $region105
  $region104: #{decoder_forward.4} parent=0 // pred_region
    _
  $region105: #{decoder_forward.4} parent=0 // pred_fallthru
    _
  // Predicated region
  $region106: #{decoder_forward.4} parent=0 // pred_check
    _
  $region107: #{decoder_forward.4} parent=0 // pred_check_branch
    %119 = sbr.rel (0) target = $region109
  $region108: #{decoder_forward.4} parent=0 // pred_region
    _
  $region109: #{decoder_forward.4} parent=0 // pred_fallthru
    _
  // Predicated region
  $region110: #{decoder_forward.4} parent=0 // pred_check
    _
  $region111: #{decoder_forward.4} parent=0 // pred_check_branch
    %121 = sbr.rel (0) target = $region113
  $region112: #{decoder_forward.4} parent=0 // pred_region
    _
  $region113: #{decoder_forward.4} parent=0 // pred_fallthru
    _
  // Predicated region
  $region114: #{decoder_forward.4} parent=0 // pred_check
    _
  $region115: #{decoder_forward.4} parent=0 // pred_check_branch
    %123 = sbr.rel (0) target = $region117
  $region116: #{decoder_forward.4} parent=0 // pred_region
    _
  $region117: #{decoder_forward.4} parent=0 // pred_fallthru
    _
  %v125 = vld [vmem:[%s1] sm:$0xff]
  %v126 = vld [vmem:[%s1 + $0x8] sm:$0xff]
  %v127 = vld [vmem:[%s3] sm:$0xff]
  %v128 = vld [vmem:[%s3 + $0x8] sm:$0xff]
  %v129 = vld [vmem:[%s11] sm:$0xff]
  %v130 = vld [vmem:[%s11 + $0x8] sm:$0xff]
  %v131 = vld [vmem:[%s11 + $0x10] sm:$0xff]
  %v132 = vld [vmem:[%s11 + $0x18] sm:$0xff]
  %v133 = vld [vmem:[%s11 + $0x20] sm:$0xff]
  %v134 = vld [vmem:[%s11 + $0x28] sm:$0xff]
  %v135 = vld [vmem:[%s11 + $0x30] sm:$0xff]
  %v136 = vld [vmem:[%s11 + $0x38] sm:$0xff]
  %v137 = vld [vmem:[%s11 + $0x40] sm:$0xff]
  %v138 = vld [vmem:[%s11 + $0x48] sm:$0xff]
  %v139 = vld [vmem:[%s11 + $0x50] sm:$0xff]
  %v140 = vld [vmem:[%s11 + $0x58] sm:$0xff]
  %v141 = vld [vmem:[%s11 + $0x60] sm:$0xff]
  %v142 = vld [vmem:[%s11 + $0x68] sm:$0xff]
  %v143 = vld [vmem:[%s11 + $0x70] sm:$0xff]
  %v144 = vld [vmem:[%s11 + $0x78] sm:$0xff]
  %v145 = vld [vmem:[%s5] sm:$0xff]
  %v146 = vld [vmem:[%s5 + $0x8] sm:$0xff]
  %v147 = vld [vmem:[%s7] sm:$0x1]
  %149 = vset.pattern.permute.xlu0 0
  %150 = vperm.xlu0 %149, %v145
  %v151 = vpop.permute.xlu0 %150
  %154 = vset.pattern.permute.xlu0 0
  %155 = vperm.xlu0 %154, %v146
  %v156 = vpop.permute.xlu0 %155
  %v159 = vlaneseq
  %v160 = vshrl.u32 %v159, 7
  %v161 = vsub.s32 0, %v160
  %v162 = vrot.slane %v147, %v161
  %vm164 = vcmp.eq.f32.partialorder %v151, %v162
  %vm165 = vcmp.eq.f32.partialorder %v156, %v162
  %v166 = vsel %vm164, 0.0, -1e+09
  %v167 = vsel %vm165, 0.0, -1e+09
  %v168 = vld [vmem:[#allocation2] sm:$0x1]
  %v170 = vlaneseq
  %v171 = vshrl.u32 %v170, 7
  %v172 = vsub.s32 0, %v171
  %v173 = vrot.slane %v168, %v172
  %174 = vset.pattern.permute.xlu0 0
  %175 = vperm.xlu0 %174, %v173
  %v176 = vpop.permute.xlu0 %175
  %v178 = vadd.f32 %v166, %v176
  %v179 = vadd.f32 %v167, %v176
  %v180 = vld [vmem:[%s9] sm:$0x1]
  %v182 = vlaneseq
  %v183 = vshrl.u32 %v182, 7
  %v184 = vsub.s32 0, %v183
  %v185 = vrot.slane %v180, %v184
  %vm187 = vcmp.eq.f32.partialorder %v151, %v185
  %vm188 = vcmp.eq.f32.partialorder %v156, %v185
  %v189 = vsel %vm187, 0.0, -1e+09
  %v190 = vsel %vm188, 0.0, -1e+09
  %v191 = vadd.f32 %v125, %v127
  %v192 = vadd.f32 %v126, %v128
  %v193 = vld [vmem:[%s15] sm:$0xff]
  %v194 = vld [vmem:[%s15 + $0x8] sm:$0xff]
  %v195 = vld [vmem:[%s15 + $0x10] sm:$0xff]
  %v196 = vld [vmem:[%s15 + $0x18] sm:$0xff]
  %v197 = vpack.c.bf16 %v192, %v191
  %v198 = vpack.c.bf16 %v194, %v193
  %v199 = vpack.c.bf16 %v196, %v195
  %v200 = vld [vmem:[%s17] sm:$0x1]
  %v202 = vlaneseq
  %v203 = vshrl.u32 %v202, 7
  %v204 = vsub.s32 0, %v203
  %v205 = vrot.slane %v200, %v204
  %vm207 = vcmask 261120
  %v209 = vsel %vm207, %v197, 0
  %211 = vmatprep.subr.bf16.mxu0 0
  %212 = vmatpush1.bf16.msra.mxu0 %v198
  %213 = vmatprep.subr.bf16.mxu0 0
  %214 = vmatpush1.bf16.msra.mxu0 %v199
  %215 = vmatprep.subr.bf16.mxu0 0
  %216 = vmatpush1.bf16.msra.mxu0 0
  %217 = vmatprep.subr.bf16.mxu0 0
  %218 = vmatpush1.bf16.msra.mxu0 0
  %219 = vmatprep.subr.bf16.mxu0 0
  %220 = vmatpush1.bf16.msra.mxu0 0
  %221 = vmatprep.subr.bf16.mxu0 0
  %222 = vmatpush1.bf16.msra.mxu0 0
  %223 = vmatprep.subr.bf16.mxu0 0
  %224 = vmatpush1.bf16.msra.mxu0 0
  %225 = vmatprep.subr.bf16.mxu0 0
  %226 = vmatpush1.bf16.msra.mxu0 0
  %227 = vmatprep.subr.bf16.mxu0 0
  %228 = vmatpush1.bf16.msra.mxu0 0
  %229 = vmatprep.subr.bf16.mxu0 0
  %230 = vmatpush1.bf16.msra.mxu0 0
  %231 = vmatprep.subr.bf16.mxu0 0
  %232 = vmatpush1.bf16.msra.mxu0 0
  %233 = vmatprep.subr.bf16.mxu0 0
  %234 = vmatpush1.bf16.msra.mxu0 0
  %235 = vmatprep.subr.bf16.mxu0 0
  %236 = vmatpush1.bf16.msra.mxu0 0
  %237 = vmatprep.subr.bf16.mxu0 0
  %238 = vmatpush1.bf16.msra.mxu0 0
  %239 = vmatprep.subr.bf16.mxu0 0
  %240 = vmatpush1.bf16.msra.mxu0 0
  %241 = vmatprep.subr.bf16.mxu0 0
  %242 = vmatpush1.bf16.msra.mxu0 0
  %243 = vmatprep.mubr.bf16.mxu0 0
  %244 = vmatmul.mubr.bf16.gmra.mrb[0].mxu0 %v209
  %v245 = vpop.f32.mrb[0].mxu0
  %v246 = vadd.f32 %v205, %v245
  %v247 = vpop.f32.mrb[0].mxu0
  %v248 = vpop.f32.mrb[0].mxu0
  %v249 = vadd.f32 %v205, %v248
  %v250 = vpop.f32.mrb[0].mxu0
  %251 = vdwg.mxu0
  %v252 = vld [vmem:[%s19] sm:$0xff]
  %v253 = vld [vmem:[%s19 + $0x8] sm:$0xff]
  %v254 = vld [vmem:[%s19 + $0x10] sm:$0xff]
  %v255 = vld [vmem:[%s19 + $0x18] sm:$0xff]
  %v256 = vpack.c.bf16 %v126, %v125
  %v257 = vpack.c.bf16 %v253, %v252
  %v258 = vpack.c.bf16 %v255, %v254
  %v259 = vld [vmem:[%s21] sm:$0x1]
  %v261 = vlaneseq
  %v262 = vshrl.u32 %v261, 7
  %v263 = vsub.s32 0, %v262
  %v264 = vrot.slane %v259, %v263
  %v267 = vsel %vm207, %v256, 0
  %269 = vmatprep.subr.bf16.mxu0 0
  %270 = vmatpush1.bf16.msra.mxu0 %v257
  %271 = vmatprep.subr.bf16.mxu0 0
  %272 = vmatpush1.bf16.msra.mxu0 %v258
  %273 = vmatprep.subr.bf16.mxu0 0
  %274 = vmatpush1.bf16.msra.mxu0 0
  %275 = vmatprep.subr.bf16.mxu0 0
  %276 = vmatpush1.bf16.msra.mxu0 0
  %277 = vmatprep.subr.bf16.mxu0 0
  %278 = vmatpush1.bf16.msra.mxu0 0
  %279 = vmatprep.subr.bf16.mxu0 0
  %280 = vmatpush1.bf16.msra.mxu0 0
  %281 = vmatprep.subr.bf16.mxu0 0
  %282 = vmatpush1.bf16.msra.mxu0 0
  %283 = vmatprep.subr.bf16.mxu0 0
  %284 = vmatpush1.bf16.msra.mxu0 0
  %285 = vmatprep.subr.bf16.mxu0 0
  %286 = vmatpush1.bf16.msra.mxu0 0
  %287 = vmatprep.subr.bf16.mxu0 0
  %288 = vmatpush1.bf16.msra.mxu0 0
  %289 = vmatprep.subr.bf16.mxu0 0
  %290 = vmatpush1.bf16.msra.mxu0 0
  %291 = vmatprep.subr.bf16.mxu0 0
  %292 = vmatpush1.bf16.msra.mxu0 0
  %293 = vmatprep.subr.bf16.mxu0 0
  %294 = vmatpush1.bf16.msra.mxu0 0
  %295 = vmatprep.subr.bf16.mxu0 0
  %296 = vmatpush1.bf16.msra.mxu0 0
  %297 = vmatprep.subr.bf16.mxu0 0
  %298 = vmatpush1.bf16.msra.mxu0 0
  %299 = vmatprep.subr.bf16.mxu0 0
  %300 = vmatpush1.bf16.msra.mxu0 0
  %301 = vmatprep.mubr.bf16.mxu0 0
  %302 = vmatmul.mubr.bf16.gmra.mrb[0].mxu0 %v267
  %v303 = vpop.f32.mrb[0].mxu0
  %v304 = vadd.f32 %v264, %v303
  %v305 = vpop.f32.mrb[0].mxu0
  %v306 = vpop.f32.mrb[0].mxu0
  %v307 = vadd.f32 %v264, %v306
  %v308 = vpop.f32.mrb[0].mxu0
  %309 = vdwg.mxu0
  %v310 = vld [vmem:[%s23] sm:$0xff]
  %v311 = vld [vmem:[%s23 + $0x8] sm:$0xff]
  %v312 = vld [vmem:[%s23 + $0x10] sm:$0xff]
  %v313 = vld [vmem:[%s23 + $0x18] sm:$0xff]
  %v314 = vld [vmem:[%s25] sm:$0x1]
  %v315 = vpack.c.bf16 %v249, %v246
  %317 = vrot.lane.b32.xlu0 %v315, 96
  %v318 = vpop.permute.xlu0 %317
  %vm319 = vcmask 64512
  %v321 = vsel %vm319, %v315, 0
  %v324 = vsel %vm319, %v318, 0
  %326 = vmatprep.subr.bf16.mxu0 0
  %327 = vmatpush1.bf16.xpose.msra.mxu0 %v324
  %328 = vmatprep.subr.bf16.mxu0 0
  %329 = vmatpush1.bf16.xpose.msra.mxu0 0
  %330 = vmatprep.subr.bf16.mxu0 0
  %331 = vmatpush1.bf16.xpose.msra.mxu0 0
  %332 = vmatprep.subr.bf16.mxu0 0
  %333 = vmatpush1.bf16.xpose.msra.mxu0 0
  %334 = vmatprep.subr.bf16.mxu0 0
  %335 = vmatpush1.bf16.xpose.msra.mxu0 0
  %336 = vmatprep.subr.bf16.mxu0 0
  %337 = vmatpush1.bf16.xpose.msra.mxu0 0
  %338 = vmatprep.subr.bf16.mxu0 0
  %339 = vmatpush1.bf16.xpose.msra.mxu0 0
  %340 = vmatprep.subr.bf16.mxu0 0
  %341 = vmatpush1.bf16.xpose.msra.mxu0 0
  %342 = vmatprep.subr.bf16.mxu0 0
  %343 = vmatpush1.bf16.xpose.msra.mxu0 0
  %344 = vmatprep.subr.bf16.mxu0 0
  %345 = vmatpush1.bf16.xpose.msra.mxu0 0
  %346 = vmatprep.subr.bf16.mxu0 0
  %347 = vmatpush1.bf16.xpose.msra.mxu0 0
  %348 = vmatprep.subr.bf16.mxu0 0
  %349 = vmatpush1.bf16.xpose.msra.mxu0 0
  %350 = vmatprep.subr.bf16.mxu0 0
  %351 = vmatpush1.bf16.xpose.msra.mxu0 0
  %352 = vmatprep.subr.bf16.mxu0 0
  %353 = vmatpush1.bf16.xpose.msra.mxu0 0
  %354 = vmatprep.subr.bf16.mxu0 0
  %355 = vmatpush1.bf16.xpose.msra.mxu0 0
  %356 = vmatprep.subr.bf16.mxu0 0
  %357 = vmatpush1.bf16.xpose.msra.mxu0 0
  %358 = vmatprep.mubr.bf16.mxu0 0
  %359 = vmatmul.mubr.bf16.gmra.mrb[0].mxu0 %v321
  %v360 = vpop.f32.mrb[0].mxu0
  %v361 = vadd.f32 0.0, %v360
  %v362 = vpop.f32.mrb[0].mxu0
  %v363 = vpop.f32.mrb[0].mxu0
  %v364 = vadd.f32 0.0, %v363
  %v365 = vpop.f32.mrb[0].mxu0
  %366 = vdwg.mxu0
  %v367 = vmul.f32 %v361, 0.35355338
  %v368 = vmul.f32 %v364, 0.35355338
  %v369 = vadd.f32 %v367, %v178
  %v370 = vadd.f32 %v368, %v179
  %vm371 = vcmask 130048
  %v372 = vsel %vm371, %v369, -inf
  %373 = vmax.xlane.f32.xlu0 %v372
  %v374 = vpop.xlane.xlu0 %373
  %v375 = vsel %vm371, %v370, -inf
  %376 = vmax.xlane.f32.xlu0 %v375
  %v377 = vpop.xlane.xlu0 %376
  %v378 = vsub.f32 %v369, %v374
  %v379 = vsub.f32 %v370, %v377
  %v380 = vmul.f32 %v378, 1.442695
  %v381 = vpow.pop %v380
  %v382 = vmul.f32 %v379, 1.442695
  %v383 = vpow.pop %v382
  %v384 = vsel %vm371, %v381, 0.0
  %385 = vadd.xlane.f32.xlu0 %v384
  %v386 = vpop.xlane.xlu0 %385
  %v387 = vsel %vm371, %v383, 0.0
  %388 = vadd.xlane.f32.xlu0 %v387
  %v389 = vpop.xlane.xlu0 %388
  %v390 = vpack.c.bf16 %v383, %v381
  %v391 = vpack.c.bf16 %v307, %v304
  %v393 = vsel %vm371, %v390, 0
  %395 = vmatprep.subr.bf16.mxu0 0
  %396 = vmatpush1.bf16.msra.mxu0 %v391
  %397 = vmatprep.subr.bf16.mxu0 0
  %398 = vmatpush1.bf16.msra.mxu0 0
  %399 = vmatprep.subr.bf16.mxu0 0
  %400 = vmatpush1.bf16.msra.mxu0 0
  %401 = vmatprep.subr.bf16.mxu0 0
  %402 = vmatpush1.bf16.msra.mxu0 0
  %403 = vmatprep.subr.bf16.mxu0 0
  %404 = vmatpush1.bf16.msra.mxu0 0
  %405 = vmatprep.subr.bf16.mxu0 0
  %406 = vmatpush1.bf16.msra.mxu0 0
  %407 = vmatprep.subr.bf16.mxu0 0
  %408 = vmatpush1.bf16.msra.mxu0 0
  %409 = vmatprep.subr.bf16.mxu0 0
  %410 = vmatpush1.bf16.msra.mxu0 0
  %411 = vmatprep.subr.bf16.mxu0 0
  %412 = vmatpush1.bf16.msra.mxu0 0
  %413 = vmatprep.subr.bf16.mxu0 0
  %414 = vmatpush1.bf16.msra.mxu0 0
  %415 = vmatprep.subr.bf16.mxu0 0
  %416 = vmatpush1.bf16.msra.mxu0 0
  %417 = vmatprep.subr.bf16.mxu0 0
  %418 = vmatpush1.bf16.msra.mxu0 0
  %419 = vmatprep.subr.bf16.mxu0 0
  %420 = vmatpush1.bf16.msra.mxu0 0
  %421 = vmatprep.subr.bf16.mxu0 0
  %422 = vmatpush1.bf16.msra.mxu0 0
  %423 = vmatprep.subr.bf16.mxu0 0
  %424 = vmatpush1.bf16.msra.mxu0 0
  %425 = vmatprep.subr.bf16.mxu0 0
  %426 = vmatpush1.bf16.msra.mxu0 0
  %427 = vmatprep.mubr.bf16.mxu0 0
  %428 = vmatmul.mubr.bf16.gmra.mrb[0].mxu0 %v393
  %v429 = vpop.f32.mrb[0].mxu0
  %v430 = vadd.f32 0.0, %v429
  %v431 = vpop.f32.mrb[0].mxu0
  %v432 = vpop.f32.mrb[0].mxu0
  %v433 = vadd.f32 0.0, %v432
  %v434 = vpop.f32.mrb[0].mxu0
  %435 = vdwg.mxu0
  %v436 = vrcp.pop %v386
  %v437 = vrcp.pop %v389
  %v438 = vmul.f32 %v430, %v436
  %v439 = vmul.f32 %v433, %v437
  %v440 = vpack.c.bf16 %v439, %v438
  %v441 = vpack.c.bf16 %v310, %v310
  %442 = vrot.lane.b32.xlu0 %v315, 120
  %v443 = vpop.permute.xlu0 %442
  %444 = vrot.lane.b32.xlu0 %v315, 88
  %v445 = vpop.permute.xlu0 %444
  %v447 = vsel %vm319, %v443, 0
  %v450 = vsel %vm319, %v445, 0
  %452 = vmatprep.subr.bf16.mxu0 0
  %453 = vmatpush1.bf16.xpose.msra.mxu0 %v450
  %454 = vmatprep.subr.bf16.mxu0 0
  %455 = vmatpush1.bf16.xpose.msra.mxu0 0
  %456 = vmatprep.subr.bf16.mxu0 0
  %457 = vmatpush1.bf16.xpose.msra.mxu0 0
  %458 = vmatprep.subr.bf16.mxu0 0
  %459 = vmatpush1.bf16.xpose.msra.mxu0 0
  %460 = vmatprep.subr.bf16.mxu0 0
  %461 = vmatpush1.bf16.xpose.msra.mxu0 0
  %462 = vmatprep.subr.bf16.mxu0 0
  %463 = vmatpush1.bf16.xpose.msra.mxu0 0
  %464 = vmatprep.subr.bf16.mxu0 0
  %465 = vmatpush1.bf16.xpose.msra.mxu0 0
  %466 = vmatprep.subr.bf16.mxu0 0
  %467 = vmatpush1.bf16.xpose.msra.mxu0 0
  %468 = vmatprep.subr.bf16.mxu0 0
  %469 = vmatpush1.bf16.xpose.msra.mxu0 0
  %470 = vmatprep.subr.bf16.mxu0 0
  %471 = vmatpush1.bf16.xpose.msra.mxu0 0
  %472 = vmatprep.subr.bf16.mxu0 0
  %473 = vmatpush1.bf16.xpose.msra.mxu0 0
  %474 = vmatprep.subr.bf16.mxu0 0
  %475 = vmatpush1.bf16.xpose.msra.mxu0 0
  %476 = vmatprep.subr.bf16.mxu0 0
  %477 = vmatpush1.bf16.xpose.msra.mxu0 0
  %478 = vmatprep.subr.bf16.mxu0 0
  %479 = vmatpush1.bf16.xpose.msra.mxu0 0
  %480 = vmatprep.subr.bf16.mxu0 0
  %481 = vmatpush1.bf16.xpose.msra.mxu0 0
  %482 = vmatprep.subr.bf16.mxu0 0
  %483 = vmatpush1.bf16.xpose.msra.mxu0 0
  %484 = vmatprep.mubr.bf16.mxu0 0
  %485 = vmatmul.mubr.bf16.gmra.mrb[0].mxu0 %v447
  %v486 = vpop.f32.mrb[0].mxu0
  %v487 = vadd.f32 0.0, %v486
  %v488 = vpop.f32.mrb[0].mxu0
  %v489 = vpop.f32.mrb[0].mxu0
  %v490 = vadd.f32 0.0, %v489
  %v491 = vpop.f32.mrb[0].mxu0
  %492 = vdwg.mxu0
  %v493 = vmul.f32 %v487, 0.35355338
  %v494 = vmul.f32 %v490, 0.35355338
  %v495 = vadd.f32 %v493, %v178
  %v496 = vadd.f32 %v494, %v179
  %v497 = vsel %vm371, %v495, -inf
  %498 = vmax.xlane.f32.xlu0 %v497
  %v499 = vpop.xlane.xlu0 %498
  %v500 = vsel %vm371, %v496, -inf
  %501 = vmax.xlane.f32.xlu0 %v500
  %v502 = vpop.xlane.xlu0 %501
  %v503 = vsub.f32 %v495, %v499
  %v504 = vsub.f32 %v496, %v502
  %v505 = vmul.f32 %v503, 1.442695
  %v506 = vpow.pop %v505
  %v507 = vmul.f32 %v504, 1.442695
  %v508 = vpow.pop %v507
  %v509 = vsel %vm371, %v506, 0.0
  %510 = vadd.xlane.f32.xlu0 %v509
  %v511 = vpop.xlane.xlu0 %510
  %v512 = vsel %vm371, %v508, 0.0
  %513 = vadd.xlane.f32.xlu0 %v512
  %v514 = vpop.xlane.xlu0 %513
  %v515 = vpack.c.bf16 %v508, %v506
  %517 = vrot.lane.b32.xlu0 %v391, 120
  %v518 = vpop.permute.xlu0 %517
  %v521 = vsel %vm371, %v515, 0
  %523 = vmatprep.subr.bf16.mxu0 0
  %524 = vmatpush1.bf16.msra.mxu0 %v518
  %525 = vmatprep.subr.bf16.mxu0 0
  %526 = vmatpush1.bf16.msra.mxu0 0
  %527 = vmatprep.subr.bf16.mxu0 0
  %528 = vmatpush1.bf16.msra.mxu0 0
  %529 = vmatprep.subr.bf16.mxu0 0
  %530 = vmatpush1.bf16.msra.mxu0 0
  %531 = vmatprep.subr.bf16.mxu0 0
  %532 = vmatpush1.bf16.msra.mxu0 0
  %533 = vmatprep.subr.bf16.mxu0 0
  %534 = vmatpush1.bf16.msra.mxu0 0
  %535 = vmatprep.subr.bf16.mxu0 0
  %536 = vmatpush1.bf16.msra.mxu0 0
  %537 = vmatprep.subr.bf16.mxu0 0
  %538 = vmatpush1.bf16.msra.mxu0 0
  %539 = vmatprep.subr.bf16.mxu0 0
  %540 = vmatpush1.bf16.msra.mxu0 0
  %541 = vmatprep.subr.bf16.mxu0 0
  %542 = vmatpush1.bf16.msra.mxu0 0
  %543 = vmatprep.subr.bf16.mxu0 0
  %544 = vmatpush1.bf16.msra.mxu0 0
  %545 = vmatprep.subr.bf16.mxu0 0
  %546 = vmatpush1.bf16.msra.mxu0 0
  %547 = vmatprep.subr.bf16.mxu0 0
  %548 = vmatpush1.bf16.msra.mxu0 0
  %549 = vmatprep.subr.bf16.mxu0 0
  %550 = vmatpush1.bf16.msra.mxu0 0
  %551 = vmatprep.subr.bf16.mxu0 0
  %552 = vmatpush1.bf16.msra.mxu0 0
  %553 = vmatprep.subr.bf16.mxu0 0
  %554 = vmatpush1.bf16.msra.mxu0 0
  %555 = vmatprep.mubr.bf16.mxu0 0
  %556 = vmatmul.mubr.bf16.gmra.mrb[0].mxu0 %v521
  %v557 = vpop.f32.mrb[0].mxu0
  %v558 = vadd.f32 0.0, %v557
  %v559 = vpop.f32.mrb[0].mxu0
  %v560 = vpop.f32.mrb[0].mxu0
  %v561 = vadd.f32 0.0, %v560
  %v562 = vpop.f32.mrb[0].mxu0
  %563 = vdwg.mxu0
  %v564 = vrcp.pop %v511
  %v565 = vrcp.pop %v514
  %v566 = vmul.f32 %v558, %v564
  %v567 = vmul.f32 %v561, %v565
  %v568 = vpack.c.bf16 %v567, %v566
  %v569 = vpack.c.bf16 %v311, %v311
  %v571 = vsel %vm319, %v568, 0
  %vm573 = vcmask 1043456
  %v575 = vsel %vm573, %v569, 0
  %577 = vmatprep.subr.bf16.mxu0 0
  %578 = vmatpush1.bf16.msra.mxu0 %v575
  %579 = vmatprep.subr.bf16.mxu0 0
  %580 = vmatpush1.bf16.msra.mxu0 0
  %581 = vmatprep.subr.bf16.mxu0 0
  %582 = vmatpush1.bf16.msra.mxu0 0
  %583 = vmatprep.subr.bf16.mxu0 0
  %584 = vmatpush1.bf16.msra.mxu0 0
  %585 = vmatprep.subr.bf16.mxu0 0
  %586 = vmatpush1.bf16.msra.mxu0 0
  %587 = vmatprep.subr.bf16.mxu0 0
  %588 = vmatpush1.bf16.msra.mxu0 0
  %589 = vmatprep.subr.bf16.mxu0 0
  %590 = vmatpush1.bf16.msra.mxu0 0
  %591 = vmatprep.subr.bf16.mxu0 0
  %592 = vmatpush1.bf16.msra.mxu0 0
  %593 = vmatprep.subr.bf16.mxu0 0
  %594 = vmatpush1.bf16.msra.mxu0 0
  %595 = vmatprep.subr.bf16.mxu0 0
  %596 = vmatpush1.bf16.msra.mxu0 0
  %597 = vmatprep.subr.bf16.mxu0 0
  %598 = vmatpush1.bf16.msra.mxu0 0
  %599 = vmatprep.subr.bf16.mxu0 0
  %600 = vmatpush1.bf16.msra.mxu0 0
  %601 = vmatprep.subr.bf16.mxu0 0
  %602 = vmatpush1.bf16.msra.mxu0 0
  %603 = vmatprep.subr.bf16.mxu0 0
  %604 = vmatpush1.bf16.msra.mxu0 0
  %605 = vmatprep.subr.bf16.mxu0 0
  %606 = vmatpush1.bf16.msra.mxu0 0
  %607 = vmatprep.subr.bf16.mxu0 0
  %608 = vmatpush1.bf16.msra.mxu0 0
  %609 = vmatprep.mubr.bf16.mxu0 0
  %610 = vmatmul.mubr.bf16.gmra.mrb[0].mxu0 %v571
  %v611 = vpop.f32.mrb[0].mxu0
  %v612 = vadd.f32 0.0, %v611
  %v613 = vpop.f32.mrb[0].mxu0
  %v614 = vpop.f32.mrb[0].mxu0
  %v615 = vadd.f32 0.0, %v614
  %v616 = vpop.f32.mrb[0].mxu0
  %617 = vdwg.mxu0
  %v619 = vsel %vm319, %v440, 0
  %v622 = vsel %vm573, %v441, 0
  %624 = vmatprep.subr.bf16.mxu0 0
  %625 = vmatpush1.bf16.msra.mxu0 %v622
  %626 = vmatprep.subr.bf16.mxu0 0
  %627 = vmatpush1.bf16.msra.mxu0 0
  %628 = vmatprep.subr.bf16.mxu0 0
  %629 = vmatpush1.bf16.msra.mxu0 0
  %630 = vmatprep.subr.bf16.mxu0 0
  %631 = vmatpush1.bf16.msra.mxu0 0
  %632 = vmatprep.subr.bf16.mxu0 0
  %633 = vmatpush1.bf16.msra.mxu0 0
  %634 = vmatprep.subr.bf16.mxu0 0
  %635 = vmatpush1.bf16.msra.mxu0 0
  %636 = vmatprep.subr.bf16.mxu0 0
  %637 = vmatpush1.bf16.msra.mxu0 0
  %638 = vmatprep.subr.bf16.mxu0 0
  %639 = vmatpush1.bf16.msra.mxu0 0
  %640 = vmatprep.subr.bf16.mxu0 0
  %641 = vmatpush1.bf16.msra.mxu0 0
  %642 = vmatprep.subr.bf16.mxu0 0
  %643 = vmatpush1.bf16.msra.mxu0 0
  %644 = vmatprep.subr.bf16.mxu0 0
  %645 = vmatpush1.bf16.msra.mxu0 0
  %646 = vmatprep.subr.bf16.mxu0 0
  %647 = vmatpush1.bf16.msra.mxu0 0
  %648 = vmatprep.subr.bf16.mxu0 0
  %649 = vmatpush1.bf16.msra.mxu0 0
  %650 = vmatprep.subr.bf16.mxu0 0
  %651 = vmatpush1.bf16.msra.mxu0 0
  %652 = vmatprep.subr.bf16.mxu0 0
  %653 = vmatpush1.bf16.msra.mxu0 0
  %654 = vmatprep.subr.bf16.mxu0 0
  %655 = vmatpush1.bf16.msra.mxu0 0
  %656 = vmatprep.mubr.bf16.mxu0 0
  %657 = vmatmul.mubr.bf16.gmra.mrb[0].mxu0 %v619
  %v658 = vpop.f32.mrb[0].mxu0
  %v659 = vadd.f32 %v612, %v658
  %v660 = vpop.f32.mrb[0].mxu0
  %v661 = vpop.f32.mrb[0].mxu0
  %v662 = vadd.f32 %v615, %v661
  %v663 = vpop.f32.mrb[0].mxu0
  %664 = vdwg.mxu0
  %665 = vrot.lane.b32.xlu0 %v315, 112
  %v666 = vpop.permute.xlu0 %665
  %667 = vrot.lane.b32.xlu0 %v315, 80
  %v668 = vpop.permute.xlu0 %667
  %v670 = vsel %vm319, %v666, 0
  %v673 = vsel %vm319, %v668, 0
  %675 = vmatprep.subr.bf16.mxu0 0
  %676 = vmatpush1.bf16.xpose.msra.mxu0 %v673
  %677 = vmatprep.subr.bf16.mxu0 0
  %678 = vmatpush1.bf16.xpose.msra.mxu0 0
  %679 = vmatprep.subr.bf16.mxu0 0
  %680 = vmatpush1.bf16.xpose.msra.mxu0 0
  %681 = vmatprep.subr.bf16.mxu0 0
  %682 = vmatpush1.bf16.xpose.msra.mxu0 0
  %683 = vmatprep.subr.bf16.mxu0 0
  %684 = vmatpush1.bf16.xpose.msra.mxu0 0
  %685 = vmatprep.subr.bf16.mxu0 0
  %686 = vmatpush1.bf16.xpose.msra.mxu0 0
  %687 = vmatprep.subr.bf16.mxu0 0
  %688 = vmatpush1.bf16.xpose.msra.mxu0 0
  %689 = vmatprep.subr.bf16.mxu0 0
  %690 = vmatpush1.bf16.xpose.msra.mxu0 0
  %691 = vmatprep.subr.bf16.mxu0 0
  %692 = vmatpush1.bf16.xpose.msra.mxu0 0
  %693 = vmatprep.subr.bf16.mxu0 0
  %694 = vmatpush1.bf16.xpose.msra.mxu0 0
  %695 = vmatprep.subr.bf16.mxu0 0
  %696 = vmatpush1.bf16.xpose.msra.mxu0 0
  %697 = vmatprep.subr.bf16.mxu0 0
  %698 = vmatpush1.bf16.xpose.msra.mxu0 0
  %699 = vmatprep.subr.bf16.mxu0 0
  %700 = vmatpush1.bf16.xpose.msra.mxu0 0
  %701 = vmatprep.subr.bf16.mxu0 0
  %702 = vmatpush1.bf16.xpose.msra.mxu0 0
  %703 = vmatprep.subr.bf16.mxu0 0
  %704 = vmatpush1.bf16.xpose.msra.mxu0 0
  %705 = vmatprep.subr.bf16.mxu0 0
  %706 = vmatpush1.bf16.xpose.msra.mxu0 0
  %707 = vmatprep.mubr.bf16.mxu0 0
  %708 = vmatmul.mubr.bf16.gmra.mrb[0].mxu0 %v670
  %v709 = vpop.f32.mrb[0].mxu0
  %v710 = vadd.f32 0.0, %v709
  %v711 = vpop.f32.mrb[0].mxu0
  %v712 = vpop.f32.mrb[0].mxu0
  %v713 = vadd.f32 0.0, %v712
  %v714 = vpop.f32.mrb[0].mxu0
  %715 = vdwg.mxu0
  %v716 = vmul.f32 %v710, 0.35355338
  %v717 = vmul.f32 %v713, 0.35355338
  %v718 = vadd.f32 %v716, %v178
  %v719 = vadd.f32 %v717, %v179
  %v720 = vsel %vm371, %v718, -inf
  %721 = vmax.xlane.f32.xlu0 %v720
  %v722 = vpop.xlane.xlu0 %721
  %v723 = vsel %vm371, %v719, -inf
  %724 = vmax.xlane.f32.xlu0 %v723
  %v725 = vpop.xlane.xlu0 %724
  %v726 = vsub.f32 %v718, %v722
  %v727 = vsub.f32 %v719, %v725
  %v728 = vmul.f32 %v726, 1.442695
  %v729 = vpow.pop %v728
  %v730 = vmul.f32 %v727, 1.442695
  %v731 = vpow.pop %v730
  %v732 = vsel %vm371, %v729, 0.0
  %733 = vadd.xlane.f32.xlu0 %v732
  %v734 = vpop.xlane.xlu0 %733
  %v735 = vsel %vm371, %v731, 0.0
  %736 = vadd.xlane.f32.xlu0 %v735
  %v737 = vpop.xlane.xlu0 %736
  %v738 = vpack.c.bf16 %v731, %v729
  %739 = vrot.lane.b32.xlu0 %v391, 112
  %v740 = vpop.permute.xlu0 %739
  %v743 = vsel %vm371, %v738, 0
  %745 = vmatprep.subr.bf16.mxu0 0
  %746 = vmatpush1.bf16.msra.mxu0 %v740
  %747 = vmatprep.subr.bf16.mxu0 0
  %748 = vmatpush1.bf16.msra.mxu0 0
  %749 = vmatprep.subr.bf16.mxu0 0
  %750 = vmatpush1.bf16.msra.mxu0 0
  %751 = vmatprep.subr.bf16.mxu0 0
  %752 = vmatpush1.bf16.msra.mxu0 0
  %753 = vmatprep.subr.bf16.mxu0 0
  %754 = vmatpush1.bf16.msra.mxu0 0
  %755 = vmatprep.subr.bf16.mxu0 0
  %756 = vmatpush1.bf16.msra.mxu0 0
  %757 = vmatprep.subr.bf16.mxu0 0
  %758 = vmatpush1.bf16.msra.mxu0 0
  %759 = vmatprep.subr.bf16.mxu0 0
  %760 = vmatpush1.bf16.msra.mxu0 0
  %761 = vmatprep.subr.bf16.mxu0 0
  %762 = vmatpush1.bf16.msra.mxu0 0
  %763 = vmatprep.subr.bf16.mxu0 0
  %764 = vmatpush1.bf16.msra.mxu0 0
  %765 = vmatprep.subr.bf16.mxu0 0
  %766 = vmatpush1.bf16.msra.mxu0 0
  %767 = vmatprep.subr.bf16.mxu0 0
  %768 = vmatpush1.bf16.msra.mxu0 0
  %769 = vmatprep.subr.bf16.mxu0 0
  %770 = vmatpush1.bf16.msra.mxu0 0
  %771 = vmatprep.subr.bf16.mxu0 0
  %772 = vmatpush1.bf16.msra.mxu0 0
  %773 = vmatprep.subr.bf16.mxu0 0
  %774 = vmatpush1.bf16.msra.mxu0 0
  %775 = vmatprep.subr.bf16.mxu0 0
  %776 = vmatpush1.bf16.msra.mxu0 0
  %777 = vmatprep.mubr.bf16.mxu0 0
  %778 = vmatmul.mubr.bf16.gmra.mrb[0].mxu0 %v743
  %v779 = vpop.f32.mrb[0].mxu0
  %v780 = vadd.f32 0.0, %v779
  %v781 = vpop.f32.mrb[0].mxu0
  %v782 = vpop.f32.mrb[0].mxu0
  %v783 = vadd.f32 0.0, %v782
  %v784 = vpop.f32.mrb[0].mxu0
  %785 = vdwg.mxu0
  %v786 = vrcp.pop %v734
  %v787 = vrcp.pop %v737
  %v788 = vmul.f32 %v780, %v786
  %v789 = vmul.f32 %v783, %v787
  %v790 = vpack.c.bf16 %v789, %v788
  %v791 = vpack.c.bf16 %v312, %v312
  %v793 = vsel %vm319, %v790, 0
  %v796 = vsel %vm573, %v791, 0
  %798 = vmatprep.subr.bf16.mxu0 0
  %799 = vmatpush1.bf16.msra.mxu0 %v796
  %800 = vmatprep.subr.bf16.mxu0 0
  %801 = vmatpush1.bf16.msra.mxu0 0
  %802 = vmatprep.subr.bf16.mxu0 0
  %803 = vmatpush1.bf16.msra.mxu0 0
  %804 = vmatprep.subr.bf16.mxu0 0
  %805 = vmatpush1.bf16.msra.mxu0 0
  %806 = vmatprep.subr.bf16.mxu0 0
  %807 = vmatpush1.bf16.msra.mxu0 0
  %808 = vmatprep.subr.bf16.mxu0 0
  %809 = vmatpush1.bf16.msra.mxu0 0
  %810 = vmatprep.subr.bf16.mxu0 0
  %811 = vmatpush1.bf16.msra.mxu0 0
  %812 = vmatprep.subr.bf16.mxu0 0
  %813 = vmatpush1.bf16.msra.mxu0 0
  %814 = vmatprep.subr.bf16.mxu0 0
  %815 = vmatpush1.bf16.msra.mxu0 0
  %816 = vmatprep.subr.bf16.mxu0 0
  %817 = vmatpush1.bf16.msra.mxu0 0
  %818 = vmatprep.subr.bf16.mxu0 0
  %819 = vmatpush1.bf16.msra.mxu0 0
  %820 = vmatprep.subr.bf16.mxu0 0
  %821 = vmatpush1.bf16.msra.mxu0 0
  %822 = vmatprep.subr.bf16.mxu0 0
  %823 = vmatpush1.bf16.msra.mxu0 0
  %824 = vmatprep.subr.bf16.mxu0 0
  %825 = vmatpush1.bf16.msra.mxu0 0
  %826 = vmatprep.subr.bf16.mxu0 0
  %827 = vmatpush1.bf16.msra.mxu0 0
  %828 = vmatprep.subr.bf16.mxu0 0
  %829 = vmatpush1.bf16.msra.mxu0 0
  %830 = vmatprep.mubr.bf16.mxu0 0
  %831 = vmatmul.mubr.bf16.gmra.mrb[0].mxu0 %v793
  %v832 = vpop.f32.mrb[0].mxu0
  %v833 = vadd.f32 0.0, %v832
  %v834 = vpop.f32.mrb[0].mxu0
  %v835 = vpop.f32.mrb[0].mxu0
  %v836 = vadd.f32 0.0, %v835
  %v837 = vpop.f32.mrb[0].mxu0
  %838 = vdwg.mxu0
  %v839 = vadd.f32 %v659, %v833
  %v840 = vadd.f32 %v662, %v836
  %841 = vrot.lane.b32.xlu0 %v315, 104
  %v842 = vpop.permute.xlu0 %841
  %843 = vrot.lane.b32.xlu0 %v315, 72
  %v844 = vpop.permute.xlu0 %843
  %v846 = vsel %vm319, %v842, 0
  %v849 = vsel %vm319, %v844, 0
  %851 = vmatprep.subr.bf16.mxu0 0
  %852 = vmatpush1.bf16.xpose.msra.mxu0 %v849
  %853 = vmatprep.subr.bf16.mxu0 0
  %854 = vmatpush1.bf16.xpose.msra.mxu0 0
  %855 = vmatprep.subr.bf16.mxu0 0
  %856 = vmatpush1.bf16.xpose.msra.mxu0 0
  %857 = vmatprep.subr.bf16.mxu0 0
  %858 = vmatpush1.bf16.xpose.msra.mxu0 0
  %859 = vmatprep.subr.bf16.mxu0 0
  %860 = vmatpush1.bf16.xpose.msra.mxu0 0
  %861 = vmatprep.subr.bf16.mxu0 0
  %862 = vmatpush1.bf16.xpose.msra.mxu0 0
  %863 = vmatprep.subr.bf16.mxu0 0
  %864 = vmatpush1.bf16.xpose.msra.mxu0 0
  %865 = vmatprep.subr.bf16.mxu0 0
  %866 = vmatpush1.bf16.xpose.msra.mxu0 0
  %867 = vmatprep.subr.bf16.mxu0 0
  %868 = vmatpush1.bf16.xpose.msra.mxu0 0
  %869 = vmatprep.subr.bf16.mxu0 0
  %870 = vmatpush1.bf16.xpose.msra.mxu0 0
  %871 = vmatprep.subr.bf16.mxu0 0
  %872 = vmatpush1.bf16.xpose.msra.mxu0 0
  %873 = vmatprep.subr.bf16.mxu0 0
  %874 = vmatpush1.bf16.xpose.msra.mxu0 0
  %875 = vmatprep.subr.bf16.mxu0 0
  %876 = vmatpush1.bf16.xpose.msra.mxu0 0
  %877 = vmatprep.subr.bf16.mxu0 0
  %878 = vmatpush1.bf16.xpose.msra.mxu0 0
  %879 = vmatprep.subr.bf16.mxu0 0
  %880 = vmatpush1.bf16.xpose.msra.mxu0 0
  %881 = vmatprep.subr.bf16.mxu0 0
  %882 = vmatpush1.bf16.xpose.msra.mxu0 0
  %883 = vmatprep.mubr.bf16.mxu0 0
  %884 = vmatmul.mubr.bf16.gmra.mrb[0].mxu0 %v846
  %v885 = vpop.f32.mrb[0].mxu0
  %v886 = vadd.f32 0.0, %v885
  %v887 = vpop.f32.mrb[0].mxu0
  %v888 = vpop.f32.mrb[0].mxu0
  %v889 = vadd.f32 0.0, %v888
  %v890 = vpop.f32.mrb[0].mxu0
  %891 = vdwg.mxu0
  %v892 = vmul.f32 %v886, 0.35355338
  %v893 = vmul.f32 %v889, 0.35355338
  %v894 = vadd.f32 %v892, %v178
  %v895 = vadd.f32 %v893, %v179
  %v896 = vsel %vm371, %v894, -inf
  %897 = vmax.xlane.f32.xlu0 %v896
  %v898 = vpop.xlane.xlu0 %897
  %v899 = vsel %vm371, %v895, -inf
  %900 = vmax.xlane.f32.xlu0 %v899
  %v901 = vpop.xlane.xlu0 %900
  %v902 = vsub.f32 %v894, %v898
  %v903 = vsub.f32 %v895, %v901
  %v904 = vmul.f32 %v902, 1.442695
  %v905 = vpow.pop %v904
  %v906 = vmul.f32 %v903, 1.442695
  %v907 = vpow.pop %v906
  %v908 = vsel %vm371, %v905, 0.0
  %909 = vadd.xlane.f32.xlu0 %v908
  %v910 = vpop.xlane.xlu0 %909
  %v911 = vsel %vm371, %v907, 0.0
  %912 = vadd.xlane.f32.xlu0 %v911
  %v913 = vpop.xlane.xlu0 %912
  %v914 = vpack.c.bf16 %v907, %v905
  %915 = vrot.lane.b32.xlu0 %v391, 104
  %v916 = vpop.permute.xlu0 %915
  %v919 = vsel %vm371, %v914, 0
  %921 = vmatprep.subr.bf16.mxu0 0
  %922 = vmatpush1.bf16.msra.mxu0 %v916
  %923 = vmatprep.subr.bf16.mxu0 0
  %924 = vmatpush1.bf16.msra.mxu0 0
  %925 = vmatprep.subr.bf16.mxu0 0
  %926 = vmatpush1.bf16.msra.mxu0 0
  %927 = vmatprep.subr.bf16.mxu0 0
  %928 = vmatpush1.bf16.msra.mxu0 0
  %929 = vmatprep.subr.bf16.mxu0 0
  %930 = vmatpush1.bf16.msra.mxu0 0
  %931 = vmatprep.subr.bf16.mxu0 0
  %932 = vmatpush1.bf16.msra.mxu0 0
  %933 = vmatprep.subr.bf16.mxu0 0
  %934 = vmatpush1.bf16.msra.mxu0 0
  %935 = vmatprep.subr.bf16.mxu0 0
  %936 = vmatpush1.bf16.msra.mxu0 0
  %937 = vmatprep.subr.bf16.mxu0 0
  %938 = vmatpush1.bf16.msra.mxu0 0
  %939 = vmatprep.subr.bf16.mxu0 0
  %940 = vmatpush1.bf16.msra.mxu0 0
  %941 = vmatprep.subr.bf16.mxu0 0
  %942 = vmatpush1.bf16.msra.mxu0 0
  %943 = vmatprep.subr.bf16.mxu0 0
  %944 = vmatpush1.bf16.msra.mxu0 0
  %945 = vmatprep.subr.bf16.mxu0 0
  %946 = vmatpush1.bf16.msra.mxu0 0
  %947 = vmatprep.subr.bf16.mxu0 0
  %948 = vmatpush1.bf16.msra.mxu0 0
  %949 = vmatprep.subr.bf16.mxu0 0
  %950 = vmatpush1.bf16.msra.mxu0 0
  %951 = vmatprep.subr.bf16.mxu0 0
  %952 = vmatpush1.bf16.msra.mxu0 0
  %953 = vmatprep.mubr.bf16.mxu0 0
  %954 = vmatmul.mubr.bf16.gmra.mrb[0].mxu0 %v919
  %v955 = vpop.f32.mrb[0].mxu0
  %v956 = vadd.f32 0.0, %v955
  %v957 = vpop.f32.mrb[0].mxu0
  %v958 = vpop.f32.mrb[0].mxu0
  %v959 = vadd.f32 0.0, %v958
  %v960 = vpop.f32.mrb[0].mxu0
  %961 = vdwg.mxu0
  %v962 = vrcp.pop %v910
  %v963 = vrcp.pop %v913
  %v964 = vmul.f32 %v956, %v962
  %v965 = vmul.f32 %v959, %v963
  %v966 = vpack.c.bf16 %v965, %v964
  %v967 = vpack.c.bf16 %v313, %v313
  %v969 = vsel %vm319, %v966, 0
  %v972 = vsel %vm573, %v967, 0
  %974 = vmatprep.subr.bf16.mxu0 0
  %975 = vmatpush1.bf16.msra.mxu0 %v972
  %976 = vmatprep.subr.bf16.mxu0 0
  %977 = vmatpush1.bf16.msra.mxu0 0
  %978 = vmatprep.subr.bf16.mxu0 0
  %979 = vmatpush1.bf16.msra.mxu0 0
  %980 = vmatprep.subr.bf16.mxu0 0
  %981 = vmatpush1.bf16.msra.mxu0 0
  %982 = vmatprep.subr.bf16.mxu0 0
  %983 = vmatpush1.bf16.msra.mxu0 0
  %984 = vmatprep.subr.bf16.mxu0 0
  %985 = vmatpush1.bf16.msra.mxu0 0
  %986 = vmatprep.subr.bf16.mxu0 0
  %987 = vmatpush1.bf16.msra.mxu0 0
  %988 = vmatprep.subr.bf16.mxu0 0
  %989 = vmatpush1.bf16.msra.mxu0 0
  %990 = vmatprep.subr.bf16.mxu0 0
  %991 = vmatpush1.bf16.msra.mxu0 0
  %992 = vmatprep.subr.bf16.mxu0 0
  %993 = vmatpush1.bf16.msra.mxu0 0
  %994 = vmatprep.subr.bf16.mxu0 0
  %995 = vmatpush1.bf16.msra.mxu0 0
  %996 = vmatprep.subr.bf16.mxu0 0
  %997 = vmatpush1.bf16.msra.mxu0 0
  %998 = vmatprep.subr.bf16.mxu0 0
  %999 = vmatpush1.bf16.msra.mxu0 0
  %1000 = vmatprep.subr.bf16.mxu0 0
  %1001 = vmatpush1.bf16.msra.mxu0 0
  %1002 = vmatprep.subr.bf16.mxu0 0
  %1003 = vmatpush1.bf16.msra.mxu0 0
  %1004 = vmatprep.subr.bf16.mxu0 0
  %1005 = vmatpush1.bf16.msra.mxu0 0
  %1006 = vmatprep.mubr.bf16.mxu0 0
  %1007 = vmatmul.mubr.bf16.gmra.mrb[0].mxu0 %v969
  %v1008 = vpop.f32.mrb[0].mxu0
  %v1009 = vadd.f32 0.0, %v1008
  %v1010 = vpop.f32.mrb[0].mxu0
  %v1011 = vpop.f32.mrb[0].mxu0
  %v1012 = vadd.f32 0.0, %v1011
  %v1013 = vpop.f32.mrb[0].mxu0
  %1014 = vdwg.mxu0
  %v1015 = vadd.f32 %v839, %v1009
  %v1016 = vadd.f32 %v840, %v1012
  %v1018 = vlaneseq
  %v1019 = vshrl.u32 %v1018, 7
  %v1020 = vsub.s32 0, %v1019
  %v1021 = vrot.slane %v314, %v1020
  %v1023 = vadd.f32 %v1015, %v1021
  %v1024 = vadd.f32 %v1016, %v1021
  %v1025 = vadd.f32 %v125, %v1023
  %v1026 = vadd.f32 %v126, %v1024
  %v1027 = vld [vmem:[%s47] sm:$0x1]
  %v1028 = vld [vmem:[%s49] sm:$0x1]
  %v1029 = vsel %vm207, %v1025, 0.0
  %1030 = vadd.xlane.f32.xlu0 %v1029
  %v1031 = vpop.xlane.xlu0 %1030
  %v1032 = vsel %vm207, %v1026, 0.0
  %1033 = vadd.xlane.f32.xlu0 %v1032
  %v1034 = vpop.xlane.xlu0 %1033
  %v1035 = vrcp.pop 32.0
  %v1036 = vmul.f32 %v1031, %v1035
  %v1037 = vmul.f32 %v1034, %v1035
  %v1038 = vsub.f32 %v1025, %v1036
  %v1039 = vsub.f32 %v1026, %v1037
  %v1040 = vmul.f32 %v1038, %v1038
  %v1041 = vmul.f32 %v1039, %v1039
  %v1042 = vsel %vm207, %v1040, 0.0
  %1043 = vadd.xlane.f32.xlu0 %v1042
  %v1044 = vpop.xlane.xlu0 %1043
  %v1045 = vsel %vm207, %v1041, 0.0
  %1046 = vadd.xlane.f32.xlu0 %v1045
  %v1047 = vpop.xlane.xlu0 %1046
  %v1048 = vmul.f32 %v1044, %v1035
  %v1049 = vmul.f32 %v1047, %v1035
  %v1050 = vadd.f32 %v1048, 1e-05
  %v1051 = vadd.f32 %v1049, 1e-05
  %v1052 = vrsqrt.pop %v1050
  %v1053 = vrsqrt.pop %v1051
  %v1054 = vmul.f32 %v1038, %v1052
  %v1055 = vmul.f32 %v1039, %v1053
  %v1057 = vlaneseq
  %v1058 = vshrl.u32 %v1057, 7
  %v1059 = vsub.s32 0, %v1058
  %v1060 = vrot.slane %v1027, %v1059
  %v1062 = vmul.f32 %v1054, %v1060
  %v1063 = vmul.f32 %v1055, %v1060
  %v1065 = vlaneseq
  %v1066 = vshrl.u32 %v1065, 7
  %v1067 = vsub.s32 0, %v1066
  %v1068 = vrot.slane %v1028, %v1067
  %v1070 = vadd.f32 %v1062, %v1068
  %v1071 = vadd.f32 %v1063, %v1068
  %v1072 = vadd.f32 %v1070, %v127
  %v1073 = vadd.f32 %v1071, %v128
  %v1074 = vld [vmem:[%s27] sm:$0xff]
  %v1075 = vld [vmem:[%s27 + $0x8] sm:$0xff]
  %v1076 = vld [vmem:[%s27 + $0x10] sm:$0xff]
  %v1077 = vld [vmem:[%s27 + $0x18] sm:$0xff]
  %v1078 = vpack.c.bf16 %v1073, %v1072
  %v1079 = vpack.c.bf16 %v1075, %v1074
  %v1080 = vpack.c.bf16 %v1077, %v1076
  %v1081 = vld [vmem:[%s29] sm:$0x1]
  %v1083 = vlaneseq
  %v1084 = vshrl.u32 %v1083, 7
  %v1085 = vsub.s32 0, %v1084
  %v1086 = vrot.slane %v1081, %v1085
  %v1089 = vsel %vm207, %v1078, 0
  %1091 = vmatprep.subr.bf16.mxu0 0
  %1092 = vmatpush1.bf16.msra.mxu0 %v1079
  %1093 = vmatprep.subr.bf16.mxu0 0
  %1094 = vmatpush1.bf16.msra.mxu0 %v1080
  %1095 = vmatprep.subr.bf16.mxu0 0
  %1096 = vmatpush1.bf16.msra.mxu0 0
  %1097 = vmatprep.subr.bf16.mxu0 0
  %1098 = vmatpush1.bf16.msra.mxu0 0
  %1099 = vmatprep.subr.bf16.mxu0 0
  %1100 = vmatpush1.bf16.msra.mxu0 0
  %1101 = vmatprep.subr.bf16.mxu0 0
  %1102 = vmatpush1.bf16.msra.mxu0 0
  %1103 = vmatprep.subr.bf16.mxu0 0
  %1104 = vmatpush1.bf16.msra.mxu0 0
  %1105 = vmatprep.subr.bf16.mxu0 0
  %1106 = vmatpush1.bf16.msra.mxu0 0
  %1107 = vmatprep.subr.bf16.mxu0 0
  %1108 = vmatpush1.bf16.msra.mxu0 0
  %1109 = vmatprep.subr.bf16.mxu0 0
  %1110 = vmatpush1.bf16.msra.mxu0 0
  %1111 = vmatprep.subr.bf16.mxu0 0
  %1112 = vmatpush1.bf16.msra.mxu0 0
  %1113 = vmatprep.subr.bf16.mxu0 0
  %1114 = vmatpush1.bf16.msra.mxu0 0
  %1115 = vmatprep.subr.bf16.mxu0 0
  %1116 = vmatpush1.bf16.msra.mxu0 0
  %1117 = vmatprep.subr.bf16.mxu0 0
  %1118 = vmatpush1.bf16.msra.mxu0 0
  %1119 = vmatprep.subr.bf16.mxu0 0
  %1120 = vmatpush1.bf16.msra.mxu0 0
  %1121 = vmatprep.subr.bf16.mxu0 0
  %1122 = vmatpush1.bf16.msra.mxu0 0
  %1123 = vmatprep.mubr.bf16.mxu0 0
  %1124 = vmatmul.mubr.bf16.gmra.mrb[0].mxu0 %v1089
  %v1125 = vpop.f32.mrb[0].mxu0
  %v1126 = vadd.f32 %v1086, %v1125
  %v1127 = vpop.f32.mrb[0].mxu0
  %v1128 = vpop.f32.mrb[0].mxu0
  %v1129 = vadd.f32 %v1086, %v1128
  %v1130 = vpop.f32.mrb[0].mxu0
  %1131 = vdwg.mxu0
  %v1132 = vld [vmem:[%s31] sm:$0xff]
  %v1133 = vld [vmem:[%s31 + $0x8] sm:$0xff]
  %v1134 = vld [vmem:[%s31 + $0x10] sm:$0xff]
  %v1135 = vld [vmem:[%s31 + $0x18] sm:$0xff]
  %v1136 = vpack.c.bf16 %v130, %v129
  %v1137 = vpack.c.bf16 %v132, %v131
  %v1138 = vpack.c.bf16 %v134, %v133
  %v1139 = vpack.c.bf16 %v136, %v135
  %v1140 = vpack.c.bf16 %v138, %v137
  %v1141 = vpack.c.bf16 %v140, %v139
  %v1142 = vpack.c.bf16 %v142, %v141
  %v1143 = vpack.c.bf16 %v144, %v143
  %v1144 = vpack.c.bf16 %v1133, %v1132
  %v1145 = vpack.c.bf16 %v1135, %v1134
  %v1146 = vld [vmem:[%s33] sm:$0x1]
  %v1148 = vlaneseq
  %v1149 = vshrl.u32 %v1148, 7
  %v1150 = vsub.s32 0, %v1149
  %v1151 = vrot.slane %v1146, %v1150
  %v1154 = vsel %vm207, %v1136, 0
  %v1157 = vsel %vm207, %v1137, 0
  %v1160 = vsel %vm207, %v1138, 0
  %v1163 = vsel %vm207, %v1139, 0
  %v1166 = vsel %vm207, %v1140, 0
  %v1169 = vsel %vm207, %v1141, 0
  %v1172 = vsel %vm207, %v1142, 0
  %v1175 = vsel %vm207, %v1143, 0
  %1177 = vmatprep.subr.bf16.mxu0 0
  %1178 = vmatpush1.bf16.msra.mxu0 %v1144
  %1179 = vmatprep.subr.bf16.mxu0 0
  %1180 = vmatpush1.bf16.msra.mxu0 %v1145
  %1181 = vmatprep.subr.bf16.mxu0 0
  %1182 = vmatpush1.bf16.msra.mxu0 0
  %1183 = vmatprep.subr.bf16.mxu0 0
  %1184 = vmatpush1.bf16.msra.mxu0 0
  %1185 = vmatprep.subr.bf16.mxu0 0
  %1186 = vmatpush1.bf16.msra.mxu0 0
  %1187 = vmatprep.subr.bf16.mxu0 0
  %1188 = vmatpush1.bf16.msra.mxu0 0
  %1189 = vmatprep.subr.bf16.mxu0 0
  %1190 = vmatpush1.bf16.msra.mxu0 0
  %1191 = vmatprep.subr.bf16.mxu0 0
  %1192 = vmatpush1.bf16.msra.mxu0 0
  %1193 = vmatprep.subr.bf16.mxu0 0
  %1194 = vmatpush1.bf16.msra.mxu0 0
  %1195 = vmatprep.subr.bf16.mxu0 0
  %1196 = vmatpush1.bf16.msra.mxu0 0
  %1197 = vmatprep.subr.bf16.mxu0 0
  %1198 = vmatpush1.bf16.msra.mxu0 0
  %1199 = vmatprep.subr.bf16.mxu0 0
  %1200 = vmatpush1.bf16.msra.mxu0 0
  %1201 = vmatprep.subr.bf16.mxu0 0
  %1202 = vmatpush1.bf16.msra.mxu0 0
  %1203 = vmatprep.subr.bf16.mxu0 0
  %1204 = vmatpush1.bf16.msra.mxu0 0
  %1205 = vmatprep.subr.bf16.mxu0 0
  %1206 = vmatpush1.bf16.msra.mxu0 0
  %1207 = vmatprep.subr.bf16.mxu0 0
  %1208 = vmatpush1.bf16.msra.mxu0 0
  %1209 = vmatprep.mubr.bf16.mxu0 0
  %1210 = vmatmul.mubr.bf16.gmra.mrb[0].mxu0 %v1154
  %v1211 = vpop.f32.mrb[0].mxu0
  %v1212 = vadd.f32 %v1151, %v1211
  %v1213 = vpop.f32.mrb[0].mxu0
  %v1214 = vpop.f32.mrb[0].mxu0
  %v1215 = vadd.f32 %v1151, %v1214
  %v1216 = vpop.f32.mrb[0].mxu0
  %1217 = vmatprep.mubr.bf16.mxu0 0
  %1218 = vmatmul.mubr.bf16.gmra.mrb[0].mxu0 %v1157
  %v1219 = vpop.f32.mrb[0].mxu0
  %v1220 = vadd.f32 %v1151, %v1219
  %v1221 = vpop.f32.mrb[0].mxu0
  %v1222 = vpop.f32.mrb[0].mxu0
  %v1223 = vadd.f32 %v1151, %v1222
  %v1224 = vpop.f32.mrb[0].mxu0
  %1225 = vmatprep.mubr.bf16.mxu0 0
  %1226 = vmatmul.mubr.bf16.gmra.mrb[0].mxu0 %v1160
  %v1227 = vpop.f32.mrb[0].mxu0
  %v1228 = vadd.f32 %v1151, %v1227
  %v1229 = vpop.f32.mrb[0].mxu0
  %v1230 = vpop.f32.mrb[0].mxu0
  %v1231 = vadd.f32 %v1151, %v1230
  %v1232 = vpop.f32.mrb[0].mxu0
  %1233 = vmatprep.mubr.bf16.mxu0 0
  %1234 = vmatmul.mubr.bf16.gmra.mrb[0].mxu0 %v1163
  %v1235 = vpop.f32.mrb[0].mxu0
  %v1236 = vadd.f32 %v1151, %v1235
  %v1237 = vpop.f32.mrb[0].mxu0
  %v1238 = vpop.f32.mrb[0].mxu0
  %v1239 = vadd.f32 %v1151, %v1238
  %v1240 = vpop.f32.mrb[0].mxu0
  %1241 = vmatprep.mubr.bf16.mxu0 0
  %1242 = vmatmul.mubr.bf16.gmra.mrb[0].mxu0 %v1166
  %v1243 = vpop.f32.mrb[0].mxu0
  %v1244 = vadd.f32 %v1151, %v1243
  %v1245 = vpop.f32.mrb[0].mxu0
  %v1246 = vpop.f32.mrb[0].mxu0
  %v1247 = vadd.f32 %v1151, %v1246
  %v1248 = vpop.f32.mrb[0].mxu0
  %1249 = vmatprep.mubr.bf16.mxu0 0
  %1250 = vmatmul.mubr.bf16.gmra.mrb[0].mxu0 %v1169
  %v1251 = vpop.f32.mrb[0].mxu0
  %v1252 = vadd.f32 %v1151, %v1251
  %v1253 = vpop.f32.mrb[0].mxu0
  %v1254 = vpop.f32.mrb[0].mxu0
  %v1255 = vadd.f32 %v1151, %v1254
  %v1256 = vpop.f32.mrb[0].mxu0
  %1257 = vmatprep.mubr.bf16.mxu0 0
  %1258 = vmatmul.mubr.bf16.gmra.mrb[0].mxu0 %v1172
  %v1259 = vpop.f32.mrb[0].mxu0
  %v1260 = vadd.f32 %v1151, %v1259
  %v1261 = vpop.f32.mrb[0].mxu0
  %v1262 = vpop.f32.mrb[0].mxu0
  %v1263 = vadd.f32 %v1151, %v1262
  %v1264 = vpop.f32.mrb[0].mxu0
  %1265 = vmatprep.mubr.bf16.mxu0 0
  %1266 = vmatmul.mubr.bf16.gmra.mrb[0].mxu0 %v1175
  %v1267 = vpop.f32.mrb[0].mxu0
  %v1268 = vadd.f32 %v1151, %v1267
  %v1269 = vpop.f32.mrb[0].mxu0
  %v1270 = vpop.f32.mrb[0].mxu0
  %v1271 = vadd.f32 %v1151, %v1270
  %v1272 = vpop.f32.mrb[0].mxu0
  %1273 = vdwg.mxu0
  %v1274 = vld [vmem:[%s35] sm:$0xff]
  %v1275 = vld [vmem:[%s35 + $0x8] sm:$0xff]
  %v1276 = vld [vmem:[%s35 + $0x10] sm:$0xff]
  %v1277 = vld [vmem:[%s35 + $0x18] sm:$0xff]
  %v1278 = vld [vmem:[%s37] sm:$0x1]
  %v1279 = vpack.c.bf16 %v1129, %v1126
  %v1280 = vpack.c.bf16 %v1215, %v1212
  %v1281 = vpack.c.bf16 %v1223, %v1220
  %v1282 = vpack.c.bf16 %v1231, %v1228
  %v1283 = vpack.c.bf16 %v1239, %v1236
  %v1284 = vpack.c.bf16 %v1247, %v1244
  %v1285 = vpack.c.bf16 %v1255, %v1252
  %v1286 = vpack.c.bf16 %v1263, %v1260
  %v1287 = vpack.c.bf16 %v1271, %v1268
  %v1289 = vsel %vm319, %v1279, 0
  %v1292 = vsel %vm319, %v1280, 0
  %v1295 = vsel %vm319, %v1281, 0
  %v1298 = vsel %vm319, %v1282, 0
  %v1301 = vsel %vm319, %v1283, 0
  %v1304 = vsel %vm319, %v1284, 0
  %v1307 = vsel %vm319, %v1285, 0
  %v1310 = vsel %vm319, %v1286, 0
  %v1313 = vsel %vm319, %v1287, 0
  %1315 = vmatprep.subr.bf16.mxu0 0
  %1316 = vmatpush1.bf16.xpose.msra.mxu0 %v1292
  %1317 = vmatprep.subr.bf16.mxu0 0
  %1318 = vmatpush1.bf16.xpose.msra.mxu0 %v1295
  %1319 = vmatprep.subr.bf16.mxu0 0
  %1320 = vmatpush1.bf16.xpose.msra.mxu0 %v1298
  %1321 = vmatprep.subr.bf16.mxu0 0
  %1322 = vmatpush1.bf16.xpose.msra.mxu0 %v1301
  %1323 = vmatprep.subr.bf16.mxu0 0
  %1324 = vmatpush1.bf16.xpose.msra.mxu0 %v1304
  %1325 = vmatprep.subr.bf16.mxu0 0
  %1326 = vmatpush1.bf16.xpose.msra.mxu0 %v1307
  %1327 = vmatprep.subr.bf16.mxu0 0
  %1328 = vmatpush1.bf16.xpose.msra.mxu0 %v1310
  %1329 = vmatprep.subr.bf16.mxu0 0
  %1330 = vmatpush1.bf16.xpose.msra.mxu0 %v1313
  %1331 = vmatprep.subr.bf16.mxu0 0
  %1332 = vmatpush1.bf16.xpose.msra.mxu0 0
  %1333 = vmatprep.subr.bf16.mxu0 0
  %1334 = vmatpush1.bf16.xpose.msra.mxu0 0
  %1335 = vmatprep.subr.bf16.mxu0 0
  %1336 = vmatpush1.bf16.xpose.msra.mxu0 0
  %1337 = vmatprep.subr.bf16.mxu0 0
  %1338 = vmatpush1.bf16.xpose.msra.mxu0 0
  %1339 = vmatprep.subr.bf16.mxu0 0
  %1340 = vmatpush1.bf16.xpose.msra.mxu0 0
  %1341 = vmatprep.subr.bf16.mxu0 0
  %1342 = vmatpush1.bf16.xpose.msra.mxu0 0
  %1343 = vmatprep.subr.bf16.mxu0 0
  %1344 = vmatpush1.bf16.xpose.msra.mxu0 0
  %1345 = vmatprep.subr.bf16.mxu0 0
  %1346 = vmatpush1.bf16.xpose.msra.mxu0 0
  %1347 = vmatprep.mubr.bf16.mxu0 0
  %1348 = vmatmul.mubr.bf16.gmra.mrb[0].mxu0 %v1289
  %v1349 = vpop.f32.mrb[0].mxu0
  %v1350 = vadd.f32 0.0, %v1349
  %v1351 = vpop.f32.mrb[0].mxu0
  %v1352 = vpop.f32.mrb[0].mxu0
  %v1353 = vadd.f32 0.0, %v1352
  %v1354 = vpop.f32.mrb[0].mxu0
  %1355 = vdwg.mxu0
  %v1356 = vmul.f32 %v1350, 0.35355338
  %v1357 = vmul.f32 %v1353, 0.35355338
  %v1358 = vadd.f32 %v1356, %v189
  %v1359 = vadd.f32 %v1357, %v190
  %1360 = vmax.xlane.f32.xlu0 %v1358
  %v1361 = vpop.xlane.xlu0 %1360
  %1362 = vmax.xlane.f32.xlu0 %v1359
  %v1363 = vpop.xlane.xlu0 %1362
  %v1364 = vsub.f32 %v1358, %v1361
  %v1365 = vsub.f32 %v1359, %v1363
  %v1366 = vmul.f32 %v1364, 1.442695
  %v1367 = vpow.pop %v1366
  %v1368 = vmul.f32 %v1365, 1.442695
  %v1369 = vpow.pop %v1368
  %1370 = vadd.xlane.f32.xlu0 %v1367
  %v1371 = vpop.xlane.xlu0 %1370
  %1372 = vadd.xlane.f32.xlu0 %v1369
  %v1373 = vpop.xlane.xlu0 %1372
  %v1374 = vpack.c.bf16 %v1369, %v1367
  %1383 = vrot.lane.b32.xlu0 %v1280, 96
  %v1384 = vpop.permute.xlu0 %1383
  %1385 = vrot.lane.b32.xlu0 %v1281, 96
  %v1386 = vpop.permute.xlu0 %1385
  %1387 = vrot.lane.b32.xlu0 %v1282, 96
  %v1388 = vpop.permute.xlu0 %1387
  %1389 = vrot.lane.b32.xlu0 %v1283, 96
  %v1390 = vpop.permute.xlu0 %1389
  %1391 = vrot.lane.b32.xlu0 %v1284, 96
  %v1392 = vpop.permute.xlu0 %1391
  %1393 = vrot.lane.b32.xlu0 %v1285, 96
  %v1394 = vpop.permute.xlu0 %1393
  %1395 = vrot.lane.b32.xlu0 %v1286, 96
  %v1396 = vpop.permute.xlu0 %1395
  %1397 = vrot.lane.b32.xlu0 %v1287, 96
  %v1398 = vpop.permute.xlu0 %1397
  %1407 = vmatprep.subr.bf16.mxu0 0
  %1408 = vmatpush1.bf16.msra.mxu0 %v1384
  %1409 = vmatprep.subr.bf16.mxu0 0
  %1410 = vmatpush1.bf16.msra.mxu0 %v1386
  %1411 = vmatprep.subr.bf16.mxu0 0
  %1412 = vmatpush1.bf16.msra.mxu0 %v1388
  %1413 = vmatprep.subr.bf16.mxu0 0
  %1414 = vmatpush1.bf16.msra.mxu0 %v1390
  %1415 = vmatprep.subr.bf16.mxu0 0
  %1416 = vmatpush1.bf16.msra.mxu0 %v1392
  %1417 = vmatprep.subr.bf16.mxu0 0
  %1418 = vmatpush1.bf16.msra.mxu0 %v1394
  %1419 = vmatprep.subr.bf16.mxu0 0
  %1420 = vmatpush1.bf16.msra.mxu0 %v1396
  %1421 = vmatprep.subr.bf16.mxu0 0
  %1422 = vmatpush1.bf16.msra.mxu0 %v1398
  %1423 = vmatprep.subr.bf16.mxu0 0
  %1424 = vmatpush1.bf16.msra.mxu0 0
  %1425 = vmatprep.subr.bf16.mxu0 0
  %1426 = vmatpush1.bf16.msra.mxu0 0
  %1427 = vmatprep.subr.bf16.mxu0 0
  %1428 = vmatpush1.bf16.msra.mxu0 0
  %1429 = vmatprep.subr.bf16.mxu0 0
  %1430 = vmatpush1.bf16.msra.mxu0 0
  %1431 = vmatprep.subr.bf16.mxu0 0
  %1432 = vmatpush1.bf16.msra.mxu0 0
  %1433 = vmatprep.subr.bf16.mxu0 0
  %1434 = vmatpush1.bf16.msra.mxu0 0
  %1435 = vmatprep.subr.bf16.mxu0 0
  %1436 = vmatpush1.bf16.msra.mxu0 0
  %1437 = vmatprep.subr.bf16.mxu0 0
  %1438 = vmatpush1.bf16.msra.mxu0 0
  %1439 = vmatprep.mubr.bf16.mxu0 0
  %1440 = vmatmul.mubr.bf16.gmra.mrb[0].mxu0 %v1374
  %v1441 = vpop.f32.mrb[0].mxu0
  %v1442 = vadd.f32 0.0, %v1441
  %v1443 = vpop.f32.mrb[0].mxu0
  %v1444 = vpop.f32.mrb[0].mxu0
  %v1445 = vadd.f32 0.0, %v1444
  %v1446 = vpop.f32.mrb[0].mxu0
  %1447 = vdwg.mxu0
  %v1448 = vrcp.pop %v1371
  %v1449 = vrcp.pop %v1373
  %v1450 = vmul.f32 %v1442, %v1448
  %v1451 = vmul.f32 %v1445, %v1449
  %v1452 = vpack.c.bf16 %v1451, %v1450
  %v1453 = vpack.c.bf16 %v1274, %v1274
  %1455 = vrot.lane.b32.xlu0 %v1279, 120
  %v1456 = vpop.permute.xlu0 %1455
  %1457 = vrot.lane.b32.xlu0 %v1280, 120
  %v1458 = vpop.permute.xlu0 %1457
  %1459 = vrot.lane.b32.xlu0 %v1281, 120
  %v1460 = vpop.permute.xlu0 %1459
  %1461 = vrot.lane.b32.xlu0 %v1282, 120
  %v1462 = vpop.permute.xlu0 %1461
  %1463 = vrot.lane.b32.xlu0 %v1283, 120
  %v1464 = vpop.permute.xlu0 %1463
  %1465 = vrot.lane.b32.xlu0 %v1284, 120
  %v1466 = vpop.permute.xlu0 %1465
  %1467 = vrot.lane.b32.xlu0 %v1285, 120
  %v1468 = vpop.permute.xlu0 %1467
  %1469 = vrot.lane.b32.xlu0 %v1286, 120
  %v1470 = vpop.permute.xlu0 %1469
  %1471 = vrot.lane.b32.xlu0 %v1287, 120
  %v1472 = vpop.permute.xlu0 %1471
  %v1474 = vsel %vm319, %v1456, 0
  %v1477 = vsel %vm319, %v1458, 0
  %v1480 = vsel %vm319, %v1460, 0
  %v1483 = vsel %vm319, %v1462, 0
  %v1486 = vsel %vm319, %v1464, 0
  %v1489 = vsel %vm319, %v1466, 0
  %v1492 = vsel %vm319, %v1468, 0
  %v1495 = vsel %vm319, %v1470, 0
  %v1498 = vsel %vm319, %v1472, 0
  %1500 = vmatprep.subr.bf16.mxu0 0
  %1501 = vmatpush1.bf16.xpose.msra.mxu0 %v1477
  %1502 = vmatprep.subr.bf16.mxu0 0
  %1503 = vmatpush1.bf16.xpose.msra.mxu0 %v1480
  %1504 = vmatprep.subr.bf16.mxu0 0
  %1505 = vmatpush1.bf16.xpose.msra.mxu0 %v1483
  %1506 = vmatprep.subr.bf16.mxu0 0
  %1507 = vmatpush1.bf16.xpose.msra.mxu0 %v1486
  %1508 = vmatprep.subr.bf16.mxu0 0
  %1509 = vmatpush1.bf16.xpose.msra.mxu0 %v1489
  %1510 = vmatprep.subr.bf16.mxu0 0
  %1511 = vmatpush1.bf16.xpose.msra.mxu0 %v1492
  %1512 = vmatprep.subr.bf16.mxu0 0
  %1513 = vmatpush1.bf16.xpose.msra.mxu0 %v1495
  %1514 = vmatprep.subr.bf16.mxu0 0
  %1515 = vmatpush1.bf16.xpose.msra.mxu0 %v1498
  %1516 = vmatprep.subr.bf16.mxu0 0
  %1517 = vmatpush1.bf16.xpose.msra.mxu0 0
  %1518 = vmatprep.subr.bf16.mxu0 0
  %1519 = vmatpush1.bf16.xpose.msra.mxu0 0
  %1520 = vmatprep.subr.bf16.mxu0 0
  %1521 = vmatpush1.bf16.xpose.msra.mxu0 0
  %1522 = vmatprep.subr.bf16.mxu0 0
  %1523 = vmatpush1.bf16.xpose.msra.mxu0 0
  %1524 = vmatprep.subr.bf16.mxu0 0
  %1525 = vmatpush1.bf16.xpose.msra.mxu0 0
  %1526 = vmatprep.subr.bf16.mxu0 0
  %1527 = vmatpush1.bf16.xpose.msra.mxu0 0
  %1528 = vmatprep.subr.bf16.mxu0 0
  %1529 = vmatpush1.bf16.xpose.msra.mxu0 0
  %1530 = vmatprep.subr.bf16.mxu0 0
  %1531 = vmatpush1.bf16.xpose.msra.mxu0 0
  %1532 = vmatprep.mubr.bf16.mxu0 0
  %1533 = vmatmul.mubr.bf16.gmra.mrb[0].mxu0 %v1474
  %v1534 = vpop.f32.mrb[0].mxu0
  %v1535 = vadd.f32 0.0, %v1534
  %v1536 = vpop.f32.mrb[0].mxu0
  %v1537 = vpop.f32.mrb[0].mxu0
  %v1538 = vadd.f32 0.0, %v1537
  %v1539 = vpop.f32.mrb[0].mxu0
  %1540 = vdwg.mxu0
  %v1541 = vmul.f32 %v1535, 0.35355338
  %v1542 = vmul.f32 %v1538, 0.35355338
  %v1543 = vadd.f32 %v1541, %v189
  %v1544 = vadd.f32 %v1542, %v190
  %1545 = vmax.xlane.f32.xlu0 %v1543
  %v1546 = vpop.xlane.xlu0 %1545
  %1547 = vmax.xlane.f32.xlu0 %v1544
  %v1548 = vpop.xlane.xlu0 %1547
  %v1549 = vsub.f32 %v1543, %v1546
  %v1550 = vsub.f32 %v1544, %v1548
  %v1551 = vmul.f32 %v1549, 1.442695
  %v1552 = vpow.pop %v1551
  %v1553 = vmul.f32 %v1550, 1.442695
  %v1554 = vpow.pop %v1553
  %1555 = vadd.xlane.f32.xlu0 %v1552
  %v1556 = vpop.xlane.xlu0 %1555
  %1557 = vadd.xlane.f32.xlu0 %v1554
  %v1558 = vpop.xlane.xlu0 %1557
  %v1559 = vpack.c.bf16 %v1554, %v1552
  %1560 = vrot.lane.b32.xlu0 %v1280, 88
  %v1561 = vpop.permute.xlu0 %1560
  %1562 = vrot.lane.b32.xlu0 %v1281, 88
  %v1563 = vpop.permute.xlu0 %1562
  %1564 = vrot.lane.b32.xlu0 %v1282, 88
  %v1565 = vpop.permute.xlu0 %1564
  %1566 = vrot.lane.b32.xlu0 %v1283, 88
  %v1567 = vpop.permute.xlu0 %1566
  %1568 = vrot.lane.b32.xlu0 %v1284, 88
  %v1569 = vpop.permute.xlu0 %1568
  %1570 = vrot.lane.b32.xlu0 %v1285, 88
  %v1571 = vpop.permute.xlu0 %1570
  %1572 = vrot.lane.b32.xlu0 %v1286, 88
  %v1573 = vpop.permute.xlu0 %1572
  %1574 = vrot.lane.b32.xlu0 %v1287, 88
  %v1575 = vpop.permute.xlu0 %1574
  %1584 = vmatprep.subr.bf16.mxu0 0
  %1585 = vmatpush1.bf16.msra.mxu0 %v1561
  %1586 = vmatprep.subr.bf16.mxu0 0
  %1587 = vmatpush1.bf16.msra.mxu0 %v1563
  %1588 = vmatprep.subr.bf16.mxu0 0
  %1589 = vmatpush1.bf16.msra.mxu0 %v1565
  %1590 = vmatprep.subr.bf16.mxu0 0
  %1591 = vmatpush1.bf16.msra.mxu0 %v1567
  %1592 = vmatprep.subr.bf16.mxu0 0
  %1593 = vmatpush1.bf16.msra.mxu0 %v1569
  %1594 = vmatprep.subr.bf16.mxu0 0
  %1595 = vmatpush1.bf16.msra.mxu0 %v1571
  %1596 = vmatprep.subr.bf16.mxu0 0
  %1597 = vmatpush1.bf16.msra.mxu0 %v1573
  %1598 = vmatprep.subr.bf16.mxu0 0
  %1599 = vmatpush1.bf16.msra.mxu0 %v1575
  %1600 = vmatprep.subr.bf16.mxu0 0
  %1601 = vmatpush1.bf16.msra.mxu0 0
  %1602 = vmatprep.subr.bf16.mxu0 0
  %1603 = vmatpush1.bf16.msra.mxu0 0
  %1604 = vmatprep.subr.bf16.mxu0 0
  %1605 = vmatpush1.bf16.msra.mxu0 0
  %1606 = vmatprep.subr.bf16.mxu0 0
  %1607 = vmatpush1.bf16.msra.mxu0 0
  %1608 = vmatprep.subr.bf16.mxu0 0
  %1609 = vmatpush1.bf16.msra.mxu0 0
  %1610 = vmatprep.subr.bf16.mxu0 0
  %1611 = vmatpush1.bf16.msra.mxu0 0
  %1612 = vmatprep.subr.bf16.mxu0 0
  %1613 = vmatpush1.bf16.msra.mxu0 0
  %1614 = vmatprep.subr.bf16.mxu0 0
  %1615 = vmatpush1.bf16.msra.mxu0 0
  %1616 = vmatprep.mubr.bf16.mxu0 0
  %1617 = vmatmul.mubr.bf16.gmra.mrb[0].mxu0 %v1559
  %v1618 = vpop.f32.mrb[0].mxu0
  %v1619 = vadd.f32 0.0, %v1618
  %v1620 = vpop.f32.mrb[0].mxu0
  %v1621 = vpop.f32.mrb[0].mxu0
  %v1622 = vadd.f32 0.0, %v1621
  %v1623 = vpop.f32.mrb[0].mxu0
  %1624 = vdwg.mxu0
  %v1625 = vrcp.pop %v1556
  %v1626 = vrcp.pop %v1558
  %v1627 = vmul.f32 %v1619, %v1625
  %v1628 = vmul.f32 %v1622, %v1626
  %v1629 = vpack.c.bf16 %v1628, %v1627
  %v1630 = vpack.c.bf16 %v1275, %v1275
  %v1632 = vsel %vm319, %v1629, 0
  %v1635 = vsel %vm573, %v1630, 0
  %1637 = vmatprep.subr.bf16.mxu0 0
  %1638 = vmatpush1.bf16.msra.mxu0 %v1635
  %1639 = vmatprep.subr.bf16.mxu0 0
  %1640 = vmatpush1.bf16.msra.mxu0 0
  %1641 = vmatprep.subr.bf16.mxu0 0
  %1642 = vmatpush1.bf16.msra.mxu0 0
  %1643 = vmatprep.subr.bf16.mxu0 0
  %1644 = vmatpush1.bf16.msra.mxu0 0
  %1645 = vmatprep.subr.bf16.mxu0 0
  %1646 = vmatpush1.bf16.msra.mxu0 0
  %1647 = vmatprep.subr.bf16.mxu0 0
  %1648 = vmatpush1.bf16.msra.mxu0 0
  %1649 = vmatprep.subr.bf16.mxu0 0
  %1650 = vmatpush1.bf16.msra.mxu0 0
  %1651 = vmatprep.subr.bf16.mxu0 0
  %1652 = vmatpush1.bf16.msra.mxu0 0
  %1653 = vmatprep.subr.bf16.mxu0 0
  %1654 = vmatpush1.bf16.msra.mxu0 0
  %1655 = vmatprep.subr.bf16.mxu0 0
  %1656 = vmatpush1.bf16.msra.mxu0 0
  %1657 = vmatprep.subr.bf16.mxu0 0
  %1658 = vmatpush1.bf16.msra.mxu0 0
  %1659 = vmatprep.subr.bf16.mxu0 0
  %1660 = vmatpush1.bf16.msra.mxu0 0
  %1661 = vmatprep.subr.bf16.mxu0 0
  %1662 = vmatpush1.bf16.msra.mxu0 0
  %1663 = vmatprep.subr.bf16.mxu0 0
  %1664 = vmatpush1.bf16.msra.mxu0 0
  %1665 = vmatprep.subr.bf16.mxu0 0
  %1666 = vmatpush1.bf16.msra.mxu0 0
  %1667 = vmatprep.subr.bf16.mxu0 0
  %1668 = vmatpush1.bf16.msra.mxu0 0
  %1669 = vmatprep.mubr.bf16.mxu0 0
  %1670 = vmatmul.mubr.bf16.gmra.mrb[0].mxu0 %v1632
  %v1671 = vpop.f32.mrb[0].mxu0
  %v1672 = vadd.f32 0.0, %v1671
  %v1673 = vpop.f32.mrb[0].mxu0
  %v1674 = vpop.f32.mrb[0].mxu0
  %v1675 = vadd.f32 0.0, %v1674
  %v1676 = vpop.f32.mrb[0].mxu0
  %1677 = vdwg.mxu0
  %v1679 = vsel %vm319, %v1452, 0
  %v1682 = vsel %vm573, %v1453, 0
  %1684 = vmatprep.subr.bf16.mxu0 0
  %1685 = vmatpush1.bf16.msra.mxu0 %v1682
  %1686 = vmatprep.subr.bf16.mxu0 0
  %1687 = vmatpush1.bf16.msra.mxu0 0
  %1688 = vmatprep.subr.bf16.mxu0 0
  %1689 = vmatpush1.bf16.msra.mxu0 0
  %1690 = vmatprep.subr.bf16.mxu0 0
  %1691 = vmatpush1.bf16.msra.mxu0 0
  %1692 = vmatprep.subr.bf16.mxu0 0
  %1693 = vmatpush1.bf16.msra.mxu0 0
  %1694 = vmatprep.subr.bf16.mxu0 0
  %1695 = vmatpush1.bf16.msra.mxu0 0
  %1696 = vmatprep.subr.bf16.mxu0 0
  %1697 = vmatpush1.bf16.msra.mxu0 0
  %1698 = vmatprep.subr.bf16.mxu0 0
  %1699 = vmatpush1.bf16.msra.mxu0 0
  %1700 = vmatprep.subr.bf16.mxu0 0
  %1701 = vmatpush1.bf16.msra.mxu0 0
  %1702 = vmatprep.subr.bf16.mxu0 0
  %1703 = vmatpush1.bf16.msra.mxu0 0
  %1704 = vmatprep.subr.bf16.mxu0 0
  %1705 = vmatpush1.bf16.msra.mxu0 0
  %1706 = vmatprep.subr.bf16.mxu0 0
  %1707 = vmatpush1.bf16.msra.mxu0 0
  %1708 = vmatprep.subr.bf16.mxu0 0
  %1709 = vmatpush1.bf16.msra.mxu0 0
  %1710 = vmatprep.subr.bf16.mxu0 0
  %1711 = vmatpush1.bf16.msra.mxu0 0
  %1712 = vmatprep.subr.bf16.mxu0 0
  %1713 = vmatpush1.bf16.msra.mxu0 0
  %1714 = vmatprep.subr.bf16.mxu0 0
  %1715 = vmatpush1.bf16.msra.mxu0 0
  %1716 = vmatprep.mubr.bf16.mxu0 0
  %1717 = vmatmul.mubr.bf16.gmra.mrb[0].mxu0 %v1679
  %v1718 = vpop.f32.mrb[0].mxu0
  %v1719 = vadd.f32 %v1672, %v1718
  %v1720 = vpop.f32.mrb[0].mxu0
  %v1721 = vpop.f32.mrb[0].mxu0
  %v1722 = vadd.f32 %v1675, %v1721
  %v1723 = vpop.f32.mrb[0].mxu0
  %1724 = vdwg.mxu0
  %1725 = vrot.lane.b32.xlu0 %v1279, 112
  %v1726 = vpop.permute.xlu0 %1725
  %1727 = vrot.lane.b32.xlu0 %v1280, 112
  %v1728 = vpop.permute.xlu0 %1727
  %1729 = vrot.lane.b32.xlu0 %v1281, 112
  %v1730 = vpop.permute.xlu0 %1729
  %1731 = vrot.lane.b32.xlu0 %v1282, 112
  %v1732 = vpop.permute.xlu0 %1731
  %1733 = vrot.lane.b32.xlu0 %v1283, 112
  %v1734 = vpop.permute.xlu0 %1733
  %1735 = vrot.lane.b32.xlu0 %v1284, 112
  %v1736 = vpop.permute.xlu0 %1735
  %1737 = vrot.lane.b32.xlu0 %v1285, 112
  %v1738 = vpop.permute.xlu0 %1737
  %1739 = vrot.lane.b32.xlu0 %v1286, 112
  %v1740 = vpop.permute.xlu0 %1739
  %1741 = vrot.lane.b32.xlu0 %v1287, 112
  %v1742 = vpop.permute.xlu0 %1741
  %v1744 = vsel %vm319, %v1726, 0
  %v1747 = vsel %vm319, %v1728, 0
  %v1750 = vsel %vm319, %v1730, 0
  %v1753 = vsel %vm319, %v1732, 0
  %v1756 = vsel %vm319, %v1734, 0
  %v1759 = vsel %vm319, %v1736, 0
  %v1762 = vsel %vm319, %v1738, 0
  %v1765 = vsel %vm319, %v1740, 0
  %v1768 = vsel %vm319, %v1742, 0
  %1770 = vmatprep.subr.bf16.mxu0 0
  %1771 = vmatpush1.bf16.xpose.msra.mxu0 %v1747
  %1772 = vmatprep.subr.bf16.mxu0 0
  %1773 = vmatpush1.bf16.xpose.msra.mxu0 %v1750
  %1774 = vmatprep.subr.bf16.mxu0 0
  %1775 = vmatpush1.bf16.xpose.msra.mxu0 %v1753
  %1776 = vmatprep.subr.bf16.mxu0 0
  %1777 = vmatpush1.bf16.xpose.msra.mxu0 %v1756
  %1778 = vmatprep.subr.bf16.mxu0 0
  %1779 = vmatpush1.bf16.xpose.msra.mxu0 %v1759
  %1780 = vmatprep.subr.bf16.mxu0 0
  %1781 = vmatpush1.bf16.xpose.msra.mxu0 %v1762
  %1782 = vmatprep.subr.bf16.mxu0 0
  %1783 = vmatpush1.bf16.xpose.msra.mxu0 %v1765
  %1784 = vmatprep.subr.bf16.mxu0 0
  %1785 = vmatpush1.bf16.xpose.msra.mxu0 %v1768
  %1786 = vmatprep.subr.bf16.mxu0 0
  %1787 = vmatpush1.bf16.xpose.msra.mxu0 0
  %1788 = vmatprep.subr.bf16.mxu0 0
  %1789 = vmatpush1.bf16.xpose.msra.mxu0 0
  %1790 = vmatprep.subr.bf16.mxu0 0
  %1791 = vmatpush1.bf16.xpose.msra.mxu0 0
  %1792 = vmatprep.subr.bf16.mxu0 0
  %1793 = vmatpush1.bf16.xpose.msra.mxu0 0
  %1794 = vmatprep.subr.bf16.mxu0 0
  %1795 = vmatpush1.bf16.xpose.msra.mxu0 0
  %1796 = vmatprep.subr.bf16.mxu0 0
  %1797 = vmatpush1.bf16.xpose.msra.mxu0 0
  %1798 = vmatprep.subr.bf16.mxu0 0
  %1799 = vmatpush1.bf16.xpose.msra.mxu0 0
  %1800 = vmatprep.subr.bf16.mxu0 0
  %1801 = vmatpush1.bf16.xpose.msra.mxu0 0
  %1802 = vmatprep.mubr.bf16.mxu0 0
  %1803 = vmatmul.mubr.bf16.gmra.mrb[0].mxu0 %v1744
  %v1804 = vpop.f32.mrb[0].mxu0
  %v1805 = vadd.f32 0.0, %v1804
  %v1806 = vpop.f32.mrb[0].mxu0
  %v1807 = vpop.f32.mrb[0].mxu0
  %v1808 = vadd.f32 0.0, %v1807
  %v1809 = vpop.f32.mrb[0].mxu0
  %1810 = vdwg.mxu0
  %v1811 = vmul.f32 %v1805, 0.35355338
  %v1812 = vmul.f32 %v1808, 0.35355338
  %v1813 = vadd.f32 %v1811, %v189
  %v1814 = vadd.f32 %v1812, %v190
  %1815 = vmax.xlane.f32.xlu0 %v1813
  %v1816 = vpop.xlane.xlu0 %1815
  %1817 = vmax.xlane.f32.xlu0 %v1814
  %v1818 = vpop.xlane.xlu0 %1817
  %v1819 = vsub.f32 %v1813, %v1816
  %v1820 = vsub.f32 %v1814, %v1818
  %v1821 = vmul.f32 %v1819, 1.442695
  %v1822 = vpow.pop %v1821
  %v1823 = vmul.f32 %v1820, 1.442695
  %v1824 = vpow.pop %v1823
  %1825 = vadd.xlane.f32.xlu0 %v1822
  %v1826 = vpop.xlane.xlu0 %1825
  %1827 = vadd.xlane.f32.xlu0 %v1824
  %v1828 = vpop.xlane.xlu0 %1827
  %v1829 = vpack.c.bf16 %v1824, %v1822
  %1830 = vrot.lane.b32.xlu0 %v1280, 80
  %v1831 = vpop.permute.xlu0 %1830
  %1832 = vrot.lane.b32.xlu0 %v1281, 80
  %v1833 = vpop.permute.xlu0 %1832
  %1834 = vrot.lane.b32.xlu0 %v1282, 80
  %v1835 = vpop.permute.xlu0 %1834
  %1836 = vrot.lane.b32.xlu0 %v1283, 80
  %v1837 = vpop.permute.xlu0 %1836
  %1838 = vrot.lane.b32.xlu0 %v1284, 80
  %v1839 = vpop.permute.xlu0 %1838
  %1840 = vrot.lane.b32.xlu0 %v1285, 80
  %v1841 = vpop.permute.xlu0 %1840
  %1842 = vrot.lane.b32.xlu0 %v1286, 80
  %v1843 = vpop.permute.xlu0 %1842
  %1844 = vrot.lane.b32.xlu0 %v1287, 80
  %v1845 = vpop.permute.xlu0 %1844
  %1854 = vmatprep.subr.bf16.mxu0 0
  %1855 = vmatpush1.bf16.msra.mxu0 %v1831
  %1856 = vmatprep.subr.bf16.mxu0 0
  %1857 = vmatpush1.bf16.msra.mxu0 %v1833
  %1858 = vmatprep.subr.bf16.mxu0 0
  %1859 = vmatpush1.bf16.msra.mxu0 %v1835
  %1860 = vmatprep.subr.bf16.mxu0 0
  %1861 = vmatpush1.bf16.msra.mxu0 %v1837
  %1862 = vmatprep.subr.bf16.mxu0 0
  %1863 = vmatpush1.bf16.msra.mxu0 %v1839
  %1864 = vmatprep.subr.bf16.mxu0 0
  %1865 = vmatpush1.bf16.msra.mxu0 %v1841
  %1866 = vmatprep.subr.bf16.mxu0 0
  %1867 = vmatpush1.bf16.msra.mxu0 %v1843
  %1868 = vmatprep.subr.bf16.mxu0 0
  %1869 = vmatpush1.bf16.msra.mxu0 %v1845
  %1870 = vmatprep.subr.bf16.mxu0 0
  %1871 = vmatpush1.bf16.msra.mxu0 0
  %1872 = vmatprep.subr.bf16.mxu0 0
  %1873 = vmatpush1.bf16.msra.mxu0 0
  %1874 = vmatprep.subr.bf16.mxu0 0
  %1875 = vmatpush1.bf16.msra.mxu0 0
  %1876 = vmatprep.subr.bf16.mxu0 0
  %1877 = vmatpush1.bf16.msra.mxu0 0
  %1878 = vmatprep.subr.bf16.mxu0 0
  %1879 = vmatpush1.bf16.msra.mxu0 0
  %1880 = vmatprep.subr.bf16.mxu0 0
  %1881 = vmatpush1.bf16.msra.mxu0 0
  %1882 = vmatprep.subr.bf16.mxu0 0
  %1883 = vmatpush1.bf16.msra.mxu0 0
  %1884 = vmatprep.subr.bf16.mxu0 0
  %1885 = vmatpush1.bf16.msra.mxu0 0
  %1886 = vmatprep.mubr.bf16.mxu0 0
  %1887 = vmatmul.mubr.bf16.gmra.mrb[0].mxu0 %v1829
  %v1888 = vpop.f32.mrb[0].mxu0
  %v1889 = vadd.f32 0.0, %v1888
  %v1890 = vpop.f32.mrb[0].mxu0
  %v1891 = vpop.f32.mrb[0].mxu0
  %v1892 = vadd.f32 0.0, %v1891
  %v1893 = vpop.f32.mrb[0].mxu0
  %1894 = vdwg.mxu0
  %v1895 = vrcp.pop %v1826
  %v1896 = vrcp.pop %v1828
  %v1897 = vmul.f32 %v1889, %v1895
  %v1898 = vmul.f32 %v1892, %v1896
  %v1899 = vpack.c.bf16 %v1898, %v1897
  %v1900 = vpack.c.bf16 %v1276, %v1276
  %v1902 = vsel %vm319, %v1899, 0
  %v1905 = vsel %vm573, %v1900, 0
  %1907 = vmatprep.subr.bf16.mxu0 0
  %1908 = vmatpush1.bf16.msra.mxu0 %v1905
  %1909 = vmatprep.subr.bf16.mxu0 0
  %1910 = vmatpush1.bf16.msra.mxu0 0
  %1911 = vmatprep.subr.bf16.mxu0 0
  %1912 = vmatpush1.bf16.msra.mxu0 0
  %1913 = vmatprep.subr.bf16.mxu0 0
  %1914 = vmatpush1.bf16.msra.mxu0 0
  %1915 = vmatprep.subr.bf16.mxu0 0
  %1916 = vmatpush1.bf16.msra.mxu0 0
  %1917 = vmatprep.subr.bf16.mxu0 0
  %1918 = vmatpush1.bf16.msra.mxu0 0
  %1919 = vmatprep.subr.bf16.mxu0 0
  %1920 = vmatpush1.bf16.msra.mxu0 0
  %1921 = vmatprep.subr.bf16.mxu0 0
  %1922 = vmatpush1.bf16.msra.mxu0 0
  %1923 = vmatprep.subr.bf16.mxu0 0
  %1924 = vmatpush1.bf16.msra.mxu0 0
  %1925 = vmatprep.subr.bf16.mxu0 0
  %1926 = vmatpush1.bf16.msra.mxu0 0
  %1927 = vmatprep.subr.bf16.mxu0 0
  %1928 = vmatpush1.bf16.msra.mxu0 0
  %1929 = vmatprep.subr.bf16.mxu0 0
  %1930 = vmatpush1.bf16.msra.mxu0 0
  %1931 = vmatprep.subr.bf16.mxu0 0
  %1932 = vmatpush1.bf16.msra.mxu0 0
  %1933 = vmatprep.subr.bf16.mxu0 0
  %1934 = vmatpush1.bf16.msra.mxu0 0
  %1935 = vmatprep.subr.bf16.mxu0 0
  %1936 = vmatpush1.bf16.msra.mxu0 0
  %1937 = vmatprep.subr.bf16.mxu0 0
  %1938 = vmatpush1.bf16.msra.mxu0 0
  %1939 = vmatprep.mubr.bf16.mxu0 0
  %1940 = vmatmul.mubr.bf16.gmra.mrb[0].mxu0 %v1902
  %v1941 = vpop.f32.mrb[0].mxu0
  %v1942 = vadd.f32 0.0, %v1941
  %v1943 = vpop.f32.mrb[0].mxu0
  %v1944 = vpop.f32.mrb[0].mxu0
  %v1945 = vadd.f32 0.0, %v1944
  %v1946 = vpop.f32.mrb[0].mxu0
  %1947 = vdwg.mxu0
  %v1948 = vadd.f32 %v1719, %v1942
  %v1949 = vadd.f32 %v1722, %v1945
  %1950 = vrot.lane.b32.xlu0 %v1279, 104
  %v1951 = vpop.permute.xlu0 %1950
  %1952 = vrot.lane.b32.xlu0 %v1280, 104
  %v1953 = vpop.permute.xlu0 %1952
  %1954 = vrot.lane.b32.xlu0 %v1281, 104
  %v1955 = vpop.permute.xlu0 %1954
  %1956 = vrot.lane.b32.xlu0 %v1282, 104
  %v1957 = vpop.permute.xlu0 %1956
  %1958 = vrot.lane.b32.xlu0 %v1283, 104
  %v1959 = vpop.permute.xlu0 %1958
  %1960 = vrot.lane.b32.xlu0 %v1284, 104
  %v1961 = vpop.permute.xlu0 %1960
  %1962 = vrot.lane.b32.xlu0 %v1285, 104
  %v1963 = vpop.permute.xlu0 %1962
  %1964 = vrot.lane.b32.xlu0 %v1286, 104
  %v1965 = vpop.permute.xlu0 %1964
  %1966 = vrot.lane.b32.xlu0 %v1287, 104
  %v1967 = vpop.permute.xlu0 %1966
  %v1969 = vsel %vm319, %v1951, 0
  %v1972 = vsel %vm319, %v1953, 0
  %v1975 = vsel %vm319, %v1955, 0
  %v1978 = vsel %vm319, %v1957, 0
  %v1981 = vsel %vm319, %v1959, 0
  %v1984 = vsel %vm319, %v1961, 0
  %v1987 = vsel %vm319, %v1963, 0
  %v1990 = vsel %vm319, %v1965, 0
  %v1993 = vsel %vm319, %v1967, 0
  %1995 = vmatprep.subr.bf16.mxu0 0
  %1996 = vmatpush1.bf16.xpose.msra.mxu0 %v1972
  %1997 = vmatprep.subr.bf16.mxu0 0
  %1998 = vmatpush1.bf16.xpose.msra.mxu0 %v1975
  %1999 = vmatprep.subr.bf16.mxu0 0
  %2000 = vmatpush1.bf16.xpose.msra.mxu0 %v1978
  %2001 = vmatprep.subr.bf16.mxu0 0
  %2002 = vmatpush1.bf16.xpose.msra.mxu0 %v1981
  %2003 = vmatprep.subr.bf16.mxu0 0
  %2004 = vmatpush1.bf16.xpose.msra.mxu0 %v1984
  %2005 = vmatprep.subr.bf16.mxu0 0
  %2006 = vmatpush1.bf16.xpose.msra.mxu0 %v1987
  %2007 = vmatprep.subr.bf16.mxu0 0
  %2008 = vmatpush1.bf16.xpose.msra.mxu0 %v1990
  %2009 = vmatprep.subr.bf16.mxu0 0
  %2010 = vmatpush1.bf16.xpose.msra.mxu0 %v1993
  %2011 = vmatprep.subr.bf16.mxu0 0
  %2012 = vmatpush1.bf16.xpose.msra.mxu0 0
  %2013 = vmatprep.subr.bf16.mxu0 0
  %2014 = vmatpush1.bf16.xpose.msra.mxu0 0
  %2015 = vmatprep.subr.bf16.mxu0 0
  %2016 = vmatpush1.bf16.xpose.msra.mxu0 0
  %2017 = vmatprep.subr.bf16.mxu0 0
  %2018 = vmatpush1.bf16.xpose.msra.mxu0 0
  %2019 = vmatprep.subr.bf16.mxu0 0
  %2020 = vmatpush1.bf16.xpose.msra.mxu0 0
  %2021 = vmatprep.subr.bf16.mxu0 0
  %2022 = vmatpush1.bf16.xpose.msra.mxu0 0
  %2023 = vmatprep.subr.bf16.mxu0 0
  %2024 = vmatpush1.bf16.xpose.msra.mxu0 0
  %2025 = vmatprep.subr.bf16.mxu0 0
  %2026 = vmatpush1.bf16.xpose.msra.mxu0 0
  %2027 = vmatprep.mubr.bf16.mxu0 0
  %2028 = vmatmul.mubr.bf16.gmra.mrb[0].mxu0 %v1969
  %v2029 = vpop.f32.mrb[0].mxu0
  %v2030 = vadd.f32 0.0, %v2029
  %v2031 = vpop.f32.mrb[0].mxu0
  %v2032 = vpop.f32.mrb[0].mxu0
  %v2033 = vadd.f32 0.0, %v2032
  %v2034 = vpop.f32.mrb[0].mxu0
  %2035 = vdwg.mxu0
  %v2036 = vmul.f32 %v2030, 0.35355338
  %v2037 = vmul.f32 %v2033, 0.35355338
  %v2038 = vadd.f32 %v2036, %v189
  %v2039 = vadd.f32 %v2037, %v190
  %2040 = vmax.xlane.f32.xlu0 %v2038
  %v2041 = vpop.xlane.xlu0 %2040
  %2042 = vmax.xlane.f32.xlu0 %v2039
  %v2043 = vpop.xlane.xlu0 %2042
  %v2044 = vsub.f32 %v2038, %v2041
  %v2045 = vsub.f32 %v2039, %v2043
  %v2046 = vmul.f32 %v2044, 1.442695
  %v2047 = vpow.pop %v2046
  %v2048 = vmul.f32 %v2045, 1.442695
  %v2049 = vpow.pop %v2048
  %2050 = vadd.xlane.f32.xlu0 %v2047
  %v2051 = vpop.xlane.xlu0 %2050
  %2052 = vadd.xlane.f32.xlu0 %v2049
  %v2053 = vpop.xlane.xlu0 %2052
  %v2054 = vpack.c.bf16 %v2049, %v2047
  %2055 = vrot.lane.b32.xlu0 %v1280, 72
  %v2056 = vpop.permute.xlu0 %2055
  %2057 = vrot.lane.b32.xlu0 %v1281, 72
  %v2058 = vpop.permute.xlu0 %2057
  %2059 = vrot.lane.b32.xlu0 %v1282, 72
  %v2060 = vpop.permute.xlu0 %2059
  %2061 = vrot.lane.b32.xlu0 %v1283, 72
  %v2062 = vpop.permute.xlu0 %2061
  %2063 = vrot.lane.b32.xlu0 %v1284, 72
  %v2064 = vpop.permute.xlu0 %2063
  %2065 = vrot.lane.b32.xlu0 %v1285, 72
  %v2066 = vpop.permute.xlu0 %2065
  %2067 = vrot.lane.b32.xlu0 %v1286, 72
  %v2068 = vpop.permute.xlu0 %2067
  %2069 = vrot.lane.b32.xlu0 %v1287, 72
  %v2070 = vpop.permute.xlu0 %2069
  %2079 = vmatprep.subr.bf16.mxu0 0
  %2080 = vmatpush1.bf16.msra.mxu0 %v2056
  %2081 = vmatprep.subr.bf16.mxu0 0
  %2082 = vmatpush1.bf16.msra.mxu0 %v2058
  %2083 = vmatprep.subr.bf16.mxu0 0
  %2084 = vmatpush1.bf16.msra.mxu0 %v2060
  %2085 = vmatprep.subr.bf16.mxu0 0
  %2086 = vmatpush1.bf16.msra.mxu0 %v2062
  %2087 = vmatprep.subr.bf16.mxu0 0
  %2088 = vmatpush1.bf16.msra.mxu0 %v2064
  %2089 = vmatprep.subr.bf16.mxu0 0
  %2090 = vmatpush1.bf16.msra.mxu0 %v2066
  %2091 = vmatprep.subr.bf16.mxu0 0
  %2092 = vmatpush1.bf16.msra.mxu0 %v2068
  %2093 = vmatprep.subr.bf16.mxu0 0
  %2094 = vmatpush1.bf16.msra.mxu0 %v2070
  %2095 = vmatprep.subr.bf16.mxu0 0
  %2096 = vmatpush1.bf16.msra.mxu0 0
  %2097 = vmatprep.subr.bf16.mxu0 0
  %2098 = vmatpush1.bf16.msra.mxu0 0
  %2099 = vmatprep.subr.bf16.mxu0 0
  %2100 = vmatpush1.bf16.msra.mxu0 0
  %2101 = vmatprep.subr.bf16.mxu0 0
  %2102 = vmatpush1.bf16.msra.mxu0 0
  %2103 = vmatprep.subr.bf16.mxu0 0
  %2104 = vmatpush1.bf16.msra.mxu0 0
  %2105 = vmatprep.subr.bf16.mxu0 0
  %2106 = vmatpush1.bf16.msra.mxu0 0
  %2107 = vmatprep.subr.bf16.mxu0 0
  %2108 = vmatpush1.bf16.msra.mxu0 0
  %2109 = vmatprep.subr.bf16.mxu0 0
  %2110 = vmatpush1.bf16.msra.mxu0 0
  %2111 = vmatprep.mubr.bf16.mxu0 0
  %2112 = vmatmul.mubr.bf16.gmra.mrb[0].mxu0 %v2054
  %v2113 = vpop.f32.mrb[0].mxu0
  %v2114 = vadd.f32 0.0, %v2113
  %v2115 = vpop.f32.mrb[0].mxu0
  %v2116 = vpop.f32.mrb[0].mxu0
  %v2117 = vadd.f32 0.0, %v2116
  %v2118 = vpop.f32.mrb[0].mxu0
  %2119 = vdwg.mxu0
  %v2120 = vrcp.pop %v2051
  %v2121 = vrcp.pop %v2053
  %v2122 = vmul.f32 %v2114, %v2120
  %v2123 = vmul.f32 %v2117, %v2121
  %v2124 = vpack.c.bf16 %v2123, %v2122
  %v2125 = vpack.c.bf16 %v1277, %v1277
  %v2127 = vsel %vm319, %v2124, 0
  %v2130 = vsel %vm573, %v2125, 0
  %2132 = vmatprep.subr.bf16.mxu0 0
  %2133 = vmatpush1.bf16.msra.mxu0 %v2130
  %2134 = vmatprep.subr.bf16.mxu0 0
  %2135 = vmatpush1.bf16.msra.mxu0 0
  %2136 = vmatprep.subr.bf16.mxu0 0
  %2137 = vmatpush1.bf16.msra.mxu0 0
  %2138 = vmatprep.subr.bf16.mxu0 0
  %2139 = vmatpush1.bf16.msra.mxu0 0
  %2140 = vmatprep.subr.bf16.mxu0 0
  %2141 = vmatpush1.bf16.msra.mxu0 0
  %2142 = vmatprep.subr.bf16.mxu0 0
  %2143 = vmatpush1.bf16.msra.mxu0 0
  %2144 = vmatprep.subr.bf16.mxu0 0
  %2145 = vmatpush1.bf16.msra.mxu0 0
  %2146 = vmatprep.subr.bf16.mxu0 0
  %2147 = vmatpush1.bf16.msra.mxu0 0
  %2148 = vmatprep.subr.bf16.mxu0 0
  %2149 = vmatpush1.bf16.msra.mxu0 0
  %2150 = vmatprep.subr.bf16.mxu0 0
  %2151 = vmatpush1.bf16.msra.mxu0 0
  %2152 = vmatprep.subr.bf16.mxu0 0
  %2153 = vmatpush1.bf16.msra.mxu0 0
  %2154 = vmatprep.subr.bf16.mxu0 0
  %2155 = vmatpush1.bf16.msra.mxu0 0
  %2156 = vmatprep.subr.bf16.mxu0 0
  %2157 = vmatpush1.bf16.msra.mxu0 0
  %2158 = vmatprep.subr.bf16.mxu0 0
  %2159 = vmatpush1.bf16.msra.mxu0 0
  %2160 = vmatprep.subr.bf16.mxu0 0
  %2161 = vmatpush1.bf16.msra.mxu0 0
  %2162 = vmatprep.subr.bf16.mxu0 0
  %2163 = vmatpush1.bf16.msra.mxu0 0
  %2164 = vmatprep.mubr.bf16.mxu0 0
  %2165 = vmatmul.mubr.bf16.gmra.mrb[0].mxu0 %v2127
  %v2166 = vpop.f32.mrb[0].mxu0
  %v2167 = vadd.f32 0.0, %v2166
  %v2168 = vpop.f32.mrb[0].mxu0
  %v2169 = vpop.f32.mrb[0].mxu0
  %v2170 = vadd.f32 0.0, %v2169
  %v2171 = vpop.f32.mrb[0].mxu0
  %2172 = vdwg.mxu0
  %v2173 = vadd.f32 %v1948, %v2167
  %v2174 = vadd.f32 %v1949, %v2170
  %v2176 = vlaneseq
  %v2177 = vshrl.u32 %v2176, 7
  %v2178 = vsub.s32 0, %v2177
  %v2179 = vrot.slane %v1278, %v2178
  %v2181 = vadd.f32 %v2173, %v2179
  %v2182 = vadd.f32 %v2174, %v2179
  %v2183 = vadd.f32 %v1070, %v2181
  %v2184 = vadd.f32 %v1071, %v2182
  %v2185 = vld [vmem:[%s51] sm:$0x1]
  %v2186 = vld [vmem:[%s53] sm:$0x1]
  %v2187 = vsel %vm207, %v2183, 0.0
  %2188 = vadd.xlane.f32.xlu0 %v2187
  %v2189 = vpop.xlane.xlu0 %2188
  %v2190 = vsel %vm207, %v2184, 0.0
  %2191 = vadd.xlane.f32.xlu0 %v2190
  %v2192 = vpop.xlane.xlu0 %2191
  %v2193 = vmul.f32 %v2189, %v1035
  %v2194 = vmul.f32 %v2192, %v1035
  %v2195 = vsub.f32 %v2183, %v2193
  %v2196 = vsub.f32 %v2184, %v2194
  %v2197 = vmul.f32 %v2195, %v2195
  %v2198 = vmul.f32 %v2196, %v2196
  %v2199 = vsel %vm207, %v2197, 0.0
  %2200 = vadd.xlane.f32.xlu0 %v2199
  %v2201 = vpop.xlane.xlu0 %2200
  %v2202 = vsel %vm207, %v2198, 0.0
  %2203 = vadd.xlane.f32.xlu0 %v2202
  %v2204 = vpop.xlane.xlu0 %2203
  %v2205 = vmul.f32 %v2201, %v1035
  %v2206 = vmul.f32 %v2204, %v1035
  %v2207 = vadd.f32 %v2205, 1e-05
  %v2208 = vadd.f32 %v2206, 1e-05
  %v2209 = vrsqrt.pop %v2207
  %v2210 = vrsqrt.pop %v2208
  %v2211 = vmul.f32 %v2195, %v2209
  %v2212 = vmul.f32 %v2196, %v2210
  %v2214 = vlaneseq
  %v2215 = vshrl.u32 %v2214, 7
  %v2216 = vsub.s32 0, %v2215
  %v2217 = vrot.slane %v2185, %v2216
  %v2219 = vmul.f32 %v2211, %v2217
  %v2220 = vmul.f32 %v2212, %v2217
  %v2222 = vlaneseq
  %v2223 = vshrl.u32 %v2222, 7
  %v2224 = vsub.s32 0, %v2223
  %v2225 = vrot.slane %v2186, %v2224
  %v2227 = vadd.f32 %v2219, %v2225
  %v2228 = vadd.f32 %v2220, %v2225
  %v2229 = vld [vmem:[%s39] sm:$0xff]
  %v2230 = vld [vmem:[%s39 + $0x8] sm:$0xff]
  %v2231 = vld [vmem:[%s39 + $0x10] sm:$0xff]
  %v2232 = vld [vmem:[%s39 + $0x18] sm:$0xff]
  %v2233 = vpack.c.bf16 %v2228, %v2227
  %v2234 = vpack.c.bf16 %v2230, %v2229
  %v2235 = vpack.c.bf16 %v2232, %v2231
  %v2236 = vld [vmem:[%s41] sm:$0x1]
  %v2238 = vlaneseq
  %v2239 = vshrl.u32 %v2238, 7
  %v2240 = vsub.s32 0, %v2239
  %v2241 = vrot.slane %v2236, %v2240
  %v2244 = vsel %vm207, %v2233, 0
  %2246 = vmatprep.subr.bf16.mxu0 0
  %2247 = vmatpush1.bf16.msra.mxu0 %v2234
  %2248 = vmatprep.subr.bf16.mxu0 0
  %2249 = vmatpush1.bf16.msra.mxu0 %v2235
  %2250 = vmatprep.subr.bf16.mxu0 0
  %2251 = vmatpush1.bf16.msra.mxu0 0
  %2252 = vmatprep.subr.bf16.mxu0 0
  %2253 = vmatpush1.bf16.msra.mxu0 0
  %2254 = vmatprep.subr.bf16.mxu0 0
  %2255 = vmatpush1.bf16.msra.mxu0 0
  %2256 = vmatprep.subr.bf16.mxu0 0
  %2257 = vmatpush1.bf16.msra.mxu0 0
  %2258 = vmatprep.subr.bf16.mxu0 0
  %2259 = vmatpush1.bf16.msra.mxu0 0
  %2260 = vmatprep.subr.bf16.mxu0 0
  %2261 = vmatpush1.bf16.msra.mxu0 0
  %2262 = vmatprep.subr.bf16.mxu0 0
  %2263 = vmatpush1.bf16.msra.mxu0 0
  %2264 = vmatprep.subr.bf16.mxu0 0
  %2265 = vmatpush1.bf16.msra.mxu0 0
  %2266 = vmatprep.subr.bf16.mxu0 0
  %2267 = vmatpush1.bf16.msra.mxu0 0
  %2268 = vmatprep.subr.bf16.mxu0 0
  %2269 = vmatpush1.bf16.msra.mxu0 0
  %2270 = vmatprep.subr.bf16.mxu0 0
  %2271 = vmatpush1.bf16.msra.mxu0 0
  %2272 = vmatprep.subr.bf16.mxu0 0
  %2273 = vmatpush1.bf16.msra.mxu0 0
  %2274 = vmatprep.subr.bf16.mxu0 0
  %2275 = vmatpush1.bf16.msra.mxu0 0
  %2276 = vmatprep.subr.bf16.mxu0 0
  %2277 = vmatpush1.bf16.msra.mxu0 0
  %2278 = vmatprep.mubr.bf16.mxu0 0
  %2279 = vmatmul.mubr.bf16.gmra.mrb[0].mxu0 %v2244
  %v2280 = vpop.f32.mrb[0].mxu0
  %v2281 = vadd.f32 %v2241, %v2280
  %v2282 = vpop.f32.mrb[0].mxu0
  %v2283 = vpop.f32.mrb[0].mxu0
  %v2284 = vadd.f32 %v2241, %v2283
  %v2285 = vpop.f32.mrb[0].mxu0
  %2286 = vdwg.mxu0
  %v2287 = vmax.f32 %v2281, 0.0
  %v2288 = vmax.f32 %v2284, 0.0
  %v2289 = vld [vmem:[%s43] sm:$0xff]
  %v2290 = vld [vmem:[%s43 + $0x8] sm:$0xff]
  %v2291 = vld [vmem:[%s43 + $0x10] sm:$0xff]
  %v2292 = vld [vmem:[%s43 + $0x18] sm:$0xff]
  %v2293 = vld [vmem:[%s43 + $0x20] sm:$0xff]
  %v2294 = vld [vmem:[%s43 + $0x28] sm:$0xff]
  %v2295 = vld [vmem:[%s43 + $0x30] sm:$0xff]
  %v2296 = vld [vmem:[%s43 + $0x38] sm:$0xff]
  %v2297 = vpack.c.bf16 %v2288, %v2287
  %v2298 = vpack.c.bf16 %v2290, %v2289
  %v2299 = vpack.c.bf16 %v2292, %v2291
  %v2300 = vpack.c.bf16 %v2294, %v2293
  %v2301 = vpack.c.bf16 %v2296, %v2295
  %v2302 = vld [vmem:[%s45] sm:$0x1]
  %v2304 = vlaneseq
  %v2305 = vshrl.u32 %v2304, 7
  %v2306 = vsub.s32 0, %v2305
  %v2307 = vrot.slane %v2302, %v2306
  %vm2309 = vcmask 523264
  %v2311 = vsel %vm2309, %v2297, 0
  %2313 = vmatprep.subr.bf16.mxu0 0
  %2314 = vmatpush1.bf16.msra.mxu0 %v2298
  %2315 = vmatprep.subr.bf16.mxu0 0
  %2316 = vmatpush1.bf16.msra.mxu0 %v2299
  %2317 = vmatprep.subr.bf16.mxu0 0
  %2318 = vmatpush1.bf16.msra.mxu0 %v2300
  %2319 = vmatprep.subr.bf16.mxu0 0
  %2320 = vmatpush1.bf16.msra.mxu0 %v2301
  %2321 = vmatprep.subr.bf16.mxu0 0
  %2322 = vmatpush1.bf16.msra.mxu0 0
  %2323 = vmatprep.subr.bf16.mxu0 0
  %2324 = vmatpush1.bf16.msra.mxu0 0
  %2325 = vmatprep.subr.bf16.mxu0 0
  %2326 = vmatpush1.bf16.msra.mxu0 0
  %2327 = vmatprep.subr.bf16.mxu0 0
  %2328 = vmatpush1.bf16.msra.mxu0 0
  %2329 = vmatprep.subr.bf16.mxu0 0
  %2330 = vmatpush1.bf16.msra.mxu0 0
  %2331 = vmatprep.subr.bf16.mxu0 0
  %2332 = vmatpush1.bf16.msra.mxu0 0
  %2333 = vmatprep.subr.bf16.mxu0 0
  %2334 = vmatpush1.bf16.msra.mxu0 0
  %2335 = vmatprep.subr.bf16.mxu0 0
  %2336 = vmatpush1.bf16.msra.mxu0 0
  %2337 = vmatprep.subr.bf16.mxu0 0
  %2338 = vmatpush1.bf16.msra.mxu0 0
  %2339 = vmatprep.subr.bf16.mxu0 0
  %2340 = vmatpush1.bf16.msra.mxu0 0
  %2341 = vmatprep.subr.bf16.mxu0 0
  %2342 = vmatpush1.bf16.msra.mxu0 0
  %2343 = vmatprep.subr.bf16.mxu0 0
  %2344 = vmatpush1.bf16.msra.mxu0 0
  %2345 = vmatprep.mubr.bf16.mxu0 0
  %2346 = vmatmul.mubr.bf16.gmra.mrb[0].mxu0 %v2311
  %v2347 = vpop.f32.mrb[0].mxu0
  %v2348 = vadd.f32 %v2307, %v2347
  %v2349 = vpop.f32.mrb[0].mxu0
  %v2350 = vpop.f32.mrb[0].mxu0
  %v2351 = vadd.f32 %v2307, %v2350
  %v2352 = vpop.f32.mrb[0].mxu0
  %2353 = vdwg.mxu0
  %v2354 = vadd.f32 %v2227, %v2348
  %v2355 = vadd.f32 %v2228, %v2351
  %v2356 = vld [vmem:[%s55] sm:$0x1]
  %v2357 = vld [vmem:[%s57] sm:$0x1]
  %v2358 = vsel %vm207, %v2354, 0.0
  %2359 = vadd.xlane.f32.xlu0 %v2358
  %v2360 = vpop.xlane.xlu0 %2359
  %v2361 = vsel %vm207, %v2355, 0.0
  %2362 = vadd.xlane.f32.xlu0 %v2361
  %v2363 = vpop.xlane.xlu0 %2362
  %v2364 = vmul.f32 %v2360, %v1035
  %v2365 = vmul.f32 %v2363, %v1035
  %v2366 = vsub.f32 %v2354, %v2364
  %v2367 = vsub.f32 %v2355, %v2365
  %v2368 = vmul.f32 %v2366, %v2366
  %v2369 = vmul.f32 %v2367, %v2367
  %v2370 = vsel %vm207, %v2368, 0.0
  %2371 = vadd.xlane.f32.xlu0 %v2370
  %v2372 = vpop.xlane.xlu0 %2371
  %v2373 = vsel %vm207, %v2369, 0.0
  %2374 = vadd.xlane.f32.xlu0 %v2373
  %v2375 = vpop.xlane.xlu0 %2374
  %v2376 = vmul.f32 %v2372, %v1035
  %v2377 = vmul.f32 %v2375, %v1035
  %v2378 = vadd.f32 %v2376, 1e-05
  %v2379 = vadd.f32 %v2377, 1e-05
  %v2380 = vrsqrt.pop %v2378
  %v2381 = vrsqrt.pop %v2379
  %v2382 = vmul.f32 %v2366, %v2380
  %v2383 = vmul.f32 %v2367, %v2381
  %v2385 = vlaneseq
  %v2386 = vshrl.u32 %v2385, 7
  %v2387 = vsub.s32 0, %v2386
  %v2388 = vrot.slane %v2356, %v2387
  %v2390 = vmul.f32 %v2382, %v2388
  %v2391 = vmul.f32 %v2383, %v2388
  %v2393 = vlaneseq
  %v2394 = vshrl.u32 %v2393, 7
  %v2395 = vsub.s32 0, %v2394
  %v2396 = vrot.slane %v2357, %v2395
  %v2398 = vadd.f32 %v2390, %v2396
  %v2399 = vadd.f32 %v2391, %v2396
  %2400 = vst.msk [vmem:[%s59] sm:$0xff] %vm207, %v2398
  %2401 = vst.msk [vmem:[%s59 + $0x8] sm:$0xff] %vm207, %v2399
  // Predicated region
  $region118: #{decoder_forward.4} parent=0 // pred_check
    _
  $region119: #{decoder_forward.4} parent=0 // pred_check_branch
    %2403 = sbr.rel (0) target = $region121
  $region120: #{decoder_forward.4} parent=0 // pred_region
    _
  $region121: #{decoder_forward.4} parent=0 // pred_fallthru
    _
  // Predicated region
  $region122: #{decoder_forward.4} parent=0 // pred_check
    _
  $region123: #{decoder_forward.4} parent=0 // pred_check_branch
    %2405 = sbr.rel (0) target = $region125
  $region124: #{decoder_forward.4} parent=0 // pred_region
    _
  $region125: #{decoder_forward.4} parent=0 // pred_fallthru
    _

</llo_original>
